<compile_context>
chip_gen: v5e
topology: v5e:2x2
jax: 0.10.0
libtpu: 0.0.40
codegen_flags: <defaults>
</compile_context>

<pallas_src>
import jax
import jax.numpy as jnp
from jax.experimental import pallas as pl
from jax.experimental.pallas import tpu as pltpu

BN_EPS = 1e-5  # PyTorch nn.BatchNorm2d default
_HI = jax.lax.Precision.HIGHEST


def _coordatt_kernel(x_ref, pnh_ref, pnw_ref, bhn_ref, bwn_ref,
                     w1_ref, s1_ref, c1_ref,
                     wh_ref, bh_ref, ww_ref, bw_ref,
                     o_ref):
    # x_ref / o_ref: (C, N) lane-dense (N = H*W on lanes), batch dim squeezed.
    x = x_ref[...].astype(jnp.float32)                                   # (C, N)

    # Coordinate average pooling via tiny selector matmuls (MXU, no relayout):
    #   pnh[n, h] = 1/W if n//W == h ;  pnw[n, w] = 1/H if n%W == w
    x_h = jnp.dot(x, pnh_ref[...], precision=_HI,
                  preferred_element_type=jnp.float32)                    # (C, H)
    x_w = jnp.dot(x, pnw_ref[...], precision=_HI,
                  preferred_element_type=jnp.float32)                    # (C, W)

    # Shared bottleneck: 1x1 conv + folded (eval-mode) BatchNorm + h_swish.
    # cat -> conv1x1 -> BN -> act -> split  ==  applying the same per-position
    # pipeline to x_h and x_w separately (all ops are per-position).
    def bottleneck(v):
        z = jnp.dot(w1_ref[...], v, precision=_HI,
                    preferred_element_type=jnp.float32)                  # (mip, P)
        z = z * s1_ref[...] + c1_ref[...]                                # folded bias+BN
        return z * (jnp.clip(z + 3.0, 0.0, 6.0) * (1.0 / 6.0))          # h_swish

    y_h = bottleneck(x_h)                                                # (mip, H)
    y_w = bottleneck(x_w)                                                # (mip, W)

    a_h = jax.nn.sigmoid(
        jnp.dot(wh_ref[...], y_h, precision=_HI,
                preferred_element_type=jnp.float32) + bh_ref[...])       # (C, H)
    a_w = jax.nn.sigmoid(
        jnp.dot(ww_ref[...], y_w, precision=_HI,
                preferred_element_type=jnp.float32) + bw_ref[...])       # (C, W)

    # Broadcast the attention maps back to the flat (C, N) layout with 0/1
    # selector matmuls (again pure MXU — no lane gather / repeat / reshape):
    #   bhn[h, n] = (n//W == h) ;  bwn[w, n] = (n%W == w)
    a_hn = jnp.dot(a_h, bhn_ref[...], precision=_HI,
                   preferred_element_type=jnp.float32)                   # (C, N)
    a_wn = jnp.dot(a_w, bwn_ref[...], precision=_HI,
                   preferred_element_type=jnp.float32)                   # (C, N)

    o_ref[...] = (x * a_hn * a_wn).astype(o_ref.dtype)


def coord_att(x, w1, b1, bn_gamma, bn_beta, bn_mean, bn_var, wh, bh, ww, bw):
    """CoordAtt forward (eval mode).

    x: (B, C, H, W)
    w1: (mip, C)  conv1.weight[:, :, 0, 0]     b1: (mip,)
    bn_*: (mip,)  BatchNorm2d params / running stats
    wh, ww: (C, mip)  conv_h/conv_w weights    bh, bw: (C,)
    returns (B, C, H, W)
    """
    B, C, H, W = x.shape
    mip = w1.shape[0]
    oup = wh.shape[0]
    assert oup == C, "residual multiply requires oup == inp"
    N = H * W

    f32 = jnp.float32
    # Fold conv1 bias + eval-mode BatchNorm into a per-channel scale/shift.
    s1v = bn_gamma.astype(f32) / jnp.sqrt(bn_var.astype(f32) + BN_EPS)   # (mip,)
    c1v = (b1.astype(f32) - bn_mean.astype(f32)) * s1v + bn_beta.astype(f32)
    s1 = s1v.reshape(mip, 1)
    c1 = c1v.reshape(mip, 1)

    # Constant 0/1 selector matrices (built once here, DMA'd once by the pipeline).
    n_idx = jnp.arange(N)
    h_of_n = n_idx // W
    w_of_n = n_idx % W
    pnh = (h_of_n[:, None] == jnp.arange(H)[None, :]).astype(f32) / W    # (N, H)
    pnw = (w_of_n[:, None] == jnp.arange(W)[None, :]).astype(f32) / H    # (N, W)
    bhn = (jnp.arange(H)[:, None] == h_of_n[None, :]).astype(f32)        # (H, N)
    bwn = (jnp.arange(W)[:, None] == w_of_n[None, :]).astype(f32)        # (W, N)

    x2 = x.reshape(B, C, N)          # free row-major reshape -> lane-dense input
    bh2 = bh.reshape(C, 1).astype(f32)
    bw2 = bw.reshape(C, 1).astype(f32)
    w1f = w1.astype(f32)
    whf = wh.astype(f32)
    wwf = ww.astype(f32)

    def full_spec(a):
        # Full-array block, constant index -> DMA'd once, resident in VMEM.
        return pl.BlockSpec(a.shape, lambda b: (0,) * a.ndim)

    x_spec = pl.BlockSpec((pl.Squeezed(), C, N), lambda b: (b, 0, 0))
    o_spec = pl.BlockSpec((pl.Squeezed(), C, N), lambda b: (b, 0, 0))

    out = pl.pallas_call(
        _coordatt_kernel,
        out_shape=jax.ShapeDtypeStruct((B, C, N), x.dtype),
        grid_spec=pltpu.PrefetchScalarGridSpec(
            num_scalar_prefetch=0,
            grid=(B,),
            in_specs=[x_spec,
                      full_spec(pnh), full_spec(pnw),
                      full_spec(bhn), full_spec(bwn),
                      full_spec(w1f), full_spec(s1), full_spec(c1),
                      full_spec(whf), full_spec(bh2),
                      full_spec(wwf), full_spec(bw2)],
            out_specs=o_spec,
        ),
        compiler_params=pltpu.CompilerParams(
            dimension_semantics=("parallel",)),
    )(x2, pnh, pnw, bhn, bwn, w1f, s1, c1, whf, bh2, wwf, bw2)

    return out.reshape(B, C, H, W)   # free reshape back to NCHW


def coord_att_ref(x, w1, b1, bn_gamma, bn_beta, bn_mean, bn_var, wh, bh, ww, bw):
    """Pure-JAX reference matching the PyTorch module in eval mode."""
    B, C, H, W = x.shape
    x_h = jnp.mean(x, axis=3, keepdims=True)                               # (B,C,H,1)
    x_w = jnp.transpose(jnp.mean(x, axis=2, keepdims=True), (0, 1, 3, 2))  # (B,C,W,1)
    y = jnp.concatenate([x_h, x_w], axis=2)                                # (B,C,H+W,1)
    y = jnp.einsum('mc,bcpq->bmpq', w1, y) + b1[None, :, None, None]
    y = (y - bn_mean[None, :, None, None]) * jax.lax.rsqrt(
        bn_var[None, :, None, None] + BN_EPS)
    y = y * bn_gamma[None, :, None, None] + bn_beta[None, :, None, None]
    y = y * jnp.clip(y + 3.0, 0.0, 6.0) / 6.0                              # h_swish
    y_h = y[:, :, :H, :]                                                   # (B,mip,H,1)
    y_w = jnp.transpose(y[:, :, H:, :], (0, 1, 3, 2))                      # (B,mip,1,W)
    a_h = jax.nn.sigmoid(jnp.einsum('cm,bmpq->bcpq', wh, y_h)
                         + bh[None, :, None, None])                        # (B,C,H,1)
    a_w = jax.nn.sigmoid(jnp.einsum('cm,bmpq->bcpq', ww, y_w)
                         + bw[None, :, None, None])                        # (B,C,1,W)
    return x * a_w * a_h


if __name__ == "__main__":
    # Shapes consistent with the module: CoordAtt(inp=32, oup=32, reduction=32)
    # -> mip = max(8, 32 // 32) = 8; spatial 16x16; batch 2.
    B, C, H, W = 2, 32, 16, 16
    reduction = 32
    mip = max(8, C // reduction)
    oup = C

    key = jax.random.PRNGKey(0)
    ks = jax.random.split(key, 11)
    x = jax.random.normal(ks[0], (B, C, H, W), dtype=jnp.float32)
    w1 = 0.3 * jax.random.normal(ks[1], (mip, C), dtype=jnp.float32)     # conv1 1x1
    b1 = 0.1 * jax.random.normal(ks[2], (mip,), dtype=jnp.float32)
    bn_gamma = 1.0 + 0.1 * jax.random.normal(ks[3], (mip,), dtype=jnp.float32)
    bn_beta = 0.1 * jax.random.normal(ks[4], (mip,), dtype=jnp.float32)
    bn_mean = 0.1 * jax.random.normal(ks[5], (mip,), dtype=jnp.float32)
    bn_var = jnp.abs(1.0 + 0.1 * jax.random.normal(ks[6], (mip,), dtype=jnp.float32))
    wh = 0.3 * jax.random.normal(ks[7], (oup, mip), dtype=jnp.float32)   # conv_h 1x1
    bh = 0.1 * jax.random.normal(ks[8], (oup,), dtype=jnp.float32)
    ww = 0.3 * jax.random.normal(ks[9], (oup, mip), dtype=jnp.float32)   # conv_w 1x1
    bw = 0.1 * jax.random.normal(ks[10], (oup,), dtype=jnp.float32)

    out = jax.block_until_ready(
        coord_att(x, w1, b1, bn_gamma, bn_beta, bn_mean, bn_var, wh, bh, ww, bw))
    ref = coord_att_ref(x, w1, b1, bn_gamma, bn_beta, bn_mean, bn_var, wh, bh, ww, bw)

    assert out.shape == (B, C, H, W)
    assert jnp.allclose(out, ref, atol=1e-4, rtol=1e-4)
    print("KERNEL_OK")
</pallas_src>

<mosaic_0001>
module attributes {stable_mosaic.version = 11 : i64} {
  func.func @_coordatt_kernel(%arg0: i32, %arg1: memref<1x32x256xf32, #tpu.memory_space<vmem>>, %arg2: memref<256x16xf32, #tpu.memory_space<vmem>>, %arg3: memref<256x16xf32, #tpu.memory_space<vmem>>, %arg4: memref<16x256xf32, #tpu.memory_space<vmem>>, %arg5: memref<16x256xf32, #tpu.memory_space<vmem>>, %arg6: memref<8x32xf32, #tpu.memory_space<vmem>>, %arg7: memref<8x1xf32, #tpu.memory_space<vmem>>, %arg8: memref<8x1xf32, #tpu.memory_space<vmem>>, %arg9: memref<32x8xf32, #tpu.memory_space<vmem>>, %arg10: memref<32x1xf32, #tpu.memory_space<vmem>>, %arg11: memref<32x8xf32, #tpu.memory_space<vmem>>, %arg12: memref<32x1xf32, #tpu.memory_space<vmem>>, %arg13: memref<1x32x256xf32, #tpu.memory_space<vmem>>) attributes {dimension_semantics = [#tpu.dimension_semantics<parallel>], iteration_bounds = array<i64: 2>, scalar_prefetch = 0 : i64, scratch_operands = 0 : i64, tpu.core_type = #tpu.core_type<tc>, window_params = [{transform_indices = @transform_0, window_bounds = array<i64: 1, 32, 256>}, {pipeline_mode = #tpu.pipeline_mode<synchronous>, transform_indices = @transform_1, window_bounds = array<i64: 256, 16>}, {pipeline_mode = #tpu.pipeline_mode<synchronous>, transform_indices = @transform_2, window_bounds = array<i64: 256, 16>}, {pipeline_mode = #tpu.pipeline_mode<synchronous>, transform_indices = @transform_3, window_bounds = array<i64: 16, 256>}, {pipeline_mode = #tpu.pipeline_mode<synchronous>, transform_indices = @transform_4, window_bounds = array<i64: 16, 256>}, {pipeline_mode = #tpu.pipeline_mode<synchronous>, transform_indices = @transform_5, window_bounds = array<i64: 8, 32>}, {pipeline_mode = #tpu.pipeline_mode<synchronous>, transform_indices = @transform_6, window_bounds = array<i64: 8, 1>}, {pipeline_mode = #tpu.pipeline_mode<synchronous>, transform_indices = @transform_7, window_bounds = array<i64: 8, 1>}, {pipeline_mode = #tpu.pipeline_mode<synchronous>, transform_indices = @transform_8, window_bounds = array<i64: 32, 8>}, {pipeline_mode = #tpu.pipeline_mode<synchronous>, transform_indices = @transform_9, window_bounds = array<i64: 32, 1>}, {pipeline_mode = #tpu.pipeline_mode<synchronous>, transform_indices = @transform_10, window_bounds = array<i64: 32, 8>}, {pipeline_mode = #tpu.pipeline_mode<synchronous>, transform_indices = @transform_11, window_bounds = array<i64: 32, 1>}, {transform_indices = @transform_12, window_bounds = array<i64: 1, 32, 256>}]} {
    %c0 = arith.constant 0 : index
    %c0_0 = arith.constant 0 : index
    %c0_1 = arith.constant 0 : index
    %0 = vector.load %arg1[%c0, %c0_0, %c0_1] : memref<1x32x256xf32, #tpu.memory_space<vmem>>, vector<1x32x256xf32>
    %1 = vector.shape_cast %0 : vector<1x32x256xf32> to vector<32x256xf32>
    %c0_2 = arith.constant 0 : index
    %c0_3 = arith.constant 0 : index
    %2 = vector.load %arg2[%c0_2, %c0_3] : memref<256x16xf32, #tpu.memory_space<vmem>>, vector<256x16xf32>
    %cst = arith.constant dense<0.000000e+00> : vector<32x16xf32>
    %3 = tpu.matmul %1, %2, %cst {dimension_numbers = #tpu.dot_dimension_numbers<[1], [0], [0], [1], [0, 0, 1, 1], [], []>, precision = #tpu.contract_precision<fp32>} : vector<32x256xf32>, vector<256x16xf32>, vector<32x16xf32> -> vector<32x16xf32>
    %c0_4 = arith.constant 0 : index
    %c0_5 = arith.constant 0 : index
    %4 = vector.load %arg3[%c0_4, %c0_5] : memref<256x16xf32, #tpu.memory_space<vmem>>, vector<256x16xf32>
    %cst_6 = arith.constant dense<0.000000e+00> : vector<32x16xf32>
    %5 = tpu.matmul %1, %4, %cst_6 {dimension_numbers = #tpu.dot_dimension_numbers<[1], [0], [0], [1], [0, 0, 1, 1], [], []>, precision = #tpu.contract_precision<fp32>} : vector<32x256xf32>, vector<256x16xf32>, vector<32x16xf32> -> vector<32x16xf32>
    %c0_7 = arith.constant 0 : index
    %c0_8 = arith.constant 0 : index
    %6 = vector.load %arg6[%c0_7, %c0_8] : memref<8x32xf32, #tpu.memory_space<vmem>>, vector<8x32xf32>
    %cst_9 = arith.constant dense<0.000000e+00> : vector<8x16xf32>
    %7 = tpu.matmul %6, %3, %cst_9 {dimension_numbers = #tpu.dot_dimension_numbers<[1], [0], [0], [1], [0, 0, 1, 1], [], []>, precision = #tpu.contract_precision<fp32>} : vector<8x32xf32>, vector<32x16xf32>, vector<8x16xf32> -> vector<8x16xf32>
    %c0_10 = arith.constant 0 : index
    %c0_11 = arith.constant 0 : index
    %8 = vector.load %arg7[%c0_10, %c0_11] : memref<8x1xf32, #tpu.memory_space<vmem>>, vector<8x1xf32>
    %9 = vector.broadcast %8 : vector<8x1xf32> to vector<8x16xf32>
    %10 = arith.mulf %7, %9 : vector<8x16xf32>
    %c0_12 = arith.constant 0 : index
    %c0_13 = arith.constant 0 : index
    %11 = vector.load %arg8[%c0_12, %c0_13] : memref<8x1xf32, #tpu.memory_space<vmem>>, vector<8x1xf32>
    %12 = vector.broadcast %11 : vector<8x1xf32> to vector<8x16xf32>
    %13 = arith.addf %10, %12 : vector<8x16xf32>
    %cst_14 = arith.constant 3.000000e+00 : f32
    %14 = vector.broadcast %cst_14 : f32 to vector<8x16xf32>
    %15 = arith.addf %13, %14 : vector<8x16xf32>
    %cst_15 = arith.constant 0.000000e+00 : f32
    %cst_16 = arith.constant 6.000000e+00 : f32
    %16 = vector.broadcast %cst_15 : f32 to vector<8x16xf32>
    %17 = arith.maximumf %16, %15 : vector<8x16xf32>
    %18 = vector.broadcast %cst_16 : f32 to vector<8x16xf32>
    %19 = arith.minimumf %18, %17 : vector<8x16xf32>
    %cst_17 = arith.constant 0.166666672 : f32
    %20 = vector.broadcast %cst_17 : f32 to vector<8x16xf32>
    %21 = arith.mulf %19, %20 : vector<8x16xf32>
    %22 = arith.mulf %13, %21 : vector<8x16xf32>
    %c0_18 = arith.constant 0 : index
    %c0_19 = arith.constant 0 : index
    %23 = vector.load %arg6[%c0_18, %c0_19] : memref<8x32xf32, #tpu.memory_space<vmem>>, vector<8x32xf32>
    %cst_20 = arith.constant dense<0.000000e+00> : vector<8x16xf32>
    %24 = tpu.matmul %23, %5, %cst_20 {dimension_numbers = #tpu.dot_dimension_numbers<[1], [0], [0], [1], [0, 0, 1, 1], [], []>, precision = #tpu.contract_precision<fp32>} : vector<8x32xf32>, vector<32x16xf32>, vector<8x16xf32> -> vector<8x16xf32>
    %c0_21 = arith.constant 0 : index
    %c0_22 = arith.constant 0 : index
    %25 = vector.load %arg7[%c0_21, %c0_22] : memref<8x1xf32, #tpu.memory_space<vmem>>, vector<8x1xf32>
    %26 = vector.broadcast %25 : vector<8x1xf32> to vector<8x16xf32>
    %27 = arith.mulf %24, %26 : vector<8x16xf32>
    %c0_23 = arith.constant 0 : index
    %c0_24 = arith.constant 0 : index
    %28 = vector.load %arg8[%c0_23, %c0_24] : memref<8x1xf32, #tpu.memory_space<vmem>>, vector<8x1xf32>
    %29 = vector.broadcast %28 : vector<8x1xf32> to vector<8x16xf32>
    %30 = arith.addf %27, %29 : vector<8x16xf32>
    %cst_25 = arith.constant 3.000000e+00 : f32
    %31 = vector.broadcast %cst_25 : f32 to vector<8x16xf32>
    %32 = arith.addf %30, %31 : vector<8x16xf32>
    %cst_26 = arith.constant 0.000000e+00 : f32
    %cst_27 = arith.constant 6.000000e+00 : f32
    %33 = vector.broadcast %cst_26 : f32 to vector<8x16xf32>
    %34 = arith.maximumf %33, %32 : vector<8x16xf32>
    %35 = vector.broadcast %cst_27 : f32 to vector<8x16xf32>
    %36 = arith.minimumf %35, %34 : vector<8x16xf32>
    %cst_28 = arith.constant 0.166666672 : f32
    %37 = vector.broadcast %cst_28 : f32 to vector<8x16xf32>
    %38 = arith.mulf %36, %37 : vector<8x16xf32>
    %39 = arith.mulf %30, %38 : vector<8x16xf32>
    %c0_29 = arith.constant 0 : index
    %c0_30 = arith.constant 0 : index
    %40 = vector.load %arg9[%c0_29, %c0_30] : memref<32x8xf32, #tpu.memory_space<vmem>>, vector<32x8xf32>
    %cst_31 = arith.constant dense<0.000000e+00> : vector<32x16xf32>
    %41 = tpu.matmul %40, %22, %cst_31 {dimension_numbers = #tpu.dot_dimension_numbers<[1], [0], [0], [1], [0, 0, 1, 1], [], []>, precision = #tpu.contract_precision<fp32>} : vector<32x8xf32>, vector<8x16xf32>, vector<32x16xf32> -> vector<32x16xf32>
    %c0_32 = arith.constant 0 : index
    %c0_33 = arith.constant 0 : index
    %42 = vector.load %arg10[%c0_32, %c0_33] : memref<32x1xf32, #tpu.memory_space<vmem>>, vector<32x1xf32>
    %43 = vector.broadcast %42 : vector<32x1xf32> to vector<32x16xf32>
    %44 = arith.addf %41, %43 : vector<32x16xf32>
    %45 = arith.negf %44 : vector<32x16xf32>
    %46 = math.exp %45 : vector<32x16xf32>
    %cst_34 = arith.constant 1.000000e+00 : f32
    %47 = vector.broadcast %cst_34 : f32 to vector<32x16xf32>
    %48 = arith.addf %47, %46 : vector<32x16xf32>
    %49 = arith.divf %47, %48 : vector<32x16xf32>
    %c0_35 = arith.constant 0 : index
    %c0_36 = arith.constant 0 : index
    %50 = vector.load %arg11[%c0_35, %c0_36] : memref<32x8xf32, #tpu.memory_space<vmem>>, vector<32x8xf32>
    %cst_37 = arith.constant dense<0.000000e+00> : vector<32x16xf32>
    %51 = tpu.matmul %50, %39, %cst_37 {dimension_numbers = #tpu.dot_dimension_numbers<[1], [0], [0], [1], [0, 0, 1, 1], [], []>, precision = #tpu.contract_precision<fp32>} : vector<32x8xf32>, vector<8x16xf32>, vector<32x16xf32> -> vector<32x16xf32>
    %c0_38 = arith.constant 0 : index
    %c0_39 = arith.constant 0 : index
    %52 = vector.load %arg12[%c0_38, %c0_39] : memref<32x1xf32, #tpu.memory_space<vmem>>, vector<32x1xf32>
    %53 = vector.broadcast %52 : vector<32x1xf32> to vector<32x16xf32>
    %54 = arith.addf %51, %53 : vector<32x16xf32>
    %55 = arith.negf %54 : vector<32x16xf32>
    %56 = math.exp %55 : vector<32x16xf32>
    %cst_40 = arith.constant 1.000000e+00 : f32
    %57 = vector.broadcast %cst_40 : f32 to vector<32x16xf32>
    %58 = arith.addf %57, %56 : vector<32x16xf32>
    %59 = arith.divf %57, %58 : vector<32x16xf32>
    %c0_41 = arith.constant 0 : index
    %c0_42 = arith.constant 0 : index
    %60 = vector.load %arg4[%c0_41, %c0_42] : memref<16x256xf32, #tpu.memory_space<vmem>>, vector<16x256xf32>
    %cst_43 = arith.constant dense<0.000000e+00> : vector<32x256xf32>
    %61 = tpu.matmul %49, %60, %cst_43 {dimension_numbers = #tpu.dot_dimension_numbers<[1], [0], [0], [1], [0, 0, 1, 1], [], []>, precision = #tpu.contract_precision<fp32>} : vector<32x16xf32>, vector<16x256xf32>, vector<32x256xf32> -> vector<32x256xf32>
    %c0_44 = arith.constant 0 : index
    %c0_45 = arith.constant 0 : index
    %62 = vector.load %arg5[%c0_44, %c0_45] : memref<16x256xf32, #tpu.memory_space<vmem>>, vector<16x256xf32>
    %cst_46 = arith.constant dense<0.000000e+00> : vector<32x256xf32>
    %63 = tpu.matmul %59, %62, %cst_46 {dimension_numbers = #tpu.dot_dimension_numbers<[1], [0], [0], [1], [0, 0, 1, 1], [], []>, precision = #tpu.contract_precision<fp32>} : vector<32x16xf32>, vector<16x256xf32>, vector<32x256xf32> -> vector<32x256xf32>
    %64 = arith.mulf %1, %61 : vector<32x256xf32>
    %65 = arith.mulf %64, %63 : vector<32x256xf32>
    %c0_47 = arith.constant 0 : index
    %c0_48 = arith.constant 0 : index
    %c0_49 = arith.constant 0 : index
    %66 = vector.load %arg13[%c0_47, %c0_48, %c0_49] : memref<1x32x256xf32, #tpu.memory_space<vmem>>, vector<1x32x256xf32>
    %67 = vector.shape_cast %66 : vector<1x32x256xf32> to vector<32x256xf32>
    %68 = vector.shape_cast %65 : vector<32x256xf32> to vector<1x32x256xf32>
    tpu.vector_store %arg13[%c0_47, %c0_48, %c0_49], %68 {strides = array<i32>} : memref<1x32x256xf32, #tpu.memory_space<vmem>>, vector<1x32x256xf32>,
    return
  }
  func.func @transform_0(%arg0: i32) -> (i32, i32, i32) {
    %c0_i32 = arith.constant 0 : i32
    %c0_i32_0 = arith.constant 0 : i32
    %c0_i32_1 = arith.constant 0 : i32
    return %arg0, %c0_i32, %c0_i32_0 : i32, i32, i32
  }
  func.func @transform_1(%arg0: i32) -> (i32, i32) {
    %c0_i32 = arith.constant 0 : i32
    %c0_i32_0 = arith.constant 0 : i32
    %c0_i32_1 = arith.constant 0 : i32
    return %c0_i32, %c0_i32_0 : i32, i32
  }
  func.func @transform_2(%arg0: i32) -> (i32, i32) {
    %c0_i32 = arith.constant 0 : i32
    %c0_i32_0 = arith.constant 0 : i32
    %c0_i32_1 = arith.constant 0 : i32
    return %c0_i32, %c0_i32_0 : i32, i32
  }
  func.func @transform_3(%arg0: i32) -> (i32, i32) {
    %c0_i32 = arith.constant 0 : i32
    %c0_i32_0 = arith.constant 0 : i32
    %c0_i32_1 = arith.constant 0 : i32
    return %c0_i32, %c0_i32_0 : i32, i32
  }
  func.func @transform_4(%arg0: i32) -> (i32, i32) {
    %c0_i32 = arith.constant 0 : i32
    %c0_i32_0 = arith.constant 0 : i32
    %c0_i32_1 = arith.constant 0 : i32
    return %c0_i32, %c0_i32_0 : i32, i32
  }
  func.func @transform_5(%arg0: i32) -> (i32, i32) {
    %c0_i32 = arith.constant 0 : i32
    %c0_i32_0 = arith.constant 0 : i32
    %c0_i32_1 = arith.constant 0 : i32
    return %c0_i32, %c0_i32_0 : i32, i32
  }
  func.func @transform_6(%arg0: i32) -> (i32, i32) {
    %c0_i32 = arith.constant 0 : i32
    %c0_i32_0 = arith.constant 0 : i32
    %c0_i32_1 = arith.constant 0 : i32
    return %c0_i32, %c0_i32_0 : i32, i32
  }
  func.func @transform_7(%arg0: i32) -> (i32, i32) {
    %c0_i32 = arith.constant 0 : i32
    %c0_i32_0 = arith.constant 0 : i32
    %c0_i32_1 = arith.constant 0 : i32
    return %c0_i32, %c0_i32_0 : i32, i32
  }
  func.func @transform_8(%arg0: i32) -> (i32, i32) {
    %c0_i32 = arith.constant 0 : i32
    %c0_i32_0 = arith.constant 0 : i32
    %c0_i32_1 = arith.constant 0 : i32
    return %c0_i32, %c0_i32_0 : i32, i32
  }
  func.func @transform_9(%arg0: i32) -> (i32, i32) {
    %c0_i32 = arith.constant 0 : i32
    %c0_i32_0 = arith.constant 0 : i32
    %c0_i32_1 = arith.constant 0 : i32
    return %c0_i32, %c0_i32_0 : i32, i32
  }
  func.func @transform_10(%arg0: i32) -> (i32, i32) {
    %c0_i32 = arith.constant 0 : i32
    %c0_i32_0 = arith.constant 0 : i32
    %c0_i32_1 = arith.constant 0 : i32
    return %c0_i32, %c0_i32_0 : i32, i32
  }
  func.func @transform_11(%arg0: i32) -> (i32, i32) {
    %c0_i32 = arith.constant 0 : i32
    %c0_i32_0 = arith.constant 0 : i32
    %c0_i32_1 = arith.constant 0 : i32
    return %c0_i32, %c0_i32_0 : i32, i32
  }
  func.func @transform_12(%arg0: i32) -> (i32, i32, i32) {
    %c0_i32 = arith.constant 0 : i32
    %c0_i32_0 = arith.constant 0 : i32
    %c0_i32_1 = arith.constant 0 : i32
    return %arg0, %c0_i32, %c0_i32_0 : i32, i32, i32
  }
}

</mosaic_0001>

<llo_original>
// kernel: tpu_custom_call.1
$region0: #{tpu_custom_call.1}
  #allocation0 [shape = 'u32[]', space=smem, size = 0x4, offset = 0x4, fixed_abs, tag = 'smem constant byte address 0x4 - core index']
  #allocation1 [shape = 'u32[72,128]{1,0:T(1,128)}', space=vmem, size = 0x9000, scoped, tag = 'internal scratch']
  %s0 = inlined_call_operand.vmem [shape: f32[2,32,256], index: 0, kind: input, shape index: {}]
  %s1 = inlined_call_operand.vmem [shape: f32[256,16], index: 1, kind: input, shape index: {}]
  %s2 = inlined_call_operand.vmem [shape: f32[256,16], index: 2, kind: input, shape index: {}]
  %s3 = inlined_call_operand.vmem [shape: f32[16,256], index: 3, kind: input, shape index: {}]
  %s4 = inlined_call_operand.vmem [shape: f32[16,256], index: 4, kind: input, shape index: {}]
  %s5 = inlined_call_operand.vmem [shape: f32[8,32], index: 5, kind: input, shape index: {}]
  %s6 = inlined_call_operand.vmem [shape: f32[8,1], index: 6, kind: input, shape index: {}]
  %s7 = inlined_call_operand.vmem [shape: f32[8,1], index: 7, kind: input, shape index: {}]
  %s8 = inlined_call_operand.vmem [shape: f32[32,8], index: 8, kind: input, shape index: {}]
  %s9 = inlined_call_operand.vmem [shape: f32[32,1], index: 9, kind: input, shape index: {}]
  %s10 = inlined_call_operand.vmem [shape: f32[32,8], index: 10, kind: input, shape index: {}]
  %s11 = inlined_call_operand.vmem [shape: f32[32,1], index: 11, kind: input, shape index: {}]
  %s12 = inlined_call_operand.hbm [shape: f32[2,32,256], index: 12, kind: output, shape index: {}]
  %s13 = sld [smem:[#allocation0]]
  $region81: #{tpu_custom_call.1} parent=0
    _
  %s15 = ssub.s32 1, %s13
  %s16 = scalar_select 0, %s15, %s13
  $region1: #{tpu_custom_call.1} parent=0
    #allocation2 [shape = 'u8[65536]{0}', space=vmem, size = 0x10000, scoped, tag = 'output window, operand 0']
    #allocation3 [shape = 's32[2]{0}', space=sflag, size = 0x8, scoped, tag = 'scoped memory for tpu_custom_call.1']
    %17 = vsyncpa [#allocation3], 0
    %s18 = scalar_lea.sflag [#allocation3], 1
    %19 = vsyncpa %s18, 0
    loop: start=0, step=1, limit=4
    $region2: #{tpu_custom_call.1} parent=1 // loop_pre_header
      _
    $region3: #{tpu_custom_call.1} parent=1 // loop_header
      %s21 = sphi 0, %s25
      %p22 = scmp.ge.s32.totalorder %s21, 4
      %s31 = sphi 0, %s33
      %s34 = sphi 0, %s31
      %s35 = sphi 0, %s34
      %s51 = sphi 0, %s35
      %s55 = sphi 0, %s55
      %s57 = sphi 0, %s55
      %s58 = sphi 0, %s57
      %s72 = sphi 0, %s58
      %s76 = sphi 0, %s76
      %s78 = sphi 0, %s76
      %s79 = sphi 0, %s78
      %s93 = sphi 0, %s79
      %s97 = sphi 0, %s97
      %s99 = sphi 0, %s97
      %s100 = sphi 0, %s99
      %s114 = sphi 0, %s100
      %s118 = sphi 0, %s118
      %s120 = sphi 0, %s118
      %s121 = sphi 0, %s120
      %s135 = sphi 0, %s121
      %s139 = sphi 0, %s139
      %s141 = sphi 0, %s139
      %s142 = sphi 0, %s141
      %s156 = sphi 0, %s142
      %s160 = sphi 0, %s160
      %s162 = sphi 0, %s160
      %s163 = sphi 0, %s162
      %s177 = sphi 0, %s163
      %s181 = sphi 0, %s181
      %s183 = sphi 0, %s181
      %s184 = sphi 0, %s183
      %s198 = sphi 0, %s184
      %s202 = sphi 0, %s202
      %s204 = sphi 0, %s202
      %s205 = sphi 0, %s204
      %s219 = sphi 0, %s205
      %s223 = sphi 0, %s223
      %s225 = sphi 0, %s223
      %s226 = sphi 0, %s225
      %s240 = sphi 0, %s226
      %s244 = sphi 0, %s244
      %s246 = sphi 0, %s244
      %s247 = sphi 0, %s246
      %s261 = sphi 0, %s247
      %s265 = sphi 0, %s265
      %s267 = sphi 0, %s265
      %s268 = sphi 0, %s267
      %s282 = sphi 0, %s268
      %s288 = sphi 0, %s290
      %s291 = sphi 0, %s288
      %s292 = sphi 0, %s291
      %s308 = sphi 0, %s292
    $region4: #{tpu_custom_call.1} parent=1 // loop_header_branch
      %24 = sbr.rel (%p22) target = $region8
    $region5: #{tpu_custom_call.1} parent=1 // loop_body
      %s26 = ssub.s32 %s21, 1
      %s27 = ssub.s32 %s21, 2
      %s28 = sadd.s32 %s21, 1
      %s29 = ssub.s32 %s21, %s28
      %p30 = scmp.eq.s32.totalorder %s29, 0
      %s32 = sadd.s32 %s31, 1
      %s33 = scalar_select %p30, %s31, %s32
      %p36 = pneg %p30
      %p37 = scmp.eq.s32.totalorder %s21, 1
      %p38 = por %p36, %p37
      %p39 = scmp.ne.s32.totalorder %s31, %s34
      %p40 = scmp.eq.s32.totalorder %s21, 0
      %p41 = por %p39, %p40
      %p42 = scmp.ne.s32.totalorder %s31, %s34
      %p43 = scmp.eq.s32.totalorder %s26, 1
      %p44 = por %p42, %p43
      %p45 = scmp.ne.s32.totalorder %s34, %s35
      %p46 = scmp.eq.s32.totalorder %s26, 0
      %p47 = por %p45, %p46
      %p48 = scmp.ne.s32.totalorder %s34, %s35
      %p49 = scmp.eq.s32.totalorder %s27, 1
      %p50 = por %p48, %p49
      %p52 = scmp.ne.s32.totalorder %s35, %s51
      %p53 = scmp.eq.s32.totalorder %s27, 0
      %p54 = por %p52, %p53
      %s56 = sadd.s32 %s55, 1
      %p59 = scmp.eq.s32.totalorder %s21, 1
      %p60 = scmp.ne.s32.totalorder %s55, %s57
      %p61 = scmp.eq.s32.totalorder %s21, 0
      %p62 = por %p60, %p61
      %p63 = scmp.ne.s32.totalorder %s55, %s57
      %p64 = scmp.eq.s32.totalorder %s26, 1
      %p65 = por %p63, %p64
      %p66 = scmp.ne.s32.totalorder %s57, %s58
      %p67 = scmp.eq.s32.totalorder %s26, 0
      %p68 = por %p66, %p67
      %p69 = scmp.ne.s32.totalorder %s57, %s58
      %p70 = scmp.eq.s32.totalorder %s27, 1
      %p71 = por %p69, %p70
      %p73 = scmp.ne.s32.totalorder %s58, %s72
      %p74 = scmp.eq.s32.totalorder %s27, 0
      %p75 = por %p73, %p74
      %s77 = sadd.s32 %s76, 1
      %p80 = scmp.eq.s32.totalorder %s21, 1
      %p81 = scmp.ne.s32.totalorder %s76, %s78
      %p82 = scmp.eq.s32.totalorder %s21, 0
      %p83 = por %p81, %p82
      %p84 = scmp.ne.s32.totalorder %s76, %s78
      %p85 = scmp.eq.s32.totalorder %s26, 1
      %p86 = por %p84, %p85
      %p87 = scmp.ne.s32.totalorder %s78, %s79
      %p88 = scmp.eq.s32.totalorder %s26, 0
      %p89 = por %p87, %p88
      %p90 = scmp.ne.s32.totalorder %s78, %s79
      %p91 = scmp.eq.s32.totalorder %s27, 1
      %p92 = por %p90, %p91
      %p94 = scmp.ne.s32.totalorder %s79, %s93
      %p95 = scmp.eq.s32.totalorder %s27, 0
      %p96 = por %p94, %p95
      %s98 = sadd.s32 %s97, 1
      %p101 = scmp.eq.s32.totalorder %s21, 1
      %p102 = scmp.ne.s32.totalorder %s97, %s99
      %p103 = scmp.eq.s32.totalorder %s21, 0
      %p104 = por %p102, %p103
      %p105 = scmp.ne.s32.totalorder %s97, %s99
      %p106 = scmp.eq.s32.totalorder %s26, 1
      %p107 = por %p105, %p106
      %p108 = scmp.ne.s32.totalorder %s99, %s100
      %p109 = scmp.eq.s32.totalorder %s26, 0
      %p110 = por %p108, %p109
      %p111 = scmp.ne.s32.totalorder %s99, %s100
      %p112 = scmp.eq.s32.totalorder %s27, 1
      %p113 = por %p111, %p112
      %p115 = scmp.ne.s32.totalorder %s100, %s114
      %p116 = scmp.eq.s32.totalorder %s27, 0
      %p117 = por %p115, %p116
      %s119 = sadd.s32 %s118, 1
      %p122 = scmp.eq.s32.totalorder %s21, 1
      %p123 = scmp.ne.s32.totalorder %s118, %s120
      %p124 = scmp.eq.s32.totalorder %s21, 0
      %p125 = por %p123, %p124
      %p126 = scmp.ne.s32.totalorder %s118, %s120
      %p127 = scmp.eq.s32.totalorder %s26, 1
      %p128 = por %p126, %p127
      %p129 = scmp.ne.s32.totalorder %s120, %s121
      %p130 = scmp.eq.s32.totalorder %s26, 0
      %p131 = por %p129, %p130
      %p132 = scmp.ne.s32.totalorder %s120, %s121
      %p133 = scmp.eq.s32.totalorder %s27, 1
      %p134 = por %p132, %p133
      %p136 = scmp.ne.s32.totalorder %s121, %s135
      %p137 = scmp.eq.s32.totalorder %s27, 0
      %p138 = por %p136, %p137
      %s140 = sadd.s32 %s139, 1
      %p143 = scmp.eq.s32.totalorder %s21, 1
      %p144 = scmp.ne.s32.totalorder %s139, %s141
      %p145 = scmp.eq.s32.totalorder %s21, 0
      %p146 = por %p144, %p145
      %p147 = scmp.ne.s32.totalorder %s139, %s141
      %p148 = scmp.eq.s32.totalorder %s26, 1
      %p149 = por %p147, %p148
      %p150 = scmp.ne.s32.totalorder %s141, %s142
      %p151 = scmp.eq.s32.totalorder %s26, 0
      %p152 = por %p150, %p151
      %p153 = scmp.ne.s32.totalorder %s141, %s142
      %p154 = scmp.eq.s32.totalorder %s27, 1
      %p155 = por %p153, %p154
      %p157 = scmp.ne.s32.totalorder %s142, %s156
      %p158 = scmp.eq.s32.totalorder %s27, 0
      %p159 = por %p157, %p158
      %s161 = sadd.s32 %s160, 1
      %p164 = scmp.eq.s32.totalorder %s21, 1
      %p165 = scmp.ne.s32.totalorder %s160, %s162
      %p166 = scmp.eq.s32.totalorder %s21, 0
      %p167 = por %p165, %p166
      %p168 = scmp.ne.s32.totalorder %s160, %s162
      %p169 = scmp.eq.s32.totalorder %s26, 1
      %p170 = por %p168, %p169
      %p171 = scmp.ne.s32.totalorder %s162, %s163
      %p172 = scmp.eq.s32.totalorder %s26, 0
      %p173 = por %p171, %p172
      %p174 = scmp.ne.s32.totalorder %s162, %s163
      %p175 = scmp.eq.s32.totalorder %s27, 1
      %p176 = por %p174, %p175
      %p178 = scmp.ne.s32.totalorder %s163, %s177
      %p179 = scmp.eq.s32.totalorder %s27, 0
      %p180 = por %p178, %p179
      %s182 = sadd.s32 %s181, 1
      %p185 = scmp.eq.s32.totalorder %s21, 1
      %p186 = scmp.ne.s32.totalorder %s181, %s183
      %p187 = scmp.eq.s32.totalorder %s21, 0
      %p188 = por %p186, %p187
      %p189 = scmp.ne.s32.totalorder %s181, %s183
      %p190 = scmp.eq.s32.totalorder %s26, 1
      %p191 = por %p189, %p190
      %p192 = scmp.ne.s32.totalorder %s183, %s184
      %p193 = scmp.eq.s32.totalorder %s26, 0
      %p194 = por %p192, %p193
      %p195 = scmp.ne.s32.totalorder %s183, %s184
      %p196 = scmp.eq.s32.totalorder %s27, 1
      %p197 = por %p195, %p196
      %p199 = scmp.ne.s32.totalorder %s184, %s198
      %p200 = scmp.eq.s32.totalorder %s27, 0
      %p201 = por %p199, %p200
      %s203 = sadd.s32 %s202, 1
      %p206 = scmp.eq.s32.totalorder %s21, 1
      %p207 = scmp.ne.s32.totalorder %s202, %s204
      %p208 = scmp.eq.s32.totalorder %s21, 0
      %p209 = por %p207, %p208
      %p210 = scmp.ne.s32.totalorder %s202, %s204
      %p211 = scmp.eq.s32.totalorder %s26, 1
      %p212 = por %p210, %p211
      %p213 = scmp.ne.s32.totalorder %s204, %s205
      %p214 = scmp.eq.s32.totalorder %s26, 0
      %p215 = por %p213, %p214
      %p216 = scmp.ne.s32.totalorder %s204, %s205
      %p217 = scmp.eq.s32.totalorder %s27, 1
      %p218 = por %p216, %p217
      %p220 = scmp.ne.s32.totalorder %s205, %s219
      %p221 = scmp.eq.s32.totalorder %s27, 0
      %p222 = por %p220, %p221
      %s224 = sadd.s32 %s223, 1
      %p227 = scmp.eq.s32.totalorder %s21, 1
      %p228 = scmp.ne.s32.totalorder %s223, %s225
      %p229 = scmp.eq.s32.totalorder %s21, 0
      %p230 = por %p228, %p229
      %p231 = scmp.ne.s32.totalorder %s223, %s225
      %p232 = scmp.eq.s32.totalorder %s26, 1
      %p233 = por %p231, %p232
      %p234 = scmp.ne.s32.totalorder %s225, %s226
      %p235 = scmp.eq.s32.totalorder %s26, 0
      %p236 = por %p234, %p235
      %p237 = scmp.ne.s32.totalorder %s225, %s226
      %p238 = scmp.eq.s32.totalorder %s27, 1
      %p239 = por %p237, %p238
      %p241 = scmp.ne.s32.totalorder %s226, %s240
      %p242 = scmp.eq.s32.totalorder %s27, 0
      %p243 = por %p241, %p242
      %s245 = sadd.s32 %s244, 1
      %p248 = scmp.eq.s32.totalorder %s21, 1
      %p249 = scmp.ne.s32.totalorder %s244, %s246
      %p250 = scmp.eq.s32.totalorder %s21, 0
      %p251 = por %p249, %p250
      %p252 = scmp.ne.s32.totalorder %s244, %s246
      %p253 = scmp.eq.s32.totalorder %s26, 1
      %p254 = por %p252, %p253
      %p255 = scmp.ne.s32.totalorder %s246, %s247
      %p256 = scmp.eq.s32.totalorder %s26, 0
      %p257 = por %p255, %p256
      %p258 = scmp.ne.s32.totalorder %s246, %s247
      %p259 = scmp.eq.s32.totalorder %s27, 1
      %p260 = por %p258, %p259
      %p262 = scmp.ne.s32.totalorder %s247, %s261
      %p263 = scmp.eq.s32.totalorder %s27, 0
      %p264 = por %p262, %p263
      %s266 = sadd.s32 %s265, 1
      %p269 = scmp.eq.s32.totalorder %s21, 1
      %p270 = scmp.ne.s32.totalorder %s265, %s267
      %p271 = scmp.eq.s32.totalorder %s21, 0
      %p272 = por %p270, %p271
      %p273 = scmp.ne.s32.totalorder %s265, %s267
      %p274 = scmp.eq.s32.totalorder %s26, 1
      %p275 = por %p273, %p274
      %p276 = scmp.ne.s32.totalorder %s267, %s268
      %p277 = scmp.eq.s32.totalorder %s26, 0
      %p278 = por %p276, %p277
      %p279 = scmp.ne.s32.totalorder %s267, %s268
      %p280 = scmp.eq.s32.totalorder %s27, 1
      %p281 = por %p279, %p280
      %p283 = scmp.ne.s32.totalorder %s268, %s282
      %p284 = scmp.eq.s32.totalorder %s27, 0
      %p285 = por %p283, %p284
      %s286 = ssub.s32 %s21, %s28
      %p287 = scmp.eq.s32.totalorder %s286, 0
      %s289 = sadd.s32 %s288, 1
      %s290 = scalar_select %p287, %s288, %s289
      %p293 = pneg %p287
      %p294 = scmp.eq.s32.totalorder %s21, 1
      %p295 = por %p293, %p294
      %p296 = scmp.ne.s32.totalorder %s288, %s291
      %p297 = scmp.eq.s32.totalorder %s21, 0
      %p298 = por %p296, %p297
      %p299 = scmp.ne.s32.totalorder %s288, %s291
      %p300 = scmp.eq.s32.totalorder %s26, 1
      %p301 = por %p299, %p300
      %p302 = scmp.ne.s32.totalorder %s291, %s292
      %p303 = scmp.eq.s32.totalorder %s26, 0
      %p304 = por %p302, %p303
      %p305 = scmp.ne.s32.totalorder %s291, %s292
      %p306 = scmp.eq.s32.totalorder %s27, 1
      %p307 = por %p305, %p306
      %p309 = scmp.ne.s32.totalorder %s292, %s308
      %p310 = scmp.eq.s32.totalorder %s27, 0
      %p311 = por %p309, %p310
      %p312 = scmp.le.s32.totalorder 1, %s21
      %p313 = scmp.lt.s32.totalorder %s21, 3
      %p314 = pnand %p312, %p313
      %p315 = pneg %p314
      // Predicated region
      $region9: #{tpu_custom_call.1} parent=5 // pred_check
        _
      $region10: #{tpu_custom_call.1} parent=5 // pred_check_branch
        %317 = sbr.rel (%p314) target = $region12
      $region11: #{tpu_custom_call.1} parent=5 // pred_region
        %s318 = ssub.s32 %s21, 1
        // Predicated region
        $region13: #{tpu_custom_call.1} parent=11 // pred_check
          %p319 = pneg %p68
        $region14: #{tpu_custom_call.1} parent=11 // pred_check_branch
          %321 = sbr.rel (%p319) target = $region16
        $region15: #{tpu_custom_call.1} parent=11 // pred_region
          _
        $region16: #{tpu_custom_call.1} parent=11 // pred_fallthru
          _
        // Predicated region
        $region17: #{tpu_custom_call.1} parent=11 // pred_check
          %p322 = pneg %p89
        $region18: #{tpu_custom_call.1} parent=11 // pred_check_branch
          %324 = sbr.rel (%p322) target = $region20
        $region19: #{tpu_custom_call.1} parent=11 // pred_region
          _
        $region20: #{tpu_custom_call.1} parent=11 // pred_fallthru
          _
        // Predicated region
        $region21: #{tpu_custom_call.1} parent=11 // pred_check
          %p325 = pneg %p110
        $region22: #{tpu_custom_call.1} parent=11 // pred_check_branch
          %327 = sbr.rel (%p325) target = $region24
        $region23: #{tpu_custom_call.1} parent=11 // pred_region
          _
        $region24: #{tpu_custom_call.1} parent=11 // pred_fallthru
          _
        // Predicated region
        $region25: #{tpu_custom_call.1} parent=11 // pred_check
          %p328 = pneg %p131
        $region26: #{tpu_custom_call.1} parent=11 // pred_check_branch
          %330 = sbr.rel (%p328) target = $region28
        $region27: #{tpu_custom_call.1} parent=11 // pred_region
          _
        $region28: #{tpu_custom_call.1} parent=11 // pred_fallthru
          _
        // Predicated region
        $region29: #{tpu_custom_call.1} parent=11 // pred_check
          %p331 = pneg %p152
        $region30: #{tpu_custom_call.1} parent=11 // pred_check_branch
          %333 = sbr.rel (%p331) target = $region32
        $region31: #{tpu_custom_call.1} parent=11 // pred_region
          _
        $region32: #{tpu_custom_call.1} parent=11 // pred_fallthru
          _
        // Predicated region
        $region33: #{tpu_custom_call.1} parent=11 // pred_check
          %p334 = pneg %p173
        $region34: #{tpu_custom_call.1} parent=11 // pred_check_branch
          %336 = sbr.rel (%p334) target = $region36
        $region35: #{tpu_custom_call.1} parent=11 // pred_region
          _
        $region36: #{tpu_custom_call.1} parent=11 // pred_fallthru
          _
        // Predicated region
        $region37: #{tpu_custom_call.1} parent=11 // pred_check
          %p337 = pneg %p194
        $region38: #{tpu_custom_call.1} parent=11 // pred_check_branch
          %339 = sbr.rel (%p337) target = $region40
        $region39: #{tpu_custom_call.1} parent=11 // pred_region
          _
        $region40: #{tpu_custom_call.1} parent=11 // pred_fallthru
          _
        // Predicated region
        $region41: #{tpu_custom_call.1} parent=11 // pred_check
          %p340 = pneg %p215
        $region42: #{tpu_custom_call.1} parent=11 // pred_check_branch
          %342 = sbr.rel (%p340) target = $region44
        $region43: #{tpu_custom_call.1} parent=11 // pred_region
          _
        $region44: #{tpu_custom_call.1} parent=11 // pred_fallthru
          _
        // Predicated region
        $region45: #{tpu_custom_call.1} parent=11 // pred_check
          %p343 = pneg %p236
        $region46: #{tpu_custom_call.1} parent=11 // pred_check_branch
          %345 = sbr.rel (%p343) target = $region48
        $region47: #{tpu_custom_call.1} parent=11 // pred_region
          _
        $region48: #{tpu_custom_call.1} parent=11 // pred_fallthru
          _
        // Predicated region
        $region49: #{tpu_custom_call.1} parent=11 // pred_check
          %p346 = pneg %p257
        $region50: #{tpu_custom_call.1} parent=11 // pred_check_branch
          %348 = sbr.rel (%p346) target = $region52
        $region51: #{tpu_custom_call.1} parent=11 // pred_region
          _
        $region52: #{tpu_custom_call.1} parent=11 // pred_fallthru
          _
        // Predicated region
        $region53: #{tpu_custom_call.1} parent=11 // pred_check
          %p349 = pneg %p278
        $region54: #{tpu_custom_call.1} parent=11 // pred_check_branch
          %351 = sbr.rel (%p349) target = $region56
        $region55: #{tpu_custom_call.1} parent=11 // pred_region
          _
        $region56: #{tpu_custom_call.1} parent=11 // pred_fallthru
          _
      $region12: #{tpu_custom_call.1} parent=5 // pred_fallthru
        _
      %p352 = scmp.lt.s32.totalorder %s21, 2
      // Predicated region
      $region57: #{tpu_custom_call.1} parent=5 // pred_check
        %p353 = pneg %p352
      $region58: #{tpu_custom_call.1} parent=5 // pred_check_branch
        %355 = sbr.rel (%p353) target = $region60
      $region59: #{tpu_custom_call.1} parent=5 // pred_region
        // Predicated region
        $region61: #{tpu_custom_call.1} parent=59 // pred_check
          %p356 = pneg %p41
        $region62: #{tpu_custom_call.1} parent=59 // pred_check_branch
          %358 = sbr.rel (%p356) target = $region64
        $region63: #{tpu_custom_call.1} parent=59 // pred_region
          %p359 = scmp.lt.s32.totalorder %s21, 1
          %s360 = scalar_select %p359, %s21, 1
          %s361 = smul.addr %s360, 8
          %s362 = smul.addr %s361, 8
          %s363 = scalar_lea.vmem %s0, %s362
        $region64: #{tpu_custom_call.1} parent=59 // pred_fallthru
          _
      $region60: #{tpu_custom_call.1} parent=5 // pred_fallthru
        _
      %p364 = scmp.le.s32.totalorder 1, %s21
      %p365 = scmp.lt.s32.totalorder %s21, 3
      %p366 = pnand %p364, %p365
      %p367 = pneg %p366
      // Predicated region
      $region65: #{tpu_custom_call.1} parent=5 // pred_check
        _
      $region66: #{tpu_custom_call.1} parent=5 // pred_check_branch
        %369 = sbr.rel (%p366) target = $region68
      $region67: #{tpu_custom_call.1} parent=5 // pred_region
        %s370 = ssub.s32 %s21, 1
        %p371 = scmp.lt.s32.totalorder %s26, 1
        %s372 = scalar_select %p371, %s26, 1
        %s373 = smul.addr %s372, 8
        %s374 = smul.addr %s373, 8
        %s375 = scalar_lea.vmem %s0, %s374
        %p376 = pneg %p47
        %p377 = pneg %p44
        %p378 = pneg %p68
        %p379 = pneg %p65
        %p380 = pneg %p89
        %p381 = pneg %p86
        %p382 = pneg %p110
        %p383 = pneg %p107
        %p384 = pneg %p131
        %p385 = pneg %p128
        %p386 = pneg %p152
        %p387 = pneg %p149
        %p388 = pneg %p173
        %p389 = pneg %p170
        %p390 = pneg %p194
        %p391 = pneg %p191
        %p392 = pneg %p215
        %p393 = pneg %p212
        %p394 = pneg %p236
        %p395 = pneg %p233
        %p396 = pneg %p257
        %p397 = pneg %p254
        %p398 = pneg %p278
        %p399 = pneg %p275
        %p400 = pneg %p304
        %p401 = pneg %p301
        %s402 = sand.u32 %s291, 1
        %s403 = scalar_lea.sflag [#allocation3], %s402
        %s404 = sand.u32 %s291, 1
        %s405 = smul.addr %s404, 64
        %s406 = scalar_lea.vmem [#allocation2], %s405
        %p407 = scmp.lt.s32.totalorder %s26, 1
        %s408 = scalar_select %p407, %s26, 1
        %s409 = smul.addr %s408, 8
        %s410 = smul.addr %s409, 8
        %s411 = scalar_lea.vmem %s0, %s410
        %v412 = vld [vmem:[%s411] sm:$0xff]
        %v413 = vld [vmem:[%s411 + $0x8] sm:$0xff]
        %v414 = vld [vmem:[%s411 + $0x10] sm:$0xff]
        %v415 = vld [vmem:[%s411 + $0x18] sm:$0xff]
        %v416 = vld [vmem:[%s411 + $0x20] sm:$0xff]
        %v417 = vld [vmem:[%s411 + $0x28] sm:$0xff]
        %v418 = vld [vmem:[%s411 + $0x30] sm:$0xff]
        %v419 = vld [vmem:[%s411 + $0x38] sm:$0xff]
        %v420 = vld [vmem:[%s1] sm:$0xff]
        %v421 = vld [vmem:[%s1 + $0x8] sm:$0xff]
        %v422 = vld [vmem:[%s1 + $0x10] sm:$0xff]
        %v423 = vld [vmem:[%s1 + $0x18] sm:$0xff]
        %v424 = vld [vmem:[%s1 + $0x20] sm:$0xff]
        %v425 = vld [vmem:[%s1 + $0x28] sm:$0xff]
        %v426 = vld [vmem:[%s1 + $0x30] sm:$0xff]
        %v427 = vld [vmem:[%s1 + $0x38] sm:$0xff]
        %v428 = vld [vmem:[%s1 + $0x40] sm:$0xff]
        %v429 = vld [vmem:[%s1 + $0x48] sm:$0xff]
        %v430 = vld [vmem:[%s1 + $0x50] sm:$0xff]
        %v431 = vld [vmem:[%s1 + $0x58] sm:$0xff]
        %v432 = vld [vmem:[%s1 + $0x60] sm:$0xff]
        %v433 = vld [vmem:[%s1 + $0x68] sm:$0xff]
        %v434 = vld [vmem:[%s1 + $0x70] sm:$0xff]
        %v435 = vld [vmem:[%s1 + $0x78] sm:$0xff]
        %v436 = vld [vmem:[%s1 + $0x80] sm:$0xff]
        %v437 = vld [vmem:[%s1 + $0x88] sm:$0xff]
        %v438 = vld [vmem:[%s1 + $0x90] sm:$0xff]
        %v439 = vld [vmem:[%s1 + $0x98] sm:$0xff]
        %v440 = vld [vmem:[%s1 + $0xa0] sm:$0xff]
        %v441 = vld [vmem:[%s1 + $0xa8] sm:$0xff]
        %v442 = vld [vmem:[%s1 + $0xb0] sm:$0xff]
        %v443 = vld [vmem:[%s1 + $0xb8] sm:$0xff]
        %v444 = vld [vmem:[%s1 + $0xc0] sm:$0xff]
        %v445 = vld [vmem:[%s1 + $0xc8] sm:$0xff]
        %v446 = vld [vmem:[%s1 + $0xd0] sm:$0xff]
        %v447 = vld [vmem:[%s1 + $0xd8] sm:$0xff]
        %v448 = vld [vmem:[%s1 + $0xe0] sm:$0xff]
        %v449 = vld [vmem:[%s1 + $0xe8] sm:$0xff]
        %v450 = vld [vmem:[%s1 + $0xf0] sm:$0xff]
        %v451 = vld [vmem:[%s1 + $0xf8] sm:$0xff]
        %v452 = vand.u32 %v435, 4294901760
        %453 = vmatpush.msra.mxu0 %v452
        %v454 = vand.u32 %v434, 4294901760
        %455 = vmatpush.msra.mxu0 %v454
        %v456 = vand.u32 %v433, 4294901760
        %457 = vmatpush.msra.mxu0 %v456
        %v458 = vand.u32 %v432, 4294901760
        %459 = vmatpush.msra.mxu0 %v458
        %v460 = vand.u32 %v431, 4294901760
        %461 = vmatpush.msra.mxu0 %v460
        %v462 = vand.u32 %v430, 4294901760
        %463 = vmatpush.msra.mxu0 %v462
        %v464 = vand.u32 %v429, 4294901760
        %465 = vmatpush.msra.mxu0 %v464
        %v466 = vand.u32 %v428, 4294901760
        %467 = vmatpush.msra.mxu0 %v466
        %v468 = vand.u32 %v427, 4294901760
        %469 = vmatpush.msra.mxu0 %v468
        %v470 = vand.u32 %v426, 4294901760
        %471 = vmatpush.msra.mxu0 %v470
        %v472 = vand.u32 %v425, 4294901760
        %473 = vmatpush.msra.mxu0 %v472
        %v474 = vand.u32 %v424, 4294901760
        %475 = vmatpush.msra.mxu0 %v474
        %v476 = vand.u32 %v423, 4294901760
        %477 = vmatpush.msra.mxu0 %v476
        %v478 = vand.u32 %v422, 4294901760
        %479 = vmatpush.msra.mxu0 %v478
        %v480 = vand.u32 %v421, 4294901760
        %481 = vmatpush.msra.mxu0 %v480
        %v482 = vand.u32 %v420, 4294901760
        %483 = vmatpush.msra.mxu0 %v482
        %v484 = vand.u32 %v412, 4294901760
        %v485 = vsub.f32 %v412, %v484
        %v486 = vand.u32 %v485, 4294901760
        %v487 = vsub.f32 %v485, %v486
        %v488 = vand.u32 %v487, 4294901760
        %489 = vmatmul.f32.gmra.mxu0 %v488
        %v490 = vpop.f32.mrf.mxu0
        %v491 = vadd.f32 0.0, %v490
        %v492 = vand.u32 %v414, 4294901760
        %v493 = vsub.f32 %v414, %v492
        %v494 = vand.u32 %v493, 4294901760
        %v495 = vsub.f32 %v493, %v494
        %v496 = vand.u32 %v495, 4294901760
        %497 = vmatmul.f32.gmra.mxu0 %v496
        %v498 = vpop.f32.mrf.mxu0
        %v499 = vadd.f32 0.0, %v498
        %v500 = vand.u32 %v416, 4294901760
        %v501 = vsub.f32 %v416, %v500
        %v502 = vand.u32 %v501, 4294901760
        %v503 = vsub.f32 %v501, %v502
        %v504 = vand.u32 %v503, 4294901760
        %505 = vmatmul.f32.gmra.mxu0 %v504
        %v506 = vpop.f32.mrf.mxu0
        %v507 = vadd.f32 0.0, %v506
        %v508 = vand.u32 %v418, 4294901760
        %v509 = vsub.f32 %v418, %v508
        %v510 = vand.u32 %v509, 4294901760
        %v511 = vsub.f32 %v509, %v510
        %v512 = vand.u32 %v511, 4294901760
        %513 = vmatmul.f32.gmra.mxu0 %v512
        %v514 = vpop.f32.mrf.mxu0
        %v515 = vadd.f32 0.0, %v514
        %516 = vdwg.mxu0
        %v517 = vand.u32 %v435, 4294901760
        %v518 = vsub.f32 %v435, %v517
        %v519 = vand.u32 %v518, 4294901760
        %v520 = vsub.f32 %v518, %v519
        %v521 = vand.u32 %v520, 4294901760
        %522 = vmatpush.msra.mxu0 %v521
        %v523 = vand.u32 %v434, 4294901760
        %v524 = vsub.f32 %v434, %v523
        %v525 = vand.u32 %v524, 4294901760
        %v526 = vsub.f32 %v524, %v525
        %v527 = vand.u32 %v526, 4294901760
        %528 = vmatpush.msra.mxu0 %v527
        %v529 = vand.u32 %v433, 4294901760
        %v530 = vsub.f32 %v433, %v529
        %v531 = vand.u32 %v530, 4294901760
        %v532 = vsub.f32 %v530, %v531
        %v533 = vand.u32 %v532, 4294901760
        %534 = vmatpush.msra.mxu0 %v533
        %v535 = vand.u32 %v432, 4294901760
        %v536 = vsub.f32 %v432, %v535
        %v537 = vand.u32 %v536, 4294901760
        %v538 = vsub.f32 %v536, %v537
        %v539 = vand.u32 %v538, 4294901760
        %540 = vmatpush.msra.mxu0 %v539
        %v541 = vand.u32 %v431, 4294901760
        %v542 = vsub.f32 %v431, %v541
        %v543 = vand.u32 %v542, 4294901760
        %v544 = vsub.f32 %v542, %v543
        %v545 = vand.u32 %v544, 4294901760
        %546 = vmatpush.msra.mxu0 %v545
        %v547 = vand.u32 %v430, 4294901760
        %v548 = vsub.f32 %v430, %v547
        %v549 = vand.u32 %v548, 4294901760
        %v550 = vsub.f32 %v548, %v549
        %v551 = vand.u32 %v550, 4294901760
        %552 = vmatpush.msra.mxu0 %v551
        %v553 = vand.u32 %v429, 4294901760
        %v554 = vsub.f32 %v429, %v553
        %v555 = vand.u32 %v554, 4294901760
        %v556 = vsub.f32 %v554, %v555
        %v557 = vand.u32 %v556, 4294901760
        %558 = vmatpush.msra.mxu0 %v557
        %v559 = vand.u32 %v428, 4294901760
        %v560 = vsub.f32 %v428, %v559
        %v561 = vand.u32 %v560, 4294901760
        %v562 = vsub.f32 %v560, %v561
        %v563 = vand.u32 %v562, 4294901760
        %564 = vmatpush.msra.mxu0 %v563
        %v565 = vand.u32 %v427, 4294901760
        %v566 = vsub.f32 %v427, %v565
        %v567 = vand.u32 %v566, 4294901760
        %v568 = vsub.f32 %v566, %v567
        %v569 = vand.u32 %v568, 4294901760
        %570 = vmatpush.msra.mxu0 %v569
        %v571 = vand.u32 %v426, 4294901760
        %v572 = vsub.f32 %v426, %v571
        %v573 = vand.u32 %v572, 4294901760
        %v574 = vsub.f32 %v572, %v573
        %v575 = vand.u32 %v574, 4294901760
        %576 = vmatpush.msra.mxu0 %v575
        %v577 = vand.u32 %v425, 4294901760
        %v578 = vsub.f32 %v425, %v577
        %v579 = vand.u32 %v578, 4294901760
        %v580 = vsub.f32 %v578, %v579
        %v581 = vand.u32 %v580, 4294901760
        %582 = vmatpush.msra.mxu0 %v581
        %v583 = vand.u32 %v424, 4294901760
        %v584 = vsub.f32 %v424, %v583
        %v585 = vand.u32 %v584, 4294901760
        %v586 = vsub.f32 %v584, %v585
        %v587 = vand.u32 %v586, 4294901760
        %588 = vmatpush.msra.mxu0 %v587
        %v589 = vand.u32 %v423, 4294901760
        %v590 = vsub.f32 %v423, %v589
        %v591 = vand.u32 %v590, 4294901760
        %v592 = vsub.f32 %v590, %v591
        %v593 = vand.u32 %v592, 4294901760
        %594 = vmatpush.msra.mxu0 %v593
        %v595 = vand.u32 %v422, 4294901760
        %v596 = vsub.f32 %v422, %v595
        %v597 = vand.u32 %v596, 4294901760
        %v598 = vsub.f32 %v596, %v597
        %v599 = vand.u32 %v598, 4294901760
        %600 = vmatpush.msra.mxu0 %v599
        %v601 = vand.u32 %v421, 4294901760
        %v602 = vsub.f32 %v421, %v601
        %v603 = vand.u32 %v602, 4294901760
        %v604 = vsub.f32 %v602, %v603
        %v605 = vand.u32 %v604, 4294901760
        %606 = vmatpush.msra.mxu0 %v605
        %v607 = vand.u32 %v420, 4294901760
        %v608 = vsub.f32 %v420, %v607
        %v609 = vand.u32 %v608, 4294901760
        %v610 = vsub.f32 %v608, %v609
        %v611 = vand.u32 %v610, 4294901760
        %612 = vmatpush.msra.mxu0 %v611
        %v613 = vand.u32 %v412, 4294901760
        %614 = vmatmul.f32.gmra.mxu0 %v613
        %v615 = vpop.f32.mrf.mxu0
        %v616 = vadd.f32 %v491, %v615
        %v617 = vand.u32 %v414, 4294901760
        %618 = vmatmul.f32.gmra.mxu0 %v617
        %v619 = vpop.f32.mrf.mxu0
        %v620 = vadd.f32 %v499, %v619
        %v621 = vand.u32 %v416, 4294901760
        %622 = vmatmul.f32.gmra.mxu0 %v621
        %v623 = vpop.f32.mrf.mxu0
        %v624 = vadd.f32 %v507, %v623
        %v625 = vand.u32 %v418, 4294901760
        %626 = vmatmul.f32.gmra.mxu0 %v625
        %v627 = vpop.f32.mrf.mxu0
        %v628 = vadd.f32 %v515, %v627
        %629 = vdwg.mxu0
        %v630 = vand.u32 %v435, 4294901760
        %v631 = vsub.f32 %v435, %v630
        %632 = vmatpush.msra.mxu0 %v631
        %v633 = vand.u32 %v434, 4294901760
        %v634 = vsub.f32 %v434, %v633
        %635 = vmatpush.msra.mxu0 %v634
        %v636 = vand.u32 %v433, 4294901760
        %v637 = vsub.f32 %v433, %v636
        %638 = vmatpush.msra.mxu0 %v637
        %v639 = vand.u32 %v432, 4294901760
        %v640 = vsub.f32 %v432, %v639
        %641 = vmatpush.msra.mxu0 %v640
        %v642 = vand.u32 %v431, 4294901760
        %v643 = vsub.f32 %v431, %v642
        %644 = vmatpush.msra.mxu0 %v643
        %v645 = vand.u32 %v430, 4294901760
        %v646 = vsub.f32 %v430, %v645
        %647 = vmatpush.msra.mxu0 %v646
        %v648 = vand.u32 %v429, 4294901760
        %v649 = vsub.f32 %v429, %v648
        %650 = vmatpush.msra.mxu0 %v649
        %v651 = vand.u32 %v428, 4294901760
        %v652 = vsub.f32 %v428, %v651
        %653 = vmatpush.msra.mxu0 %v652
        %v654 = vand.u32 %v427, 4294901760
        %v655 = vsub.f32 %v427, %v654
        %656 = vmatpush.msra.mxu0 %v655
        %v657 = vand.u32 %v426, 4294901760
        %v658 = vsub.f32 %v426, %v657
        %659 = vmatpush.msra.mxu0 %v658
        %v660 = vand.u32 %v425, 4294901760
        %v661 = vsub.f32 %v425, %v660
        %662 = vmatpush.msra.mxu0 %v661
        %v663 = vand.u32 %v424, 4294901760
        %v664 = vsub.f32 %v424, %v663
        %665 = vmatpush.msra.mxu0 %v664
        %v666 = vand.u32 %v423, 4294901760
        %v667 = vsub.f32 %v423, %v666
        %668 = vmatpush.msra.mxu0 %v667
        %v669 = vand.u32 %v422, 4294901760
        %v670 = vsub.f32 %v422, %v669
        %671 = vmatpush.msra.mxu0 %v670
        %v672 = vand.u32 %v421, 4294901760
        %v673 = vsub.f32 %v421, %v672
        %674 = vmatpush.msra.mxu0 %v673
        %v675 = vand.u32 %v420, 4294901760
        %v676 = vsub.f32 %v420, %v675
        %677 = vmatpush.msra.mxu0 %v676
        %v678 = vand.u32 %v412, 4294901760
        %v679 = vsub.f32 %v412, %v678
        %680 = vmatmul.f32.gmra.mxu0 %v679
        %v681 = vpop.f32.mrf.mxu0
        %v682 = vadd.f32 %v616, %v681
        %v683 = vand.u32 %v414, 4294901760
        %v684 = vsub.f32 %v414, %v683
        %685 = vmatmul.f32.gmra.mxu0 %v684
        %v686 = vpop.f32.mrf.mxu0
        %v687 = vadd.f32 %v620, %v686
        %v688 = vand.u32 %v416, 4294901760
        %v689 = vsub.f32 %v416, %v688
        %690 = vmatmul.f32.gmra.mxu0 %v689
        %v691 = vpop.f32.mrf.mxu0
        %v692 = vadd.f32 %v624, %v691
        %v693 = vand.u32 %v418, 4294901760
        %v694 = vsub.f32 %v418, %v693
        %695 = vmatmul.f32.gmra.mxu0 %v694
        %v696 = vpop.f32.mrf.mxu0
        %v697 = vadd.f32 %v628, %v696
        %698 = vdwg.mxu0
        %v699 = vand.u32 %v435, 4294901760
        %700 = vmatpush.msra.mxu0 %v699
        %v701 = vand.u32 %v434, 4294901760
        %702 = vmatpush.msra.mxu0 %v701
        %v703 = vand.u32 %v433, 4294901760
        %704 = vmatpush.msra.mxu0 %v703
        %v705 = vand.u32 %v432, 4294901760
        %706 = vmatpush.msra.mxu0 %v705
        %v707 = vand.u32 %v431, 4294901760
        %708 = vmatpush.msra.mxu0 %v707
        %v709 = vand.u32 %v430, 4294901760
        %710 = vmatpush.msra.mxu0 %v709
        %v711 = vand.u32 %v429, 4294901760
        %712 = vmatpush.msra.mxu0 %v711
        %v713 = vand.u32 %v428, 4294901760
        %714 = vmatpush.msra.mxu0 %v713
        %v715 = vand.u32 %v427, 4294901760
        %716 = vmatpush.msra.mxu0 %v715
        %v717 = vand.u32 %v426, 4294901760
        %718 = vmatpush.msra.mxu0 %v717
        %v719 = vand.u32 %v425, 4294901760
        %720 = vmatpush.msra.mxu0 %v719
        %v721 = vand.u32 %v424, 4294901760
        %722 = vmatpush.msra.mxu0 %v721
        %v723 = vand.u32 %v423, 4294901760
        %724 = vmatpush.msra.mxu0 %v723
        %v725 = vand.u32 %v422, 4294901760
        %726 = vmatpush.msra.mxu0 %v725
        %v727 = vand.u32 %v421, 4294901760
        %728 = vmatpush.msra.mxu0 %v727
        %v729 = vand.u32 %v420, 4294901760
        %730 = vmatpush.msra.mxu0 %v729
        %v731 = vand.u32 %v412, 4294901760
        %v732 = vsub.f32 %v412, %v731
        %v733 = vand.u32 %v732, 4294901760
        %734 = vmatmul.f32.gmra.mxu0 %v733
        %v735 = vpop.f32.mrf.mxu0
        %v736 = vadd.f32 %v682, %v735
        %v737 = vand.u32 %v414, 4294901760
        %v738 = vsub.f32 %v414, %v737
        %v739 = vand.u32 %v738, 4294901760
        %740 = vmatmul.f32.gmra.mxu0 %v739
        %v741 = vpop.f32.mrf.mxu0
        %v742 = vadd.f32 %v687, %v741
        %v743 = vand.u32 %v416, 4294901760
        %v744 = vsub.f32 %v416, %v743
        %v745 = vand.u32 %v744, 4294901760
        %746 = vmatmul.f32.gmra.mxu0 %v745
        %v747 = vpop.f32.mrf.mxu0
        %v748 = vadd.f32 %v692, %v747
        %v749 = vand.u32 %v418, 4294901760
        %v750 = vsub.f32 %v418, %v749
        %v751 = vand.u32 %v750, 4294901760
        %752 = vmatmul.f32.gmra.mxu0 %v751
        %v753 = vpop.f32.mrf.mxu0
        %v754 = vadd.f32 %v697, %v753
        %755 = vdwg.mxu0
        %v756 = vand.u32 %v435, 4294901760
        %v757 = vsub.f32 %v435, %v756
        %v758 = vand.u32 %v757, 4294901760
        %759 = vmatpush.msra.mxu0 %v758
        %v760 = vand.u32 %v434, 4294901760
        %v761 = vsub.f32 %v434, %v760
        %v762 = vand.u32 %v761, 4294901760
        %763 = vmatpush.msra.mxu0 %v762
        %v764 = vand.u32 %v433, 4294901760
        %v765 = vsub.f32 %v433, %v764
        %v766 = vand.u32 %v765, 4294901760
        %767 = vmatpush.msra.mxu0 %v766
        %v768 = vand.u32 %v432, 4294901760
        %v769 = vsub.f32 %v432, %v768
        %v770 = vand.u32 %v769, 4294901760
        %771 = vmatpush.msra.mxu0 %v770
        %v772 = vand.u32 %v431, 4294901760
        %v773 = vsub.f32 %v431, %v772
        %v774 = vand.u32 %v773, 4294901760
        %775 = vmatpush.msra.mxu0 %v774
        %v776 = vand.u32 %v430, 4294901760
        %v777 = vsub.f32 %v430, %v776
        %v778 = vand.u32 %v777, 4294901760
        %779 = vmatpush.msra.mxu0 %v778
        %v780 = vand.u32 %v429, 4294901760
        %v781 = vsub.f32 %v429, %v780
        %v782 = vand.u32 %v781, 4294901760
        %783 = vmatpush.msra.mxu0 %v782
        %v784 = vand.u32 %v428, 4294901760
        %v785 = vsub.f32 %v428, %v784
        %v786 = vand.u32 %v785, 4294901760
        %787 = vmatpush.msra.mxu0 %v786
        %v788 = vand.u32 %v427, 4294901760
        %v789 = vsub.f32 %v427, %v788
        %v790 = vand.u32 %v789, 4294901760
        %791 = vmatpush.msra.mxu0 %v790
        %v792 = vand.u32 %v426, 4294901760
        %v793 = vsub.f32 %v426, %v792
        %v794 = vand.u32 %v793, 4294901760
        %795 = vmatpush.msra.mxu0 %v794
        %v796 = vand.u32 %v425, 4294901760
        %v797 = vsub.f32 %v425, %v796
        %v798 = vand.u32 %v797, 4294901760
        %799 = vmatpush.msra.mxu0 %v798
        %v800 = vand.u32 %v424, 4294901760
        %v801 = vsub.f32 %v424, %v800
        %v802 = vand.u32 %v801, 4294901760
        %803 = vmatpush.msra.mxu0 %v802
        %v804 = vand.u32 %v423, 4294901760
        %v805 = vsub.f32 %v423, %v804
        %v806 = vand.u32 %v805, 4294901760
        %807 = vmatpush.msra.mxu0 %v806
        %v808 = vand.u32 %v422, 4294901760
        %v809 = vsub.f32 %v422, %v808
        %v810 = vand.u32 %v809, 4294901760
        %811 = vmatpush.msra.mxu0 %v810
        %v812 = vand.u32 %v421, 4294901760
        %v813 = vsub.f32 %v421, %v812
        %v814 = vand.u32 %v813, 4294901760
        %815 = vmatpush.msra.mxu0 %v814
        %v816 = vand.u32 %v420, 4294901760
        %v817 = vsub.f32 %v420, %v816
        %v818 = vand.u32 %v817, 4294901760
        %819 = vmatpush.msra.mxu0 %v818
        %v820 = vand.u32 %v412, 4294901760
        %821 = vmatmul.f32.gmra.mxu0 %v820
        %v822 = vpop.f32.mrf.mxu0
        %v823 = vadd.f32 %v736, %v822
        %v824 = vand.u32 %v414, 4294901760
        %825 = vmatmul.f32.gmra.mxu0 %v824
        %v826 = vpop.f32.mrf.mxu0
        %v827 = vadd.f32 %v742, %v826
        %v828 = vand.u32 %v416, 4294901760
        %829 = vmatmul.f32.gmra.mxu0 %v828
        %v830 = vpop.f32.mrf.mxu0
        %v831 = vadd.f32 %v748, %v830
        %v832 = vand.u32 %v418, 4294901760
        %833 = vmatmul.f32.gmra.mxu0 %v832
        %v834 = vpop.f32.mrf.mxu0
        %v835 = vadd.f32 %v754, %v834
        %836 = vdwg.mxu0
        %v837 = vand.u32 %v435, 4294901760
        %838 = vmatpush.msra.mxu0 %v837
        %v839 = vand.u32 %v434, 4294901760
        %840 = vmatpush.msra.mxu0 %v839
        %v841 = vand.u32 %v433, 4294901760
        %842 = vmatpush.msra.mxu0 %v841
        %v843 = vand.u32 %v432, 4294901760
        %844 = vmatpush.msra.mxu0 %v843
        %v845 = vand.u32 %v431, 4294901760
        %846 = vmatpush.msra.mxu0 %v845
        %v847 = vand.u32 %v430, 4294901760
        %848 = vmatpush.msra.mxu0 %v847
        %v849 = vand.u32 %v429, 4294901760
        %850 = vmatpush.msra.mxu0 %v849
        %v851 = vand.u32 %v428, 4294901760
        %852 = vmatpush.msra.mxu0 %v851
        %v853 = vand.u32 %v427, 4294901760
        %854 = vmatpush.msra.mxu0 %v853
        %v855 = vand.u32 %v426, 4294901760
        %856 = vmatpush.msra.mxu0 %v855
        %v857 = vand.u32 %v425, 4294901760
        %858 = vmatpush.msra.mxu0 %v857
        %v859 = vand.u32 %v424, 4294901760
        %860 = vmatpush.msra.mxu0 %v859
        %v861 = vand.u32 %v423, 4294901760
        %862 = vmatpush.msra.mxu0 %v861
        %v863 = vand.u32 %v422, 4294901760
        %864 = vmatpush.msra.mxu0 %v863
        %v865 = vand.u32 %v421, 4294901760
        %866 = vmatpush.msra.mxu0 %v865
        %v867 = vand.u32 %v420, 4294901760
        %868 = vmatpush.msra.mxu0 %v867
        %v869 = vand.u32 %v412, 4294901760
        %870 = vmatmul.f32.gmra.mxu0 %v869
        %v871 = vpop.f32.mrf.mxu0
        %v872 = vadd.f32 %v823, %v871
        %v873 = vand.u32 %v414, 4294901760
        %874 = vmatmul.f32.gmra.mxu0 %v873
        %v875 = vpop.f32.mrf.mxu0
        %v876 = vadd.f32 %v827, %v875
        %v877 = vand.u32 %v416, 4294901760
        %878 = vmatmul.f32.gmra.mxu0 %v877
        %v879 = vpop.f32.mrf.mxu0
        %v880 = vadd.f32 %v831, %v879
        %v881 = vand.u32 %v418, 4294901760
        %882 = vmatmul.f32.gmra.mxu0 %v881
        %v883 = vpop.f32.mrf.mxu0
        %v884 = vadd.f32 %v835, %v883
        %885 = vdwg.mxu0
        %v886 = vand.u32 %v451, 4294901760
        %887 = vmatpush.msra.mxu0 %v886
        %v888 = vand.u32 %v450, 4294901760
        %889 = vmatpush.msra.mxu0 %v888
        %v890 = vand.u32 %v449, 4294901760
        %891 = vmatpush.msra.mxu0 %v890
        %v892 = vand.u32 %v448, 4294901760
        %893 = vmatpush.msra.mxu0 %v892
        %v894 = vand.u32 %v447, 4294901760
        %895 = vmatpush.msra.mxu0 %v894
        %v896 = vand.u32 %v446, 4294901760
        %897 = vmatpush.msra.mxu0 %v896
        %v898 = vand.u32 %v445, 4294901760
        %899 = vmatpush.msra.mxu0 %v898
        %v900 = vand.u32 %v444, 4294901760
        %901 = vmatpush.msra.mxu0 %v900
        %v902 = vand.u32 %v443, 4294901760
        %903 = vmatpush.msra.mxu0 %v902
        %v904 = vand.u32 %v442, 4294901760
        %905 = vmatpush.msra.mxu0 %v904
        %v906 = vand.u32 %v441, 4294901760
        %907 = vmatpush.msra.mxu0 %v906
        %v908 = vand.u32 %v440, 4294901760
        %909 = vmatpush.msra.mxu0 %v908
        %v910 = vand.u32 %v439, 4294901760
        %911 = vmatpush.msra.mxu0 %v910
        %v912 = vand.u32 %v438, 4294901760
        %913 = vmatpush.msra.mxu0 %v912
        %v914 = vand.u32 %v437, 4294901760
        %915 = vmatpush.msra.mxu0 %v914
        %v916 = vand.u32 %v436, 4294901760
        %917 = vmatpush.msra.mxu0 %v916
        %v918 = vand.u32 %v413, 4294901760
        %v919 = vsub.f32 %v413, %v918
        %v920 = vand.u32 %v919, 4294901760
        %v921 = vsub.f32 %v919, %v920
        %v922 = vand.u32 %v921, 4294901760
        %923 = vmatmul.f32.gmra.mxu0 %v922
        %v924 = vpop.f32.mrf.mxu0
        %v925 = vadd.f32 %v872, %v924
        %v926 = vand.u32 %v415, 4294901760
        %v927 = vsub.f32 %v415, %v926
        %v928 = vand.u32 %v927, 4294901760
        %v929 = vsub.f32 %v927, %v928
        %v930 = vand.u32 %v929, 4294901760
        %931 = vmatmul.f32.gmra.mxu0 %v930
        %v932 = vpop.f32.mrf.mxu0
        %v933 = vadd.f32 %v876, %v932
        %v934 = vand.u32 %v417, 4294901760
        %v935 = vsub.f32 %v417, %v934
        %v936 = vand.u32 %v935, 4294901760
        %v937 = vsub.f32 %v935, %v936
        %v938 = vand.u32 %v937, 4294901760
        %939 = vmatmul.f32.gmra.mxu0 %v938
        %v940 = vpop.f32.mrf.mxu0
        %v941 = vadd.f32 %v880, %v940
        %v942 = vand.u32 %v419, 4294901760
        %v943 = vsub.f32 %v419, %v942
        %v944 = vand.u32 %v943, 4294901760
        %v945 = vsub.f32 %v943, %v944
        %v946 = vand.u32 %v945, 4294901760
        %947 = vmatmul.f32.gmra.mxu0 %v946
        %v948 = vpop.f32.mrf.mxu0
        %v949 = vadd.f32 %v884, %v948
        %950 = vdwg.mxu0
        %v951 = vand.u32 %v451, 4294901760
        %v952 = vsub.f32 %v451, %v951
        %v953 = vand.u32 %v952, 4294901760
        %v954 = vsub.f32 %v952, %v953
        %v955 = vand.u32 %v954, 4294901760
        %956 = vmatpush.msra.mxu0 %v955
        %v957 = vand.u32 %v450, 4294901760
        %v958 = vsub.f32 %v450, %v957
        %v959 = vand.u32 %v958, 4294901760
        %v960 = vsub.f32 %v958, %v959
        %v961 = vand.u32 %v960, 4294901760
        %962 = vmatpush.msra.mxu0 %v961
        %v963 = vand.u32 %v449, 4294901760
        %v964 = vsub.f32 %v449, %v963
        %v965 = vand.u32 %v964, 4294901760
        %v966 = vsub.f32 %v964, %v965
        %v967 = vand.u32 %v966, 4294901760
        %968 = vmatpush.msra.mxu0 %v967
        %v969 = vand.u32 %v448, 4294901760
        %v970 = vsub.f32 %v448, %v969
        %v971 = vand.u32 %v970, 4294901760
        %v972 = vsub.f32 %v970, %v971
        %v973 = vand.u32 %v972, 4294901760
        %974 = vmatpush.msra.mxu0 %v973
        %v975 = vand.u32 %v447, 4294901760
        %v976 = vsub.f32 %v447, %v975
        %v977 = vand.u32 %v976, 4294901760
        %v978 = vsub.f32 %v976, %v977
        %v979 = vand.u32 %v978, 4294901760
        %980 = vmatpush.msra.mxu0 %v979
        %v981 = vand.u32 %v446, 4294901760
        %v982 = vsub.f32 %v446, %v981
        %v983 = vand.u32 %v982, 4294901760
        %v984 = vsub.f32 %v982, %v983
        %v985 = vand.u32 %v984, 4294901760
        %986 = vmatpush.msra.mxu0 %v985
        %v987 = vand.u32 %v445, 4294901760
        %v988 = vsub.f32 %v445, %v987
        %v989 = vand.u32 %v988, 4294901760
        %v990 = vsub.f32 %v988, %v989
        %v991 = vand.u32 %v990, 4294901760
        %992 = vmatpush.msra.mxu0 %v991
        %v993 = vand.u32 %v444, 4294901760
        %v994 = vsub.f32 %v444, %v993
        %v995 = vand.u32 %v994, 4294901760
        %v996 = vsub.f32 %v994, %v995
        %v997 = vand.u32 %v996, 4294901760
        %998 = vmatpush.msra.mxu0 %v997
        %v999 = vand.u32 %v443, 4294901760
        %v1000 = vsub.f32 %v443, %v999
        %v1001 = vand.u32 %v1000, 4294901760
        %v1002 = vsub.f32 %v1000, %v1001
        %v1003 = vand.u32 %v1002, 4294901760
        %1004 = vmatpush.msra.mxu0 %v1003
        %v1005 = vand.u32 %v442, 4294901760
        %v1006 = vsub.f32 %v442, %v1005
        %v1007 = vand.u32 %v1006, 4294901760
        %v1008 = vsub.f32 %v1006, %v1007
        %v1009 = vand.u32 %v1008, 4294901760
        %1010 = vmatpush.msra.mxu0 %v1009
        %v1011 = vand.u32 %v441, 4294901760
        %v1012 = vsub.f32 %v441, %v1011
        %v1013 = vand.u32 %v1012, 4294901760
        %v1014 = vsub.f32 %v1012, %v1013
        %v1015 = vand.u32 %v1014, 4294901760
        %1016 = vmatpush.msra.mxu0 %v1015
        %v1017 = vand.u32 %v440, 4294901760
        %v1018 = vsub.f32 %v440, %v1017
        %v1019 = vand.u32 %v1018, 4294901760
        %v1020 = vsub.f32 %v1018, %v1019
        %v1021 = vand.u32 %v1020, 4294901760
        %1022 = vmatpush.msra.mxu0 %v1021
        %v1023 = vand.u32 %v439, 4294901760
        %v1024 = vsub.f32 %v439, %v1023
        %v1025 = vand.u32 %v1024, 4294901760
        %v1026 = vsub.f32 %v1024, %v1025
        %v1027 = vand.u32 %v1026, 4294901760
        %1028 = vmatpush.msra.mxu0 %v1027
        %v1029 = vand.u32 %v438, 4294901760
        %v1030 = vsub.f32 %v438, %v1029
        %v1031 = vand.u32 %v1030, 4294901760
        %v1032 = vsub.f32 %v1030, %v1031
        %v1033 = vand.u32 %v1032, 4294901760
        %1034 = vmatpush.msra.mxu0 %v1033
        %v1035 = vand.u32 %v437, 4294901760
        %v1036 = vsub.f32 %v437, %v1035
        %v1037 = vand.u32 %v1036, 4294901760
        %v1038 = vsub.f32 %v1036, %v1037
        %v1039 = vand.u32 %v1038, 4294901760
        %1040 = vmatpush.msra.mxu0 %v1039
        %v1041 = vand.u32 %v436, 4294901760
        %v1042 = vsub.f32 %v436, %v1041
        %v1043 = vand.u32 %v1042, 4294901760
        %v1044 = vsub.f32 %v1042, %v1043
        %v1045 = vand.u32 %v1044, 4294901760
        %1046 = vmatpush.msra.mxu0 %v1045
        %v1047 = vand.u32 %v413, 4294901760
        %1048 = vmatmul.f32.gmra.mxu0 %v1047
        %v1049 = vpop.f32.mrf.mxu0
        %v1050 = vadd.f32 %v925, %v1049
        %v1051 = vand.u32 %v415, 4294901760
        %1052 = vmatmul.f32.gmra.mxu0 %v1051
        %v1053 = vpop.f32.mrf.mxu0
        %v1054 = vadd.f32 %v933, %v1053
        %v1055 = vand.u32 %v417, 4294901760
        %1056 = vmatmul.f32.gmra.mxu0 %v1055
        %v1057 = vpop.f32.mrf.mxu0
        %v1058 = vadd.f32 %v941, %v1057
        %v1059 = vand.u32 %v419, 4294901760
        %1060 = vmatmul.f32.gmra.mxu0 %v1059
        %v1061 = vpop.f32.mrf.mxu0
        %v1062 = vadd.f32 %v949, %v1061
        %1063 = vdwg.mxu0
        %v1064 = vand.u32 %v451, 4294901760
        %v1065 = vsub.f32 %v451, %v1064
        %1066 = vmatpush.msra.mxu0 %v1065
        %v1067 = vand.u32 %v450, 4294901760
        %v1068 = vsub.f32 %v450, %v1067
        %1069 = vmatpush.msra.mxu0 %v1068
        %v1070 = vand.u32 %v449, 4294901760
        %v1071 = vsub.f32 %v449, %v1070
        %1072 = vmatpush.msra.mxu0 %v1071
        %v1073 = vand.u32 %v448, 4294901760
        %v1074 = vsub.f32 %v448, %v1073
        %1075 = vmatpush.msra.mxu0 %v1074
        %v1076 = vand.u32 %v447, 4294901760
        %v1077 = vsub.f32 %v447, %v1076
        %1078 = vmatpush.msra.mxu0 %v1077
        %v1079 = vand.u32 %v446, 4294901760
        %v1080 = vsub.f32 %v446, %v1079
        %1081 = vmatpush.msra.mxu0 %v1080
        %v1082 = vand.u32 %v445, 4294901760
        %v1083 = vsub.f32 %v445, %v1082
        %1084 = vmatpush.msra.mxu0 %v1083
        %v1085 = vand.u32 %v444, 4294901760
        %v1086 = vsub.f32 %v444, %v1085
        %1087 = vmatpush.msra.mxu0 %v1086
        %v1088 = vand.u32 %v443, 4294901760
        %v1089 = vsub.f32 %v443, %v1088
        %1090 = vmatpush.msra.mxu0 %v1089
        %v1091 = vand.u32 %v442, 4294901760
        %v1092 = vsub.f32 %v442, %v1091
        %1093 = vmatpush.msra.mxu0 %v1092
        %v1094 = vand.u32 %v441, 4294901760
        %v1095 = vsub.f32 %v441, %v1094
        %1096 = vmatpush.msra.mxu0 %v1095
        %v1097 = vand.u32 %v440, 4294901760
        %v1098 = vsub.f32 %v440, %v1097
        %1099 = vmatpush.msra.mxu0 %v1098
        %v1100 = vand.u32 %v439, 4294901760
        %v1101 = vsub.f32 %v439, %v1100
        %1102 = vmatpush.msra.mxu0 %v1101
        %v1103 = vand.u32 %v438, 4294901760
        %v1104 = vsub.f32 %v438, %v1103
        %1105 = vmatpush.msra.mxu0 %v1104
        %v1106 = vand.u32 %v437, 4294901760
        %v1107 = vsub.f32 %v437, %v1106
        %1108 = vmatpush.msra.mxu0 %v1107
        %v1109 = vand.u32 %v436, 4294901760
        %v1110 = vsub.f32 %v436, %v1109
        %1111 = vmatpush.msra.mxu0 %v1110
        %v1112 = vand.u32 %v413, 4294901760
        %v1113 = vsub.f32 %v413, %v1112
        %1114 = vmatmul.f32.gmra.mxu0 %v1113
        %v1115 = vpop.f32.mrf.mxu0
        %v1116 = vadd.f32 %v1050, %v1115
        %v1117 = vand.u32 %v415, 4294901760
        %v1118 = vsub.f32 %v415, %v1117
        %1119 = vmatmul.f32.gmra.mxu0 %v1118
        %v1120 = vpop.f32.mrf.mxu0
        %v1121 = vadd.f32 %v1054, %v1120
        %v1122 = vand.u32 %v417, 4294901760
        %v1123 = vsub.f32 %v417, %v1122
        %1124 = vmatmul.f32.gmra.mxu0 %v1123
        %v1125 = vpop.f32.mrf.mxu0
        %v1126 = vadd.f32 %v1058, %v1125
        %v1127 = vand.u32 %v419, 4294901760
        %v1128 = vsub.f32 %v419, %v1127
        %1129 = vmatmul.f32.gmra.mxu0 %v1128
        %v1130 = vpop.f32.mrf.mxu0
        %v1131 = vadd.f32 %v1062, %v1130
        %1132 = vdwg.mxu0
        %v1133 = vand.u32 %v451, 4294901760
        %1134 = vmatpush.msra.mxu0 %v1133
        %v1135 = vand.u32 %v450, 4294901760
        %1136 = vmatpush.msra.mxu0 %v1135
        %v1137 = vand.u32 %v449, 4294901760
        %1138 = vmatpush.msra.mxu0 %v1137
        %v1139 = vand.u32 %v448, 4294901760
        %1140 = vmatpush.msra.mxu0 %v1139
        %v1141 = vand.u32 %v447, 4294901760
        %1142 = vmatpush.msra.mxu0 %v1141
        %v1143 = vand.u32 %v446, 4294901760
        %1144 = vmatpush.msra.mxu0 %v1143
        %v1145 = vand.u32 %v445, 4294901760
        %1146 = vmatpush.msra.mxu0 %v1145
        %v1147 = vand.u32 %v444, 4294901760
        %1148 = vmatpush.msra.mxu0 %v1147
        %v1149 = vand.u32 %v443, 4294901760
        %1150 = vmatpush.msra.mxu0 %v1149
        %v1151 = vand.u32 %v442, 4294901760
        %1152 = vmatpush.msra.mxu0 %v1151
        %v1153 = vand.u32 %v441, 4294901760
        %1154 = vmatpush.msra.mxu0 %v1153
        %v1155 = vand.u32 %v440, 4294901760
        %1156 = vmatpush.msra.mxu0 %v1155
        %v1157 = vand.u32 %v439, 4294901760
        %1158 = vmatpush.msra.mxu0 %v1157
        %v1159 = vand.u32 %v438, 4294901760
        %1160 = vmatpush.msra.mxu0 %v1159
        %v1161 = vand.u32 %v437, 4294901760
        %1162 = vmatpush.msra.mxu0 %v1161
        %v1163 = vand.u32 %v436, 4294901760
        %1164 = vmatpush.msra.mxu0 %v1163
        %v1165 = vand.u32 %v413, 4294901760
        %v1166 = vsub.f32 %v413, %v1165
        %v1167 = vand.u32 %v1166, 4294901760
        %1168 = vmatmul.f32.gmra.mxu0 %v1167
        %v1169 = vpop.f32.mrf.mxu0
        %v1170 = vadd.f32 %v1116, %v1169
        %v1171 = vand.u32 %v415, 4294901760
        %v1172 = vsub.f32 %v415, %v1171
        %v1173 = vand.u32 %v1172, 4294901760
        %1174 = vmatmul.f32.gmra.mxu0 %v1173
        %v1175 = vpop.f32.mrf.mxu0
        %v1176 = vadd.f32 %v1121, %v1175
        %v1177 = vand.u32 %v417, 4294901760
        %v1178 = vsub.f32 %v417, %v1177
        %v1179 = vand.u32 %v1178, 4294901760
        %1180 = vmatmul.f32.gmra.mxu0 %v1179
        %v1181 = vpop.f32.mrf.mxu0
        %v1182 = vadd.f32 %v1126, %v1181
        %v1183 = vand.u32 %v419, 4294901760
        %v1184 = vsub.f32 %v419, %v1183
        %v1185 = vand.u32 %v1184, 4294901760
        %1186 = vmatmul.f32.gmra.mxu0 %v1185
        %v1187 = vpop.f32.mrf.mxu0
        %v1188 = vadd.f32 %v1131, %v1187
        %1189 = vdwg.mxu0
        %v1190 = vand.u32 %v451, 4294901760
        %v1191 = vsub.f32 %v451, %v1190
        %v1192 = vand.u32 %v1191, 4294901760
        %1193 = vmatpush.msra.mxu0 %v1192
        %v1194 = vand.u32 %v450, 4294901760
        %v1195 = vsub.f32 %v450, %v1194
        %v1196 = vand.u32 %v1195, 4294901760
        %1197 = vmatpush.msra.mxu0 %v1196
        %v1198 = vand.u32 %v449, 4294901760
        %v1199 = vsub.f32 %v449, %v1198
        %v1200 = vand.u32 %v1199, 4294901760
        %1201 = vmatpush.msra.mxu0 %v1200
        %v1202 = vand.u32 %v448, 4294901760
        %v1203 = vsub.f32 %v448, %v1202
        %v1204 = vand.u32 %v1203, 4294901760
        %1205 = vmatpush.msra.mxu0 %v1204
        %v1206 = vand.u32 %v447, 4294901760
        %v1207 = vsub.f32 %v447, %v1206
        %v1208 = vand.u32 %v1207, 4294901760
        %1209 = vmatpush.msra.mxu0 %v1208
        %v1210 = vand.u32 %v446, 4294901760
        %v1211 = vsub.f32 %v446, %v1210
        %v1212 = vand.u32 %v1211, 4294901760
        %1213 = vmatpush.msra.mxu0 %v1212
        %v1214 = vand.u32 %v445, 4294901760
        %v1215 = vsub.f32 %v445, %v1214
        %v1216 = vand.u32 %v1215, 4294901760
        %1217 = vmatpush.msra.mxu0 %v1216
        %v1218 = vand.u32 %v444, 4294901760
        %v1219 = vsub.f32 %v444, %v1218
        %v1220 = vand.u32 %v1219, 4294901760
        %1221 = vmatpush.msra.mxu0 %v1220
        %v1222 = vand.u32 %v443, 4294901760
        %v1223 = vsub.f32 %v443, %v1222
        %v1224 = vand.u32 %v1223, 4294901760
        %1225 = vmatpush.msra.mxu0 %v1224
        %v1226 = vand.u32 %v442, 4294901760
        %v1227 = vsub.f32 %v442, %v1226
        %v1228 = vand.u32 %v1227, 4294901760
        %1229 = vmatpush.msra.mxu0 %v1228
        %v1230 = vand.u32 %v441, 4294901760
        %v1231 = vsub.f32 %v441, %v1230
        %v1232 = vand.u32 %v1231, 4294901760
        %1233 = vmatpush.msra.mxu0 %v1232
        %v1234 = vand.u32 %v440, 4294901760
        %v1235 = vsub.f32 %v440, %v1234
        %v1236 = vand.u32 %v1235, 4294901760
        %1237 = vmatpush.msra.mxu0 %v1236
        %v1238 = vand.u32 %v439, 4294901760
        %v1239 = vsub.f32 %v439, %v1238
        %v1240 = vand.u32 %v1239, 4294901760
        %1241 = vmatpush.msra.mxu0 %v1240
        %v1242 = vand.u32 %v438, 4294901760
        %v1243 = vsub.f32 %v438, %v1242
        %v1244 = vand.u32 %v1243, 4294901760
        %1245 = vmatpush.msra.mxu0 %v1244
        %v1246 = vand.u32 %v437, 4294901760
        %v1247 = vsub.f32 %v437, %v1246
        %v1248 = vand.u32 %v1247, 4294901760
        %1249 = vmatpush.msra.mxu0 %v1248
        %v1250 = vand.u32 %v436, 4294901760
        %v1251 = vsub.f32 %v436, %v1250
        %v1252 = vand.u32 %v1251, 4294901760
        %1253 = vmatpush.msra.mxu0 %v1252
        %v1254 = vand.u32 %v413, 4294901760
        %1255 = vmatmul.f32.gmra.mxu0 %v1254
        %v1256 = vpop.f32.mrf.mxu0
        %v1257 = vadd.f32 %v1170, %v1256
        %v1258 = vand.u32 %v415, 4294901760
        %1259 = vmatmul.f32.gmra.mxu0 %v1258
        %v1260 = vpop.f32.mrf.mxu0
        %v1261 = vadd.f32 %v1176, %v1260
        %v1262 = vand.u32 %v417, 4294901760
        %1263 = vmatmul.f32.gmra.mxu0 %v1262
        %v1264 = vpop.f32.mrf.mxu0
        %v1265 = vadd.f32 %v1182, %v1264
        %v1266 = vand.u32 %v419, 4294901760
        %1267 = vmatmul.f32.gmra.mxu0 %v1266
        %v1268 = vpop.f32.mrf.mxu0
        %v1269 = vadd.f32 %v1188, %v1268
        %1270 = vdwg.mxu0
        %v1271 = vand.u32 %v451, 4294901760
        %1272 = vmatpush.msra.mxu0 %v1271
        %v1273 = vand.u32 %v450, 4294901760
        %1274 = vmatpush.msra.mxu0 %v1273
        %v1275 = vand.u32 %v449, 4294901760
        %1276 = vmatpush.msra.mxu0 %v1275
        %v1277 = vand.u32 %v448, 4294901760
        %1278 = vmatpush.msra.mxu0 %v1277
        %v1279 = vand.u32 %v447, 4294901760
        %1280 = vmatpush.msra.mxu0 %v1279
        %v1281 = vand.u32 %v446, 4294901760
        %1282 = vmatpush.msra.mxu0 %v1281
        %v1283 = vand.u32 %v445, 4294901760
        %1284 = vmatpush.msra.mxu0 %v1283
        %v1285 = vand.u32 %v444, 4294901760
        %1286 = vmatpush.msra.mxu0 %v1285
        %v1287 = vand.u32 %v443, 4294901760
        %1288 = vmatpush.msra.mxu0 %v1287
        %v1289 = vand.u32 %v442, 4294901760
        %1290 = vmatpush.msra.mxu0 %v1289
        %v1291 = vand.u32 %v441, 4294901760
        %1292 = vmatpush.msra.mxu0 %v1291
        %v1293 = vand.u32 %v440, 4294901760
        %1294 = vmatpush.msra.mxu0 %v1293
        %v1295 = vand.u32 %v439, 4294901760
        %1296 = vmatpush.msra.mxu0 %v1295
        %v1297 = vand.u32 %v438, 4294901760
        %1298 = vmatpush.msra.mxu0 %v1297
        %v1299 = vand.u32 %v437, 4294901760
        %1300 = vmatpush.msra.mxu0 %v1299
        %v1301 = vand.u32 %v436, 4294901760
        %1302 = vmatpush.msra.mxu0 %v1301
        %v1303 = vand.u32 %v413, 4294901760
        %1304 = vmatmul.f32.gmra.mxu0 %v1303
        %v1305 = vpop.f32.mrf.mxu0
        %v1306 = vadd.f32 %v1257, %v1305
        %v1307 = vand.u32 %v415, 4294901760
        %1308 = vmatmul.f32.gmra.mxu0 %v1307
        %v1309 = vpop.f32.mrf.mxu0
        %v1310 = vadd.f32 %v1261, %v1309
        %v1311 = vand.u32 %v417, 4294901760
        %1312 = vmatmul.f32.gmra.mxu0 %v1311
        %v1313 = vpop.f32.mrf.mxu0
        %v1314 = vadd.f32 %v1265, %v1313
        %v1315 = vand.u32 %v419, 4294901760
        %1316 = vmatmul.f32.gmra.mxu0 %v1315
        %v1317 = vpop.f32.mrf.mxu0
        %v1318 = vadd.f32 %v1269, %v1317
        %1319 = vdwg.mxu0
        %v1320 = vld [vmem:[%s2] sm:$0xff]
        %v1321 = vld [vmem:[%s2 + $0x8] sm:$0xff]
        %v1322 = vld [vmem:[%s2 + $0x10] sm:$0xff]
        %v1323 = vld [vmem:[%s2 + $0x18] sm:$0xff]
        %v1324 = vld [vmem:[%s2 + $0x20] sm:$0xff]
        %v1325 = vld [vmem:[%s2 + $0x28] sm:$0xff]
        %v1326 = vld [vmem:[%s2 + $0x30] sm:$0xff]
        %v1327 = vld [vmem:[%s2 + $0x38] sm:$0xff]
        %v1328 = vld [vmem:[%s2 + $0x40] sm:$0xff]
        %v1329 = vld [vmem:[%s2 + $0x48] sm:$0xff]
        %v1330 = vld [vmem:[%s2 + $0x50] sm:$0xff]
        %v1331 = vld [vmem:[%s2 + $0x58] sm:$0xff]
        %v1332 = vld [vmem:[%s2 + $0x60] sm:$0xff]
        %v1333 = vld [vmem:[%s2 + $0x68] sm:$0xff]
        %v1334 = vld [vmem:[%s2 + $0x70] sm:$0xff]
        %v1335 = vld [vmem:[%s2 + $0x78] sm:$0xff]
        %v1336 = vld [vmem:[%s2 + $0x80] sm:$0xff]
        %v1337 = vld [vmem:[%s2 + $0x88] sm:$0xff]
        %v1338 = vld [vmem:[%s2 + $0x90] sm:$0xff]
        %v1339 = vld [vmem:[%s2 + $0x98] sm:$0xff]
        %v1340 = vld [vmem:[%s2 + $0xa0] sm:$0xff]
        %v1341 = vld [vmem:[%s2 + $0xa8] sm:$0xff]
        %v1342 = vld [vmem:[%s2 + $0xb0] sm:$0xff]
        %v1343 = vld [vmem:[%s2 + $0xb8] sm:$0xff]
        %v1344 = vld [vmem:[%s2 + $0xc0] sm:$0xff]
        %v1345 = vld [vmem:[%s2 + $0xc8] sm:$0xff]
        %v1346 = vld [vmem:[%s2 + $0xd0] sm:$0xff]
        %v1347 = vld [vmem:[%s2 + $0xd8] sm:$0xff]
        %v1348 = vld [vmem:[%s2 + $0xe0] sm:$0xff]
        %v1349 = vld [vmem:[%s2 + $0xe8] sm:$0xff]
        %v1350 = vld [vmem:[%s2 + $0xf0] sm:$0xff]
        %v1351 = vld [vmem:[%s2 + $0xf8] sm:$0xff]
        %v1352 = vand.u32 %v1335, 4294901760
        %1353 = vmatpush.msra.mxu0 %v1352
        %v1354 = vand.u32 %v1334, 4294901760
        %1355 = vmatpush.msra.mxu0 %v1354
        %v1356 = vand.u32 %v1333, 4294901760
        %1357 = vmatpush.msra.mxu0 %v1356
        %v1358 = vand.u32 %v1332, 4294901760
        %1359 = vmatpush.msra.mxu0 %v1358
        %v1360 = vand.u32 %v1331, 4294901760
        %1361 = vmatpush.msra.mxu0 %v1360
        %v1362 = vand.u32 %v1330, 4294901760
        %1363 = vmatpush.msra.mxu0 %v1362
        %v1364 = vand.u32 %v1329, 4294901760
        %1365 = vmatpush.msra.mxu0 %v1364
        %v1366 = vand.u32 %v1328, 4294901760
        %1367 = vmatpush.msra.mxu0 %v1366
        %v1368 = vand.u32 %v1327, 4294901760
        %1369 = vmatpush.msra.mxu0 %v1368
        %v1370 = vand.u32 %v1326, 4294901760
        %1371 = vmatpush.msra.mxu0 %v1370
        %v1372 = vand.u32 %v1325, 4294901760
        %1373 = vmatpush.msra.mxu0 %v1372
        %v1374 = vand.u32 %v1324, 4294901760
        %1375 = vmatpush.msra.mxu0 %v1374
        %v1376 = vand.u32 %v1323, 4294901760
        %1377 = vmatpush.msra.mxu0 %v1376
        %v1378 = vand.u32 %v1322, 4294901760
        %1379 = vmatpush.msra.mxu0 %v1378
        %v1380 = vand.u32 %v1321, 4294901760
        %1381 = vmatpush.msra.mxu0 %v1380
        %v1382 = vand.u32 %v1320, 4294901760
        %1383 = vmatpush.msra.mxu0 %v1382
        %v1384 = vand.u32 %v412, 4294901760
        %v1385 = vsub.f32 %v412, %v1384
        %v1386 = vand.u32 %v1385, 4294901760
        %v1387 = vsub.f32 %v1385, %v1386
        %v1388 = vand.u32 %v1387, 4294901760
        %1389 = vmatmul.f32.gmra.mxu0 %v1388
        %v1390 = vpop.f32.mrf.mxu0
        %v1391 = vadd.f32 0.0, %v1390
        %v1392 = vand.u32 %v414, 4294901760
        %v1393 = vsub.f32 %v414, %v1392
        %v1394 = vand.u32 %v1393, 4294901760
        %v1395 = vsub.f32 %v1393, %v1394
        %v1396 = vand.u32 %v1395, 4294901760
        %1397 = vmatmul.f32.gmra.mxu0 %v1396
        %v1398 = vpop.f32.mrf.mxu0
        %v1399 = vadd.f32 0.0, %v1398
        %v1400 = vand.u32 %v416, 4294901760
        %v1401 = vsub.f32 %v416, %v1400
        %v1402 = vand.u32 %v1401, 4294901760
        %v1403 = vsub.f32 %v1401, %v1402
        %v1404 = vand.u32 %v1403, 4294901760
        %1405 = vmatmul.f32.gmra.mxu0 %v1404
        %v1406 = vpop.f32.mrf.mxu0
        %v1407 = vadd.f32 0.0, %v1406
        %v1408 = vand.u32 %v418, 4294901760
        %v1409 = vsub.f32 %v418, %v1408
        %v1410 = vand.u32 %v1409, 4294901760
        %v1411 = vsub.f32 %v1409, %v1410
        %v1412 = vand.u32 %v1411, 4294901760
        %1413 = vmatmul.f32.gmra.mxu0 %v1412
        %v1414 = vpop.f32.mrf.mxu0
        %v1415 = vadd.f32 0.0, %v1414
        %1416 = vdwg.mxu0
        %v1417 = vand.u32 %v1335, 4294901760
        %v1418 = vsub.f32 %v1335, %v1417
        %v1419 = vand.u32 %v1418, 4294901760
        %v1420 = vsub.f32 %v1418, %v1419
        %v1421 = vand.u32 %v1420, 4294901760
        %1422 = vmatpush.msra.mxu0 %v1421
        %v1423 = vand.u32 %v1334, 4294901760
        %v1424 = vsub.f32 %v1334, %v1423
        %v1425 = vand.u32 %v1424, 4294901760
        %v1426 = vsub.f32 %v1424, %v1425
        %v1427 = vand.u32 %v1426, 4294901760
        %1428 = vmatpush.msra.mxu0 %v1427
        %v1429 = vand.u32 %v1333, 4294901760
        %v1430 = vsub.f32 %v1333, %v1429
        %v1431 = vand.u32 %v1430, 4294901760
        %v1432 = vsub.f32 %v1430, %v1431
        %v1433 = vand.u32 %v1432, 4294901760
        %1434 = vmatpush.msra.mxu0 %v1433
        %v1435 = vand.u32 %v1332, 4294901760
        %v1436 = vsub.f32 %v1332, %v1435
        %v1437 = vand.u32 %v1436, 4294901760
        %v1438 = vsub.f32 %v1436, %v1437
        %v1439 = vand.u32 %v1438, 4294901760
        %1440 = vmatpush.msra.mxu0 %v1439
        %v1441 = vand.u32 %v1331, 4294901760
        %v1442 = vsub.f32 %v1331, %v1441
        %v1443 = vand.u32 %v1442, 4294901760
        %v1444 = vsub.f32 %v1442, %v1443
        %v1445 = vand.u32 %v1444, 4294901760
        %1446 = vmatpush.msra.mxu0 %v1445
        %v1447 = vand.u32 %v1330, 4294901760
        %v1448 = vsub.f32 %v1330, %v1447
        %v1449 = vand.u32 %v1448, 4294901760
        %v1450 = vsub.f32 %v1448, %v1449
        %v1451 = vand.u32 %v1450, 4294901760
        %1452 = vmatpush.msra.mxu0 %v1451
        %v1453 = vand.u32 %v1329, 4294901760
        %v1454 = vsub.f32 %v1329, %v1453
        %v1455 = vand.u32 %v1454, 4294901760
        %v1456 = vsub.f32 %v1454, %v1455
        %v1457 = vand.u32 %v1456, 4294901760
        %1458 = vmatpush.msra.mxu0 %v1457
        %v1459 = vand.u32 %v1328, 4294901760
        %v1460 = vsub.f32 %v1328, %v1459
        %v1461 = vand.u32 %v1460, 4294901760
        %v1462 = vsub.f32 %v1460, %v1461
        %v1463 = vand.u32 %v1462, 4294901760
        %1464 = vmatpush.msra.mxu0 %v1463
        %v1465 = vand.u32 %v1327, 4294901760
        %v1466 = vsub.f32 %v1327, %v1465
        %v1467 = vand.u32 %v1466, 4294901760
        %v1468 = vsub.f32 %v1466, %v1467
        %v1469 = vand.u32 %v1468, 4294901760
        %1470 = vmatpush.msra.mxu0 %v1469
        %v1471 = vand.u32 %v1326, 4294901760
        %v1472 = vsub.f32 %v1326, %v1471
        %v1473 = vand.u32 %v1472, 4294901760
        %v1474 = vsub.f32 %v1472, %v1473
        %v1475 = vand.u32 %v1474, 4294901760
        %1476 = vmatpush.msra.mxu0 %v1475
        %v1477 = vand.u32 %v1325, 4294901760
        %v1478 = vsub.f32 %v1325, %v1477
        %v1479 = vand.u32 %v1478, 4294901760
        %v1480 = vsub.f32 %v1478, %v1479
        %v1481 = vand.u32 %v1480, 4294901760
        %1482 = vmatpush.msra.mxu0 %v1481
        %v1483 = vand.u32 %v1324, 4294901760
        %v1484 = vsub.f32 %v1324, %v1483
        %v1485 = vand.u32 %v1484, 4294901760
        %v1486 = vsub.f32 %v1484, %v1485
        %v1487 = vand.u32 %v1486, 4294901760
        %1488 = vmatpush.msra.mxu0 %v1487
        %v1489 = vand.u32 %v1323, 4294901760
        %v1490 = vsub.f32 %v1323, %v1489
        %v1491 = vand.u32 %v1490, 4294901760
        %v1492 = vsub.f32 %v1490, %v1491
        %v1493 = vand.u32 %v1492, 4294901760
        %1494 = vmatpush.msra.mxu0 %v1493
        %v1495 = vand.u32 %v1322, 4294901760
        %v1496 = vsub.f32 %v1322, %v1495
        %v1497 = vand.u32 %v1496, 4294901760
        %v1498 = vsub.f32 %v1496, %v1497
        %v1499 = vand.u32 %v1498, 4294901760
        %1500 = vmatpush.msra.mxu0 %v1499
        %v1501 = vand.u32 %v1321, 4294901760
        %v1502 = vsub.f32 %v1321, %v1501
        %v1503 = vand.u32 %v1502, 4294901760
        %v1504 = vsub.f32 %v1502, %v1503
        %v1505 = vand.u32 %v1504, 4294901760
        %1506 = vmatpush.msra.mxu0 %v1505
        %v1507 = vand.u32 %v1320, 4294901760
        %v1508 = vsub.f32 %v1320, %v1507
        %v1509 = vand.u32 %v1508, 4294901760
        %v1510 = vsub.f32 %v1508, %v1509
        %v1511 = vand.u32 %v1510, 4294901760
        %1512 = vmatpush.msra.mxu0 %v1511
        %v1513 = vand.u32 %v412, 4294901760
        %1514 = vmatmul.f32.gmra.mxu0 %v1513
        %v1515 = vpop.f32.mrf.mxu0
        %v1516 = vadd.f32 %v1391, %v1515
        %v1517 = vand.u32 %v414, 4294901760
        %1518 = vmatmul.f32.gmra.mxu0 %v1517
        %v1519 = vpop.f32.mrf.mxu0
        %v1520 = vadd.f32 %v1399, %v1519
        %v1521 = vand.u32 %v416, 4294901760
        %1522 = vmatmul.f32.gmra.mxu0 %v1521
        %v1523 = vpop.f32.mrf.mxu0
        %v1524 = vadd.f32 %v1407, %v1523
        %v1525 = vand.u32 %v418, 4294901760
        %1526 = vmatmul.f32.gmra.mxu0 %v1525
        %v1527 = vpop.f32.mrf.mxu0
        %v1528 = vadd.f32 %v1415, %v1527
        %1529 = vdwg.mxu0
        %v1530 = vand.u32 %v1335, 4294901760
        %v1531 = vsub.f32 %v1335, %v1530
        %1532 = vmatpush.msra.mxu0 %v1531
        %v1533 = vand.u32 %v1334, 4294901760
        %v1534 = vsub.f32 %v1334, %v1533
        %1535 = vmatpush.msra.mxu0 %v1534
        %v1536 = vand.u32 %v1333, 4294901760
        %v1537 = vsub.f32 %v1333, %v1536
        %1538 = vmatpush.msra.mxu0 %v1537
        %v1539 = vand.u32 %v1332, 4294901760
        %v1540 = vsub.f32 %v1332, %v1539
        %1541 = vmatpush.msra.mxu0 %v1540
        %v1542 = vand.u32 %v1331, 4294901760
        %v1543 = vsub.f32 %v1331, %v1542
        %1544 = vmatpush.msra.mxu0 %v1543
        %v1545 = vand.u32 %v1330, 4294901760
        %v1546 = vsub.f32 %v1330, %v1545
        %1547 = vmatpush.msra.mxu0 %v1546
        %v1548 = vand.u32 %v1329, 4294901760
        %v1549 = vsub.f32 %v1329, %v1548
        %1550 = vmatpush.msra.mxu0 %v1549
        %v1551 = vand.u32 %v1328, 4294901760
        %v1552 = vsub.f32 %v1328, %v1551
        %1553 = vmatpush.msra.mxu0 %v1552
        %v1554 = vand.u32 %v1327, 4294901760
        %v1555 = vsub.f32 %v1327, %v1554
        %1556 = vmatpush.msra.mxu0 %v1555
        %v1557 = vand.u32 %v1326, 4294901760
        %v1558 = vsub.f32 %v1326, %v1557
        %1559 = vmatpush.msra.mxu0 %v1558
        %v1560 = vand.u32 %v1325, 4294901760
        %v1561 = vsub.f32 %v1325, %v1560
        %1562 = vmatpush.msra.mxu0 %v1561
        %v1563 = vand.u32 %v1324, 4294901760
        %v1564 = vsub.f32 %v1324, %v1563
        %1565 = vmatpush.msra.mxu0 %v1564
        %v1566 = vand.u32 %v1323, 4294901760
        %v1567 = vsub.f32 %v1323, %v1566
        %1568 = vmatpush.msra.mxu0 %v1567
        %v1569 = vand.u32 %v1322, 4294901760
        %v1570 = vsub.f32 %v1322, %v1569
        %1571 = vmatpush.msra.mxu0 %v1570
        %v1572 = vand.u32 %v1321, 4294901760
        %v1573 = vsub.f32 %v1321, %v1572
        %1574 = vmatpush.msra.mxu0 %v1573
        %v1575 = vand.u32 %v1320, 4294901760
        %v1576 = vsub.f32 %v1320, %v1575
        %1577 = vmatpush.msra.mxu0 %v1576
        %v1578 = vand.u32 %v412, 4294901760
        %v1579 = vsub.f32 %v412, %v1578
        %1580 = vmatmul.f32.gmra.mxu0 %v1579
        %v1581 = vpop.f32.mrf.mxu0
        %v1582 = vadd.f32 %v1516, %v1581
        %v1583 = vand.u32 %v414, 4294901760
        %v1584 = vsub.f32 %v414, %v1583
        %1585 = vmatmul.f32.gmra.mxu0 %v1584
        %v1586 = vpop.f32.mrf.mxu0
        %v1587 = vadd.f32 %v1520, %v1586
        %v1588 = vand.u32 %v416, 4294901760
        %v1589 = vsub.f32 %v416, %v1588
        %1590 = vmatmul.f32.gmra.mxu0 %v1589
        %v1591 = vpop.f32.mrf.mxu0
        %v1592 = vadd.f32 %v1524, %v1591
        %v1593 = vand.u32 %v418, 4294901760
        %v1594 = vsub.f32 %v418, %v1593
        %1595 = vmatmul.f32.gmra.mxu0 %v1594
        %v1596 = vpop.f32.mrf.mxu0
        %v1597 = vadd.f32 %v1528, %v1596
        %1598 = vdwg.mxu0
        %v1599 = vand.u32 %v1335, 4294901760
        %1600 = vmatpush.msra.mxu0 %v1599
        %v1601 = vand.u32 %v1334, 4294901760
        %1602 = vmatpush.msra.mxu0 %v1601
        %v1603 = vand.u32 %v1333, 4294901760
        %1604 = vmatpush.msra.mxu0 %v1603
        %v1605 = vand.u32 %v1332, 4294901760
        %1606 = vmatpush.msra.mxu0 %v1605
        %v1607 = vand.u32 %v1331, 4294901760
        %1608 = vmatpush.msra.mxu0 %v1607
        %v1609 = vand.u32 %v1330, 4294901760
        %1610 = vmatpush.msra.mxu0 %v1609
        %v1611 = vand.u32 %v1329, 4294901760
        %1612 = vmatpush.msra.mxu0 %v1611
        %v1613 = vand.u32 %v1328, 4294901760
        %1614 = vmatpush.msra.mxu0 %v1613
        %v1615 = vand.u32 %v1327, 4294901760
        %1616 = vmatpush.msra.mxu0 %v1615
        %v1617 = vand.u32 %v1326, 4294901760
        %1618 = vmatpush.msra.mxu0 %v1617
        %v1619 = vand.u32 %v1325, 4294901760
        %1620 = vmatpush.msra.mxu0 %v1619
        %v1621 = vand.u32 %v1324, 4294901760
        %1622 = vmatpush.msra.mxu0 %v1621
        %v1623 = vand.u32 %v1323, 4294901760
        %1624 = vmatpush.msra.mxu0 %v1623
        %v1625 = vand.u32 %v1322, 4294901760
        %1626 = vmatpush.msra.mxu0 %v1625
        %v1627 = vand.u32 %v1321, 4294901760
        %1628 = vmatpush.msra.mxu0 %v1627
        %v1629 = vand.u32 %v1320, 4294901760
        %1630 = vmatpush.msra.mxu0 %v1629
        %v1631 = vand.u32 %v412, 4294901760
        %v1632 = vsub.f32 %v412, %v1631
        %v1633 = vand.u32 %v1632, 4294901760
        %1634 = vmatmul.f32.gmra.mxu0 %v1633
        %v1635 = vpop.f32.mrf.mxu0
        %v1636 = vadd.f32 %v1582, %v1635
        %v1637 = vand.u32 %v414, 4294901760
        %v1638 = vsub.f32 %v414, %v1637
        %v1639 = vand.u32 %v1638, 4294901760
        %1640 = vmatmul.f32.gmra.mxu0 %v1639
        %v1641 = vpop.f32.mrf.mxu0
        %v1642 = vadd.f32 %v1587, %v1641
        %v1643 = vand.u32 %v416, 4294901760
        %v1644 = vsub.f32 %v416, %v1643
        %v1645 = vand.u32 %v1644, 4294901760
        %1646 = vmatmul.f32.gmra.mxu0 %v1645
        %v1647 = vpop.f32.mrf.mxu0
        %v1648 = vadd.f32 %v1592, %v1647
        %v1649 = vand.u32 %v418, 4294901760
        %v1650 = vsub.f32 %v418, %v1649
        %v1651 = vand.u32 %v1650, 4294901760
        %1652 = vmatmul.f32.gmra.mxu0 %v1651
        %v1653 = vpop.f32.mrf.mxu0
        %v1654 = vadd.f32 %v1597, %v1653
        %1655 = vdwg.mxu0
        %v1656 = vand.u32 %v1335, 4294901760
        %v1657 = vsub.f32 %v1335, %v1656
        %v1658 = vand.u32 %v1657, 4294901760
        %1659 = vmatpush.msra.mxu0 %v1658
        %v1660 = vand.u32 %v1334, 4294901760
        %v1661 = vsub.f32 %v1334, %v1660
        %v1662 = vand.u32 %v1661, 4294901760
        %1663 = vmatpush.msra.mxu0 %v1662
        %v1664 = vand.u32 %v1333, 4294901760
        %v1665 = vsub.f32 %v1333, %v1664
        %v1666 = vand.u32 %v1665, 4294901760
        %1667 = vmatpush.msra.mxu0 %v1666
        %v1668 = vand.u32 %v1332, 4294901760
        %v1669 = vsub.f32 %v1332, %v1668
        %v1670 = vand.u32 %v1669, 4294901760
        %1671 = vmatpush.msra.mxu0 %v1670
        %v1672 = vand.u32 %v1331, 4294901760
        %v1673 = vsub.f32 %v1331, %v1672
        %v1674 = vand.u32 %v1673, 4294901760
        %1675 = vmatpush.msra.mxu0 %v1674
        %v1676 = vand.u32 %v1330, 4294901760
        %v1677 = vsub.f32 %v1330, %v1676
        %v1678 = vand.u32 %v1677, 4294901760
        %1679 = vmatpush.msra.mxu0 %v1678
        %v1680 = vand.u32 %v1329, 4294901760
        %v1681 = vsub.f32 %v1329, %v1680
        %v1682 = vand.u32 %v1681, 4294901760
        %1683 = vmatpush.msra.mxu0 %v1682
        %v1684 = vand.u32 %v1328, 4294901760
        %v1685 = vsub.f32 %v1328, %v1684
        %v1686 = vand.u32 %v1685, 4294901760
        %1687 = vmatpush.msra.mxu0 %v1686
        %v1688 = vand.u32 %v1327, 4294901760
        %v1689 = vsub.f32 %v1327, %v1688
        %v1690 = vand.u32 %v1689, 4294901760
        %1691 = vmatpush.msra.mxu0 %v1690
        %v1692 = vand.u32 %v1326, 4294901760
        %v1693 = vsub.f32 %v1326, %v1692
        %v1694 = vand.u32 %v1693, 4294901760
        %1695 = vmatpush.msra.mxu0 %v1694
        %v1696 = vand.u32 %v1325, 4294901760
        %v1697 = vsub.f32 %v1325, %v1696
        %v1698 = vand.u32 %v1697, 4294901760
        %1699 = vmatpush.msra.mxu0 %v1698
        %v1700 = vand.u32 %v1324, 4294901760
        %v1701 = vsub.f32 %v1324, %v1700
        %v1702 = vand.u32 %v1701, 4294901760
        %1703 = vmatpush.msra.mxu0 %v1702
        %v1704 = vand.u32 %v1323, 4294901760
        %v1705 = vsub.f32 %v1323, %v1704
        %v1706 = vand.u32 %v1705, 4294901760
        %1707 = vmatpush.msra.mxu0 %v1706
        %v1708 = vand.u32 %v1322, 4294901760
        %v1709 = vsub.f32 %v1322, %v1708
        %v1710 = vand.u32 %v1709, 4294901760
        %1711 = vmatpush.msra.mxu0 %v1710
        %v1712 = vand.u32 %v1321, 4294901760
        %v1713 = vsub.f32 %v1321, %v1712
        %v1714 = vand.u32 %v1713, 4294901760
        %1715 = vmatpush.msra.mxu0 %v1714
        %v1716 = vand.u32 %v1320, 4294901760
        %v1717 = vsub.f32 %v1320, %v1716
        %v1718 = vand.u32 %v1717, 4294901760
        %1719 = vmatpush.msra.mxu0 %v1718
        %v1720 = vand.u32 %v412, 4294901760
        %1721 = vmatmul.f32.gmra.mxu0 %v1720
        %v1722 = vpop.f32.mrf.mxu0
        %v1723 = vadd.f32 %v1636, %v1722
        %v1724 = vand.u32 %v414, 4294901760
        %1725 = vmatmul.f32.gmra.mxu0 %v1724
        %v1726 = vpop.f32.mrf.mxu0
        %v1727 = vadd.f32 %v1642, %v1726
        %v1728 = vand.u32 %v416, 4294901760
        %1729 = vmatmul.f32.gmra.mxu0 %v1728
        %v1730 = vpop.f32.mrf.mxu0
        %v1731 = vadd.f32 %v1648, %v1730
        %v1732 = vand.u32 %v418, 4294901760
        %1733 = vmatmul.f32.gmra.mxu0 %v1732
        %v1734 = vpop.f32.mrf.mxu0
        %v1735 = vadd.f32 %v1654, %v1734
        %1736 = vdwg.mxu0
        %v1737 = vand.u32 %v1335, 4294901760
        %1738 = vmatpush.msra.mxu0 %v1737
        %v1739 = vand.u32 %v1334, 4294901760
        %1740 = vmatpush.msra.mxu0 %v1739
        %v1741 = vand.u32 %v1333, 4294901760
        %1742 = vmatpush.msra.mxu0 %v1741
        %v1743 = vand.u32 %v1332, 4294901760
        %1744 = vmatpush.msra.mxu0 %v1743
        %v1745 = vand.u32 %v1331, 4294901760
        %1746 = vmatpush.msra.mxu0 %v1745
        %v1747 = vand.u32 %v1330, 4294901760
        %1748 = vmatpush.msra.mxu0 %v1747
        %v1749 = vand.u32 %v1329, 4294901760
        %1750 = vmatpush.msra.mxu0 %v1749
        %v1751 = vand.u32 %v1328, 4294901760
        %1752 = vmatpush.msra.mxu0 %v1751
        %v1753 = vand.u32 %v1327, 4294901760
        %1754 = vmatpush.msra.mxu0 %v1753
        %v1755 = vand.u32 %v1326, 4294901760
        %1756 = vmatpush.msra.mxu0 %v1755
        %v1757 = vand.u32 %v1325, 4294901760
        %1758 = vmatpush.msra.mxu0 %v1757
        %v1759 = vand.u32 %v1324, 4294901760
        %1760 = vmatpush.msra.mxu0 %v1759
        %v1761 = vand.u32 %v1323, 4294901760
        %1762 = vmatpush.msra.mxu0 %v1761
        %v1763 = vand.u32 %v1322, 4294901760
        %1764 = vmatpush.msra.mxu0 %v1763
        %v1765 = vand.u32 %v1321, 4294901760
        %1766 = vmatpush.msra.mxu0 %v1765
        %v1767 = vand.u32 %v1320, 4294901760
        %1768 = vmatpush.msra.mxu0 %v1767
        %v1769 = vand.u32 %v412, 4294901760
        %1770 = vmatmul.f32.gmra.mxu0 %v1769
        %v1771 = vpop.f32.mrf.mxu0
        %v1772 = vadd.f32 %v1723, %v1771
        %v1773 = vand.u32 %v414, 4294901760
        %1774 = vmatmul.f32.gmra.mxu0 %v1773
        %v1775 = vpop.f32.mrf.mxu0
        %v1776 = vadd.f32 %v1727, %v1775
        %v1777 = vand.u32 %v416, 4294901760
        %1778 = vmatmul.f32.gmra.mxu0 %v1777
        %v1779 = vpop.f32.mrf.mxu0
        %v1780 = vadd.f32 %v1731, %v1779
        %v1781 = vand.u32 %v418, 4294901760
        %1782 = vmatmul.f32.gmra.mxu0 %v1781
        %v1783 = vpop.f32.mrf.mxu0
        %v1784 = vadd.f32 %v1735, %v1783
        %1785 = vdwg.mxu0
        %v1786 = vand.u32 %v1351, 4294901760
        %1787 = vmatpush.msra.mxu0 %v1786
        %v1788 = vand.u32 %v1350, 4294901760
        %1789 = vmatpush.msra.mxu0 %v1788
        %v1790 = vand.u32 %v1349, 4294901760
        %1791 = vmatpush.msra.mxu0 %v1790
        %v1792 = vand.u32 %v1348, 4294901760
        %1793 = vmatpush.msra.mxu0 %v1792
        %v1794 = vand.u32 %v1347, 4294901760
        %1795 = vmatpush.msra.mxu0 %v1794
        %v1796 = vand.u32 %v1346, 4294901760
        %1797 = vmatpush.msra.mxu0 %v1796
        %v1798 = vand.u32 %v1345, 4294901760
        %1799 = vmatpush.msra.mxu0 %v1798
        %v1800 = vand.u32 %v1344, 4294901760
        %1801 = vmatpush.msra.mxu0 %v1800
        %v1802 = vand.u32 %v1343, 4294901760
        %1803 = vmatpush.msra.mxu0 %v1802
        %v1804 = vand.u32 %v1342, 4294901760
        %1805 = vmatpush.msra.mxu0 %v1804
        %v1806 = vand.u32 %v1341, 4294901760
        %1807 = vmatpush.msra.mxu0 %v1806
        %v1808 = vand.u32 %v1340, 4294901760
        %1809 = vmatpush.msra.mxu0 %v1808
        %v1810 = vand.u32 %v1339, 4294901760
        %1811 = vmatpush.msra.mxu0 %v1810
        %v1812 = vand.u32 %v1338, 4294901760
        %1813 = vmatpush.msra.mxu0 %v1812
        %v1814 = vand.u32 %v1337, 4294901760
        %1815 = vmatpush.msra.mxu0 %v1814
        %v1816 = vand.u32 %v1336, 4294901760
        %1817 = vmatpush.msra.mxu0 %v1816
        %v1818 = vand.u32 %v413, 4294901760
        %v1819 = vsub.f32 %v413, %v1818
        %v1820 = vand.u32 %v1819, 4294901760
        %v1821 = vsub.f32 %v1819, %v1820
        %v1822 = vand.u32 %v1821, 4294901760
        %1823 = vmatmul.f32.gmra.mxu0 %v1822
        %v1824 = vpop.f32.mrf.mxu0
        %v1825 = vadd.f32 %v1772, %v1824
        %v1826 = vand.u32 %v415, 4294901760
        %v1827 = vsub.f32 %v415, %v1826
        %v1828 = vand.u32 %v1827, 4294901760
        %v1829 = vsub.f32 %v1827, %v1828
        %v1830 = vand.u32 %v1829, 4294901760
        %1831 = vmatmul.f32.gmra.mxu0 %v1830
        %v1832 = vpop.f32.mrf.mxu0
        %v1833 = vadd.f32 %v1776, %v1832
        %v1834 = vand.u32 %v417, 4294901760
        %v1835 = vsub.f32 %v417, %v1834
        %v1836 = vand.u32 %v1835, 4294901760
        %v1837 = vsub.f32 %v1835, %v1836
        %v1838 = vand.u32 %v1837, 4294901760
        %1839 = vmatmul.f32.gmra.mxu0 %v1838
        %v1840 = vpop.f32.mrf.mxu0
        %v1841 = vadd.f32 %v1780, %v1840
        %v1842 = vand.u32 %v419, 4294901760
        %v1843 = vsub.f32 %v419, %v1842
        %v1844 = vand.u32 %v1843, 4294901760
        %v1845 = vsub.f32 %v1843, %v1844
        %v1846 = vand.u32 %v1845, 4294901760
        %1847 = vmatmul.f32.gmra.mxu0 %v1846
        %v1848 = vpop.f32.mrf.mxu0
        %v1849 = vadd.f32 %v1784, %v1848
        %1850 = vdwg.mxu0
        %v1851 = vand.u32 %v1351, 4294901760
        %v1852 = vsub.f32 %v1351, %v1851
        %v1853 = vand.u32 %v1852, 4294901760
        %v1854 = vsub.f32 %v1852, %v1853
        %v1855 = vand.u32 %v1854, 4294901760
        %1856 = vmatpush.msra.mxu0 %v1855
        %v1857 = vand.u32 %v1350, 4294901760
        %v1858 = vsub.f32 %v1350, %v1857
        %v1859 = vand.u32 %v1858, 4294901760
        %v1860 = vsub.f32 %v1858, %v1859
        %v1861 = vand.u32 %v1860, 4294901760
        %1862 = vmatpush.msra.mxu0 %v1861
        %v1863 = vand.u32 %v1349, 4294901760
        %v1864 = vsub.f32 %v1349, %v1863
        %v1865 = vand.u32 %v1864, 4294901760
        %v1866 = vsub.f32 %v1864, %v1865
        %v1867 = vand.u32 %v1866, 4294901760
        %1868 = vmatpush.msra.mxu0 %v1867
        %v1869 = vand.u32 %v1348, 4294901760
        %v1870 = vsub.f32 %v1348, %v1869
        %v1871 = vand.u32 %v1870, 4294901760
        %v1872 = vsub.f32 %v1870, %v1871
        %v1873 = vand.u32 %v1872, 4294901760
        %1874 = vmatpush.msra.mxu0 %v1873
        %v1875 = vand.u32 %v1347, 4294901760
        %v1876 = vsub.f32 %v1347, %v1875
        %v1877 = vand.u32 %v1876, 4294901760
        %v1878 = vsub.f32 %v1876, %v1877
        %v1879 = vand.u32 %v1878, 4294901760
        %1880 = vmatpush.msra.mxu0 %v1879
        %v1881 = vand.u32 %v1346, 4294901760
        %v1882 = vsub.f32 %v1346, %v1881
        %v1883 = vand.u32 %v1882, 4294901760
        %v1884 = vsub.f32 %v1882, %v1883
        %v1885 = vand.u32 %v1884, 4294901760
        %1886 = vmatpush.msra.mxu0 %v1885
        %v1887 = vand.u32 %v1345, 4294901760
        %v1888 = vsub.f32 %v1345, %v1887
        %v1889 = vand.u32 %v1888, 4294901760
        %v1890 = vsub.f32 %v1888, %v1889
        %v1891 = vand.u32 %v1890, 4294901760
        %1892 = vmatpush.msra.mxu0 %v1891
        %v1893 = vand.u32 %v1344, 4294901760
        %v1894 = vsub.f32 %v1344, %v1893
        %v1895 = vand.u32 %v1894, 4294901760
        %v1896 = vsub.f32 %v1894, %v1895
        %v1897 = vand.u32 %v1896, 4294901760
        %1898 = vmatpush.msra.mxu0 %v1897
        %v1899 = vand.u32 %v1343, 4294901760
        %v1900 = vsub.f32 %v1343, %v1899
        %v1901 = vand.u32 %v1900, 4294901760
        %v1902 = vsub.f32 %v1900, %v1901
        %v1903 = vand.u32 %v1902, 4294901760
        %1904 = vmatpush.msra.mxu0 %v1903
        %v1905 = vand.u32 %v1342, 4294901760
        %v1906 = vsub.f32 %v1342, %v1905
        %v1907 = vand.u32 %v1906, 4294901760
        %v1908 = vsub.f32 %v1906, %v1907
        %v1909 = vand.u32 %v1908, 4294901760
        %1910 = vmatpush.msra.mxu0 %v1909
        %v1911 = vand.u32 %v1341, 4294901760
        %v1912 = vsub.f32 %v1341, %v1911
        %v1913 = vand.u32 %v1912, 4294901760
        %v1914 = vsub.f32 %v1912, %v1913
        %v1915 = vand.u32 %v1914, 4294901760
        %1916 = vmatpush.msra.mxu0 %v1915
        %v1917 = vand.u32 %v1340, 4294901760
        %v1918 = vsub.f32 %v1340, %v1917
        %v1919 = vand.u32 %v1918, 4294901760
        %v1920 = vsub.f32 %v1918, %v1919
        %v1921 = vand.u32 %v1920, 4294901760
        %1922 = vmatpush.msra.mxu0 %v1921
        %v1923 = vand.u32 %v1339, 4294901760
        %v1924 = vsub.f32 %v1339, %v1923
        %v1925 = vand.u32 %v1924, 4294901760
        %v1926 = vsub.f32 %v1924, %v1925
        %v1927 = vand.u32 %v1926, 4294901760
        %1928 = vmatpush.msra.mxu0 %v1927
        %v1929 = vand.u32 %v1338, 4294901760
        %v1930 = vsub.f32 %v1338, %v1929
        %v1931 = vand.u32 %v1930, 4294901760
        %v1932 = vsub.f32 %v1930, %v1931
        %v1933 = vand.u32 %v1932, 4294901760
        %1934 = vmatpush.msra.mxu0 %v1933
        %v1935 = vand.u32 %v1337, 4294901760
        %v1936 = vsub.f32 %v1337, %v1935
        %v1937 = vand.u32 %v1936, 4294901760
        %v1938 = vsub.f32 %v1936, %v1937
        %v1939 = vand.u32 %v1938, 4294901760
        %1940 = vmatpush.msra.mxu0 %v1939
        %v1941 = vand.u32 %v1336, 4294901760
        %v1942 = vsub.f32 %v1336, %v1941
        %v1943 = vand.u32 %v1942, 4294901760
        %v1944 = vsub.f32 %v1942, %v1943
        %v1945 = vand.u32 %v1944, 4294901760
        %1946 = vmatpush.msra.mxu0 %v1945
        %v1947 = vand.u32 %v413, 4294901760
        %1948 = vmatmul.f32.gmra.mxu0 %v1947
        %v1949 = vpop.f32.mrf.mxu0
        %v1950 = vadd.f32 %v1825, %v1949
        %v1951 = vand.u32 %v415, 4294901760
        %1952 = vmatmul.f32.gmra.mxu0 %v1951
        %v1953 = vpop.f32.mrf.mxu0
        %v1954 = vadd.f32 %v1833, %v1953
        %v1955 = vand.u32 %v417, 4294901760
        %1956 = vmatmul.f32.gmra.mxu0 %v1955
        %v1957 = vpop.f32.mrf.mxu0
        %v1958 = vadd.f32 %v1841, %v1957
        %v1959 = vand.u32 %v419, 4294901760
        %1960 = vmatmul.f32.gmra.mxu0 %v1959
        %v1961 = vpop.f32.mrf.mxu0
        %v1962 = vadd.f32 %v1849, %v1961
        %1963 = vdwg.mxu0
        %v1964 = vand.u32 %v1351, 4294901760
        %v1965 = vsub.f32 %v1351, %v1964
        %1966 = vmatpush.msra.mxu0 %v1965
        %v1967 = vand.u32 %v1350, 4294901760
        %v1968 = vsub.f32 %v1350, %v1967
        %1969 = vmatpush.msra.mxu0 %v1968
        %v1970 = vand.u32 %v1349, 4294901760
        %v1971 = vsub.f32 %v1349, %v1970
        %1972 = vmatpush.msra.mxu0 %v1971
        %v1973 = vand.u32 %v1348, 4294901760
        %v1974 = vsub.f32 %v1348, %v1973
        %1975 = vmatpush.msra.mxu0 %v1974
        %v1976 = vand.u32 %v1347, 4294901760
        %v1977 = vsub.f32 %v1347, %v1976
        %1978 = vmatpush.msra.mxu0 %v1977
        %v1979 = vand.u32 %v1346, 4294901760
        %v1980 = vsub.f32 %v1346, %v1979
        %1981 = vmatpush.msra.mxu0 %v1980
        %v1982 = vand.u32 %v1345, 4294901760
        %v1983 = vsub.f32 %v1345, %v1982
        %1984 = vmatpush.msra.mxu0 %v1983
        %v1985 = vand.u32 %v1344, 4294901760
        %v1986 = vsub.f32 %v1344, %v1985
        %1987 = vmatpush.msra.mxu0 %v1986
        %v1988 = vand.u32 %v1343, 4294901760
        %v1989 = vsub.f32 %v1343, %v1988
        %1990 = vmatpush.msra.mxu0 %v1989
        %v1991 = vand.u32 %v1342, 4294901760
        %v1992 = vsub.f32 %v1342, %v1991
        %1993 = vmatpush.msra.mxu0 %v1992
        %v1994 = vand.u32 %v1341, 4294901760
        %v1995 = vsub.f32 %v1341, %v1994
        %1996 = vmatpush.msra.mxu0 %v1995
        %v1997 = vand.u32 %v1340, 4294901760
        %v1998 = vsub.f32 %v1340, %v1997
        %1999 = vmatpush.msra.mxu0 %v1998
        %v2000 = vand.u32 %v1339, 4294901760
        %v2001 = vsub.f32 %v1339, %v2000
        %2002 = vmatpush.msra.mxu0 %v2001
        %v2003 = vand.u32 %v1338, 4294901760
        %v2004 = vsub.f32 %v1338, %v2003
        %2005 = vmatpush.msra.mxu0 %v2004
        %v2006 = vand.u32 %v1337, 4294901760
        %v2007 = vsub.f32 %v1337, %v2006
        %2008 = vmatpush.msra.mxu0 %v2007
        %v2009 = vand.u32 %v1336, 4294901760
        %v2010 = vsub.f32 %v1336, %v2009
        %2011 = vmatpush.msra.mxu0 %v2010
        %v2012 = vand.u32 %v413, 4294901760
        %v2013 = vsub.f32 %v413, %v2012
        %2014 = vmatmul.f32.gmra.mxu0 %v2013
        %v2015 = vpop.f32.mrf.mxu0
        %v2016 = vadd.f32 %v1950, %v2015
        %v2017 = vand.u32 %v415, 4294901760
        %v2018 = vsub.f32 %v415, %v2017
        %2019 = vmatmul.f32.gmra.mxu0 %v2018
        %v2020 = vpop.f32.mrf.mxu0
        %v2021 = vadd.f32 %v1954, %v2020
        %v2022 = vand.u32 %v417, 4294901760
        %v2023 = vsub.f32 %v417, %v2022
        %2024 = vmatmul.f32.gmra.mxu0 %v2023
        %v2025 = vpop.f32.mrf.mxu0
        %v2026 = vadd.f32 %v1958, %v2025
        %v2027 = vand.u32 %v419, 4294901760
        %v2028 = vsub.f32 %v419, %v2027
        %2029 = vmatmul.f32.gmra.mxu0 %v2028
        %v2030 = vpop.f32.mrf.mxu0
        %v2031 = vadd.f32 %v1962, %v2030
        %2032 = vdwg.mxu0
        %v2033 = vand.u32 %v1351, 4294901760
        %2034 = vmatpush.msra.mxu0 %v2033
        %v2035 = vand.u32 %v1350, 4294901760
        %2036 = vmatpush.msra.mxu0 %v2035
        %v2037 = vand.u32 %v1349, 4294901760
        %2038 = vmatpush.msra.mxu0 %v2037
        %v2039 = vand.u32 %v1348, 4294901760
        %2040 = vmatpush.msra.mxu0 %v2039
        %v2041 = vand.u32 %v1347, 4294901760
        %2042 = vmatpush.msra.mxu0 %v2041
        %v2043 = vand.u32 %v1346, 4294901760
        %2044 = vmatpush.msra.mxu0 %v2043
        %v2045 = vand.u32 %v1345, 4294901760
        %2046 = vmatpush.msra.mxu0 %v2045
        %v2047 = vand.u32 %v1344, 4294901760
        %2048 = vmatpush.msra.mxu0 %v2047
        %v2049 = vand.u32 %v1343, 4294901760
        %2050 = vmatpush.msra.mxu0 %v2049
        %v2051 = vand.u32 %v1342, 4294901760
        %2052 = vmatpush.msra.mxu0 %v2051
        %v2053 = vand.u32 %v1341, 4294901760
        %2054 = vmatpush.msra.mxu0 %v2053
        %v2055 = vand.u32 %v1340, 4294901760
        %2056 = vmatpush.msra.mxu0 %v2055
        %v2057 = vand.u32 %v1339, 4294901760
        %2058 = vmatpush.msra.mxu0 %v2057
        %v2059 = vand.u32 %v1338, 4294901760
        %2060 = vmatpush.msra.mxu0 %v2059
        %v2061 = vand.u32 %v1337, 4294901760
        %2062 = vmatpush.msra.mxu0 %v2061
        %v2063 = vand.u32 %v1336, 4294901760
        %2064 = vmatpush.msra.mxu0 %v2063
        %v2065 = vand.u32 %v413, 4294901760
        %v2066 = vsub.f32 %v413, %v2065
        %v2067 = vand.u32 %v2066, 4294901760
        %2068 = vmatmul.f32.gmra.mxu0 %v2067
        %v2069 = vpop.f32.mrf.mxu0
        %v2070 = vadd.f32 %v2016, %v2069
        %v2071 = vand.u32 %v415, 4294901760
        %v2072 = vsub.f32 %v415, %v2071
        %v2073 = vand.u32 %v2072, 4294901760
        %2074 = vmatmul.f32.gmra.mxu0 %v2073
        %v2075 = vpop.f32.mrf.mxu0
        %v2076 = vadd.f32 %v2021, %v2075
        %v2077 = vand.u32 %v417, 4294901760
        %v2078 = vsub.f32 %v417, %v2077
        %v2079 = vand.u32 %v2078, 4294901760
        %2080 = vmatmul.f32.gmra.mxu0 %v2079
        %v2081 = vpop.f32.mrf.mxu0
        %v2082 = vadd.f32 %v2026, %v2081
        %v2083 = vand.u32 %v419, 4294901760
        %v2084 = vsub.f32 %v419, %v2083
        %v2085 = vand.u32 %v2084, 4294901760
        %2086 = vmatmul.f32.gmra.mxu0 %v2085
        %v2087 = vpop.f32.mrf.mxu0
        %v2088 = vadd.f32 %v2031, %v2087
        %2089 = vdwg.mxu0
        %v2090 = vand.u32 %v1351, 4294901760
        %v2091 = vsub.f32 %v1351, %v2090
        %v2092 = vand.u32 %v2091, 4294901760
        %2093 = vmatpush.msra.mxu0 %v2092
        %v2094 = vand.u32 %v1350, 4294901760
        %v2095 = vsub.f32 %v1350, %v2094
        %v2096 = vand.u32 %v2095, 4294901760
        %2097 = vmatpush.msra.mxu0 %v2096
        %v2098 = vand.u32 %v1349, 4294901760
        %v2099 = vsub.f32 %v1349, %v2098
        %v2100 = vand.u32 %v2099, 4294901760
        %2101 = vmatpush.msra.mxu0 %v2100
        %v2102 = vand.u32 %v1348, 4294901760
        %v2103 = vsub.f32 %v1348, %v2102
        %v2104 = vand.u32 %v2103, 4294901760
        %2105 = vmatpush.msra.mxu0 %v2104
        %v2106 = vand.u32 %v1347, 4294901760
        %v2107 = vsub.f32 %v1347, %v2106
        %v2108 = vand.u32 %v2107, 4294901760
        %2109 = vmatpush.msra.mxu0 %v2108
        %v2110 = vand.u32 %v1346, 4294901760
        %v2111 = vsub.f32 %v1346, %v2110
        %v2112 = vand.u32 %v2111, 4294901760
        %2113 = vmatpush.msra.mxu0 %v2112
        %v2114 = vand.u32 %v1345, 4294901760
        %v2115 = vsub.f32 %v1345, %v2114
        %v2116 = vand.u32 %v2115, 4294901760
        %2117 = vmatpush.msra.mxu0 %v2116
        %v2118 = vand.u32 %v1344, 4294901760
        %v2119 = vsub.f32 %v1344, %v2118
        %v2120 = vand.u32 %v2119, 4294901760
        %2121 = vmatpush.msra.mxu0 %v2120
        %v2122 = vand.u32 %v1343, 4294901760
        %v2123 = vsub.f32 %v1343, %v2122
        %v2124 = vand.u32 %v2123, 4294901760
        %2125 = vmatpush.msra.mxu0 %v2124
        %v2126 = vand.u32 %v1342, 4294901760
        %v2127 = vsub.f32 %v1342, %v2126
        %v2128 = vand.u32 %v2127, 4294901760
        %2129 = vmatpush.msra.mxu0 %v2128
        %v2130 = vand.u32 %v1341, 4294901760
        %v2131 = vsub.f32 %v1341, %v2130
        %v2132 = vand.u32 %v2131, 4294901760
        %2133 = vmatpush.msra.mxu0 %v2132
        %v2134 = vand.u32 %v1340, 4294901760
        %v2135 = vsub.f32 %v1340, %v2134
        %v2136 = vand.u32 %v2135, 4294901760
        %2137 = vmatpush.msra.mxu0 %v2136
        %v2138 = vand.u32 %v1339, 4294901760
        %v2139 = vsub.f32 %v1339, %v2138
        %v2140 = vand.u32 %v2139, 4294901760
        %2141 = vmatpush.msra.mxu0 %v2140
        %v2142 = vand.u32 %v1338, 4294901760
        %v2143 = vsub.f32 %v1338, %v2142
        %v2144 = vand.u32 %v2143, 4294901760
        %2145 = vmatpush.msra.mxu0 %v2144
        %v2146 = vand.u32 %v1337, 4294901760
        %v2147 = vsub.f32 %v1337, %v2146
        %v2148 = vand.u32 %v2147, 4294901760
        %2149 = vmatpush.msra.mxu0 %v2148
        %v2150 = vand.u32 %v1336, 4294901760
        %v2151 = vsub.f32 %v1336, %v2150
        %v2152 = vand.u32 %v2151, 4294901760
        %2153 = vmatpush.msra.mxu0 %v2152
        %v2154 = vand.u32 %v413, 4294901760
        %2155 = vmatmul.f32.gmra.mxu0 %v2154
        %v2156 = vpop.f32.mrf.mxu0
        %v2157 = vadd.f32 %v2070, %v2156
        %v2158 = vand.u32 %v415, 4294901760
        %2159 = vmatmul.f32.gmra.mxu0 %v2158
        %v2160 = vpop.f32.mrf.mxu0
        %v2161 = vadd.f32 %v2076, %v2160
        %v2162 = vand.u32 %v417, 4294901760
        %2163 = vmatmul.f32.gmra.mxu0 %v2162
        %v2164 = vpop.f32.mrf.mxu0
        %v2165 = vadd.f32 %v2082, %v2164
        %v2166 = vand.u32 %v419, 4294901760
        %2167 = vmatmul.f32.gmra.mxu0 %v2166
        %v2168 = vpop.f32.mrf.mxu0
        %v2169 = vadd.f32 %v2088, %v2168
        %2170 = vdwg.mxu0
        %v2171 = vand.u32 %v1351, 4294901760
        %2172 = vmatpush.msra.mxu0 %v2171
        %v2173 = vand.u32 %v1350, 4294901760
        %2174 = vmatpush.msra.mxu0 %v2173
        %v2175 = vand.u32 %v1349, 4294901760
        %2176 = vmatpush.msra.mxu0 %v2175
        %v2177 = vand.u32 %v1348, 4294901760
        %2178 = vmatpush.msra.mxu0 %v2177
        %v2179 = vand.u32 %v1347, 4294901760
        %2180 = vmatpush.msra.mxu0 %v2179
        %v2181 = vand.u32 %v1346, 4294901760
        %2182 = vmatpush.msra.mxu0 %v2181
        %v2183 = vand.u32 %v1345, 4294901760
        %2184 = vmatpush.msra.mxu0 %v2183
        %v2185 = vand.u32 %v1344, 4294901760
        %2186 = vmatpush.msra.mxu0 %v2185
        %v2187 = vand.u32 %v1343, 4294901760
        %2188 = vmatpush.msra.mxu0 %v2187
        %v2189 = vand.u32 %v1342, 4294901760
        %2190 = vmatpush.msra.mxu0 %v2189
        %v2191 = vand.u32 %v1341, 4294901760
        %2192 = vmatpush.msra.mxu0 %v2191
        %v2193 = vand.u32 %v1340, 4294901760
        %2194 = vmatpush.msra.mxu0 %v2193
        %v2195 = vand.u32 %v1339, 4294901760
        %2196 = vmatpush.msra.mxu0 %v2195
        %v2197 = vand.u32 %v1338, 4294901760
        %2198 = vmatpush.msra.mxu0 %v2197
        %v2199 = vand.u32 %v1337, 4294901760
        %2200 = vmatpush.msra.mxu0 %v2199
        %v2201 = vand.u32 %v1336, 4294901760
        %2202 = vmatpush.msra.mxu0 %v2201
        %v2203 = vand.u32 %v413, 4294901760
        %2204 = vmatmul.f32.gmra.mxu0 %v2203
        %v2205 = vpop.f32.mrf.mxu0
        %v2206 = vadd.f32 %v2157, %v2205
        %v2207 = vand.u32 %v415, 4294901760
        %2208 = vmatmul.f32.gmra.mxu0 %v2207
        %v2209 = vpop.f32.mrf.mxu0
        %v2210 = vadd.f32 %v2161, %v2209
        %v2211 = vand.u32 %v417, 4294901760
        %2212 = vmatmul.f32.gmra.mxu0 %v2211
        %v2213 = vpop.f32.mrf.mxu0
        %v2214 = vadd.f32 %v2165, %v2213
        %v2215 = vand.u32 %v419, 4294901760
        %2216 = vmatmul.f32.gmra.mxu0 %v2215
        %v2217 = vpop.f32.mrf.mxu0
        %v2218 = vadd.f32 %v2169, %v2217
        %2219 = vdwg.mxu0
        %v2220 = vld [vmem:[%s5] sm:$0xff]
        %vm2221 = vcmask 261120
        %v2223 = vsel %vm2221, %v2220, 0
        %2225 = vmatpush.msra.mxu0 0.0
        %2226 = vmatpush.msra.mxu0 0.0
        %2227 = vmatpush.msra.mxu0 0.0
        %2228 = vmatpush.msra.mxu0 0.0
        %2229 = vmatpush.msra.mxu0 0.0
        %2230 = vmatpush.msra.mxu0 0.0
        %2231 = vmatpush.msra.mxu0 0.0
        %2232 = vmatpush.msra.mxu0 0.0
        %2233 = vmatpush.msra.mxu0 0.0
        %2234 = vmatpush.msra.mxu0 0.0
        %2235 = vmatpush.msra.mxu0 0.0
        %2236 = vmatpush.msra.mxu0 0.0
        %v2237 = vand.u32 %v1318, 4294901760
        %2238 = vmatpush.msra.mxu0 %v2237
        %v2239 = vand.u32 %v1314, 4294901760
        %2240 = vmatpush.msra.mxu0 %v2239
        %v2241 = vand.u32 %v1310, 4294901760
        %2242 = vmatpush.msra.mxu0 %v2241
        %v2243 = vand.u32 %v1306, 4294901760
        %2244 = vmatpush.msra.mxu0 %v2243
        %v2245 = vand.u32 %v2223, 4294901760
        %v2246 = vsub.f32 %v2223, %v2245
        %v2247 = vand.u32 %v2246, 4294901760
        %v2248 = vsub.f32 %v2246, %v2247
        %v2249 = vand.u32 %v2248, 4294901760
        %2250 = vmatmul.f32.gmra.mxu0 %v2249
        %v2251 = vpop.f32.mrf.mxu0
        %v2252 = vadd.f32 0.0, %v2251
        %2253 = vdwg.mxu0
        %2254 = vmatpush.msra.mxu0 0.0
        %2255 = vmatpush.msra.mxu0 0.0
        %2256 = vmatpush.msra.mxu0 0.0
        %2257 = vmatpush.msra.mxu0 0.0
        %2258 = vmatpush.msra.mxu0 0.0
        %2259 = vmatpush.msra.mxu0 0.0
        %2260 = vmatpush.msra.mxu0 0.0
        %2261 = vmatpush.msra.mxu0 0.0
        %2262 = vmatpush.msra.mxu0 0.0
        %2263 = vmatpush.msra.mxu0 0.0
        %2264 = vmatpush.msra.mxu0 0.0
        %2265 = vmatpush.msra.mxu0 0.0
        %v2266 = vand.u32 %v1318, 4294901760
        %v2267 = vsub.f32 %v1318, %v2266
        %v2268 = vand.u32 %v2267, 4294901760
        %v2269 = vsub.f32 %v2267, %v2268
        %v2270 = vand.u32 %v2269, 4294901760
        %2271 = vmatpush.msra.mxu0 %v2270
        %v2272 = vand.u32 %v1314, 4294901760
        %v2273 = vsub.f32 %v1314, %v2272
        %v2274 = vand.u32 %v2273, 4294901760
        %v2275 = vsub.f32 %v2273, %v2274
        %v2276 = vand.u32 %v2275, 4294901760
        %2277 = vmatpush.msra.mxu0 %v2276
        %v2278 = vand.u32 %v1310, 4294901760
        %v2279 = vsub.f32 %v1310, %v2278
        %v2280 = vand.u32 %v2279, 4294901760
        %v2281 = vsub.f32 %v2279, %v2280
        %v2282 = vand.u32 %v2281, 4294901760
        %2283 = vmatpush.msra.mxu0 %v2282
        %v2284 = vand.u32 %v1306, 4294901760
        %v2285 = vsub.f32 %v1306, %v2284
        %v2286 = vand.u32 %v2285, 4294901760
        %v2287 = vsub.f32 %v2285, %v2286
        %v2288 = vand.u32 %v2287, 4294901760
        %2289 = vmatpush.msra.mxu0 %v2288
        %v2290 = vand.u32 %v2223, 4294901760
        %2291 = vmatmul.f32.gmra.mxu0 %v2290
        %v2292 = vpop.f32.mrf.mxu0
        %v2293 = vadd.f32 %v2252, %v2292
        %2294 = vdwg.mxu0
        %2295 = vmatpush.msra.mxu0 0.0
        %2296 = vmatpush.msra.mxu0 0.0
        %2297 = vmatpush.msra.mxu0 0.0
        %2298 = vmatpush.msra.mxu0 0.0
        %2299 = vmatpush.msra.mxu0 0.0
        %2300 = vmatpush.msra.mxu0 0.0
        %2301 = vmatpush.msra.mxu0 0.0
        %2302 = vmatpush.msra.mxu0 0.0
        %2303 = vmatpush.msra.mxu0 0.0
        %2304 = vmatpush.msra.mxu0 0.0
        %2305 = vmatpush.msra.mxu0 0.0
        %2306 = vmatpush.msra.mxu0 0.0
        %v2307 = vand.u32 %v1318, 4294901760
        %v2308 = vsub.f32 %v1318, %v2307
        %2309 = vmatpush.msra.mxu0 %v2308
        %v2310 = vand.u32 %v1314, 4294901760
        %v2311 = vsub.f32 %v1314, %v2310
        %2312 = vmatpush.msra.mxu0 %v2311
        %v2313 = vand.u32 %v1310, 4294901760
        %v2314 = vsub.f32 %v1310, %v2313
        %2315 = vmatpush.msra.mxu0 %v2314
        %v2316 = vand.u32 %v1306, 4294901760
        %v2317 = vsub.f32 %v1306, %v2316
        %2318 = vmatpush.msra.mxu0 %v2317
        %v2319 = vand.u32 %v2223, 4294901760
        %v2320 = vsub.f32 %v2223, %v2319
        %2321 = vmatmul.f32.gmra.mxu0 %v2320
        %v2322 = vpop.f32.mrf.mxu0
        %v2323 = vadd.f32 %v2293, %v2322
        %2324 = vdwg.mxu0
        %2325 = vmatpush.msra.mxu0 0.0
        %2326 = vmatpush.msra.mxu0 0.0
        %2327 = vmatpush.msra.mxu0 0.0
        %2328 = vmatpush.msra.mxu0 0.0
        %2329 = vmatpush.msra.mxu0 0.0
        %2330 = vmatpush.msra.mxu0 0.0
        %2331 = vmatpush.msra.mxu0 0.0
        %2332 = vmatpush.msra.mxu0 0.0
        %2333 = vmatpush.msra.mxu0 0.0
        %2334 = vmatpush.msra.mxu0 0.0
        %2335 = vmatpush.msra.mxu0 0.0
        %2336 = vmatpush.msra.mxu0 0.0
        %v2337 = vand.u32 %v1318, 4294901760
        %2338 = vmatpush.msra.mxu0 %v2337
        %v2339 = vand.u32 %v1314, 4294901760
        %2340 = vmatpush.msra.mxu0 %v2339
        %v2341 = vand.u32 %v1310, 4294901760
        %2342 = vmatpush.msra.mxu0 %v2341
        %v2343 = vand.u32 %v1306, 4294901760
        %2344 = vmatpush.msra.mxu0 %v2343
        %v2345 = vand.u32 %v2223, 4294901760
        %v2346 = vsub.f32 %v2223, %v2345
        %v2347 = vand.u32 %v2346, 4294901760
        %2348 = vmatmul.f32.gmra.mxu0 %v2347
        %v2349 = vpop.f32.mrf.mxu0
        %v2350 = vadd.f32 %v2323, %v2349
        %2351 = vdwg.mxu0
        %2352 = vmatpush.msra.mxu0 0.0
        %2353 = vmatpush.msra.mxu0 0.0
        %2354 = vmatpush.msra.mxu0 0.0
        %2355 = vmatpush.msra.mxu0 0.0
        %2356 = vmatpush.msra.mxu0 0.0
        %2357 = vmatpush.msra.mxu0 0.0
        %2358 = vmatpush.msra.mxu0 0.0
        %2359 = vmatpush.msra.mxu0 0.0
        %2360 = vmatpush.msra.mxu0 0.0
        %2361 = vmatpush.msra.mxu0 0.0
        %2362 = vmatpush.msra.mxu0 0.0
        %2363 = vmatpush.msra.mxu0 0.0
        %v2364 = vand.u32 %v1318, 4294901760
        %v2365 = vsub.f32 %v1318, %v2364
        %v2366 = vand.u32 %v2365, 4294901760
        %2367 = vmatpush.msra.mxu0 %v2366
        %v2368 = vand.u32 %v1314, 4294901760
        %v2369 = vsub.f32 %v1314, %v2368
        %v2370 = vand.u32 %v2369, 4294901760
        %2371 = vmatpush.msra.mxu0 %v2370
        %v2372 = vand.u32 %v1310, 4294901760
        %v2373 = vsub.f32 %v1310, %v2372
        %v2374 = vand.u32 %v2373, 4294901760
        %2375 = vmatpush.msra.mxu0 %v2374
        %v2376 = vand.u32 %v1306, 4294901760
        %v2377 = vsub.f32 %v1306, %v2376
        %v2378 = vand.u32 %v2377, 4294901760
        %2379 = vmatpush.msra.mxu0 %v2378
        %v2380 = vand.u32 %v2223, 4294901760
        %2381 = vmatmul.f32.gmra.mxu0 %v2380
        %v2382 = vpop.f32.mrf.mxu0
        %v2383 = vadd.f32 %v2350, %v2382
        %2384 = vdwg.mxu0
        %2385 = vmatpush.msra.mxu0 0.0
        %2386 = vmatpush.msra.mxu0 0.0
        %2387 = vmatpush.msra.mxu0 0.0
        %2388 = vmatpush.msra.mxu0 0.0
        %2389 = vmatpush.msra.mxu0 0.0
        %2390 = vmatpush.msra.mxu0 0.0
        %2391 = vmatpush.msra.mxu0 0.0
        %2392 = vmatpush.msra.mxu0 0.0
        %2393 = vmatpush.msra.mxu0 0.0
        %2394 = vmatpush.msra.mxu0 0.0
        %2395 = vmatpush.msra.mxu0 0.0
        %2396 = vmatpush.msra.mxu0 0.0
        %v2397 = vand.u32 %v1318, 4294901760
        %2398 = vmatpush.msra.mxu0 %v2397
        %v2399 = vand.u32 %v1314, 4294901760
        %2400 = vmatpush.msra.mxu0 %v2399
        %v2401 = vand.u32 %v1310, 4294901760
        %2402 = vmatpush.msra.mxu0 %v2401
        %v2403 = vand.u32 %v1306, 4294901760
        %2404 = vmatpush.msra.mxu0 %v2403
        %v2405 = vand.u32 %v2223, 4294901760
        %2406 = vmatmul.f32.gmra.mxu0 %v2405
        %v2407 = vpop.f32.mrf.mxu0
        %v2408 = vadd.f32 %v2383, %v2407
        %2409 = vdwg.mxu0
        %v2410 = vld [vmem:[%s6] sm:$0xff]
        %2412 = vset.pattern.permute.xlu0 0
        %2413 = vperm.xlu0 %2412, %v2410
        %v2414 = vpop.permute.xlu0 %2413
        %v2416 = vmul.f32 %v2408, %v2414
        %v2417 = vld [vmem:[%s7] sm:$0xff]
        %2419 = vset.pattern.permute.xlu0 0
        %2420 = vperm.xlu0 %2419, %v2417
        %v2421 = vpop.permute.xlu0 %2420
        %v2423 = vadd.f32 %v2416, %v2421
        %v2424 = vadd.f32 %v2423, 3.0
        %v2425 = vmax.f32 %v2424, 0.0
        %v2426 = vmin.f32 %v2425, 6.0
        %v2427 = vmul.f32 %v2426, 0.16666667
        %v2428 = vmul.f32 %v2423, %v2427
        %2429 = vmatpush.msra.mxu0 0.0
        %2430 = vmatpush.msra.mxu0 0.0
        %2431 = vmatpush.msra.mxu0 0.0
        %2432 = vmatpush.msra.mxu0 0.0
        %2433 = vmatpush.msra.mxu0 0.0
        %2434 = vmatpush.msra.mxu0 0.0
        %2435 = vmatpush.msra.mxu0 0.0
        %2436 = vmatpush.msra.mxu0 0.0
        %2437 = vmatpush.msra.mxu0 0.0
        %2438 = vmatpush.msra.mxu0 0.0
        %2439 = vmatpush.msra.mxu0 0.0
        %2440 = vmatpush.msra.mxu0 0.0
        %v2441 = vand.u32 %v2218, 4294901760
        %2442 = vmatpush.msra.mxu0 %v2441
        %v2443 = vand.u32 %v2214, 4294901760
        %2444 = vmatpush.msra.mxu0 %v2443
        %v2445 = vand.u32 %v2210, 4294901760
        %2446 = vmatpush.msra.mxu0 %v2445
        %v2447 = vand.u32 %v2206, 4294901760
        %2448 = vmatpush.msra.mxu0 %v2447
        %v2449 = vand.u32 %v2223, 4294901760
        %v2450 = vsub.f32 %v2223, %v2449
        %v2451 = vand.u32 %v2450, 4294901760
        %v2452 = vsub.f32 %v2450, %v2451
        %v2453 = vand.u32 %v2452, 4294901760
        %2454 = vmatmul.f32.gmra.mxu0 %v2453
        %v2455 = vpop.f32.mrf.mxu0
        %v2456 = vadd.f32 0.0, %v2455
        %2457 = vdwg.mxu0
        %2458 = vmatpush.msra.mxu0 0.0
        %2459 = vmatpush.msra.mxu0 0.0
        %2460 = vmatpush.msra.mxu0 0.0
        %2461 = vmatpush.msra.mxu0 0.0
        %2462 = vmatpush.msra.mxu0 0.0
        %2463 = vmatpush.msra.mxu0 0.0
        %2464 = vmatpush.msra.mxu0 0.0
        %2465 = vmatpush.msra.mxu0 0.0
        %2466 = vmatpush.msra.mxu0 0.0
        %2467 = vmatpush.msra.mxu0 0.0
        %2468 = vmatpush.msra.mxu0 0.0
        %2469 = vmatpush.msra.mxu0 0.0
        %v2470 = vand.u32 %v2218, 4294901760
        %v2471 = vsub.f32 %v2218, %v2470
        %v2472 = vand.u32 %v2471, 4294901760
        %v2473 = vsub.f32 %v2471, %v2472
        %v2474 = vand.u32 %v2473, 4294901760
        %2475 = vmatpush.msra.mxu0 %v2474
        %v2476 = vand.u32 %v2214, 4294901760
        %v2477 = vsub.f32 %v2214, %v2476
        %v2478 = vand.u32 %v2477, 4294901760
        %v2479 = vsub.f32 %v2477, %v2478
        %v2480 = vand.u32 %v2479, 4294901760
        %2481 = vmatpush.msra.mxu0 %v2480
        %v2482 = vand.u32 %v2210, 4294901760
        %v2483 = vsub.f32 %v2210, %v2482
        %v2484 = vand.u32 %v2483, 4294901760
        %v2485 = vsub.f32 %v2483, %v2484
        %v2486 = vand.u32 %v2485, 4294901760
        %2487 = vmatpush.msra.mxu0 %v2486
        %v2488 = vand.u32 %v2206, 4294901760
        %v2489 = vsub.f32 %v2206, %v2488
        %v2490 = vand.u32 %v2489, 4294901760
        %v2491 = vsub.f32 %v2489, %v2490
        %v2492 = vand.u32 %v2491, 4294901760
        %2493 = vmatpush.msra.mxu0 %v2492
        %v2494 = vand.u32 %v2223, 4294901760
        %2495 = vmatmul.f32.gmra.mxu0 %v2494
        %v2496 = vpop.f32.mrf.mxu0
        %v2497 = vadd.f32 %v2456, %v2496
        %2498 = vdwg.mxu0
        %2499 = vmatpush.msra.mxu0 0.0
        %2500 = vmatpush.msra.mxu0 0.0
        %2501 = vmatpush.msra.mxu0 0.0
        %2502 = vmatpush.msra.mxu0 0.0
        %2503 = vmatpush.msra.mxu0 0.0
        %2504 = vmatpush.msra.mxu0 0.0
        %2505 = vmatpush.msra.mxu0 0.0
        %2506 = vmatpush.msra.mxu0 0.0
        %2507 = vmatpush.msra.mxu0 0.0
        %2508 = vmatpush.msra.mxu0 0.0
        %2509 = vmatpush.msra.mxu0 0.0
        %2510 = vmatpush.msra.mxu0 0.0
        %v2511 = vand.u32 %v2218, 4294901760
        %v2512 = vsub.f32 %v2218, %v2511
        %2513 = vmatpush.msra.mxu0 %v2512
        %v2514 = vand.u32 %v2214, 4294901760
        %v2515 = vsub.f32 %v2214, %v2514
        %2516 = vmatpush.msra.mxu0 %v2515
        %v2517 = vand.u32 %v2210, 4294901760
        %v2518 = vsub.f32 %v2210, %v2517
        %2519 = vmatpush.msra.mxu0 %v2518
        %v2520 = vand.u32 %v2206, 4294901760
        %v2521 = vsub.f32 %v2206, %v2520
        %2522 = vmatpush.msra.mxu0 %v2521
        %v2523 = vand.u32 %v2223, 4294901760
        %v2524 = vsub.f32 %v2223, %v2523
        %2525 = vmatmul.f32.gmra.mxu0 %v2524
        %v2526 = vpop.f32.mrf.mxu0
        %v2527 = vadd.f32 %v2497, %v2526
        %2528 = vdwg.mxu0
        %2529 = vmatpush.msra.mxu0 0.0
        %2530 = vmatpush.msra.mxu0 0.0
        %2531 = vmatpush.msra.mxu0 0.0
        %2532 = vmatpush.msra.mxu0 0.0
        %2533 = vmatpush.msra.mxu0 0.0
        %2534 = vmatpush.msra.mxu0 0.0
        %2535 = vmatpush.msra.mxu0 0.0
        %2536 = vmatpush.msra.mxu0 0.0
        %2537 = vmatpush.msra.mxu0 0.0
        %2538 = vmatpush.msra.mxu0 0.0
        %2539 = vmatpush.msra.mxu0 0.0
        %2540 = vmatpush.msra.mxu0 0.0
        %v2541 = vand.u32 %v2218, 4294901760
        %2542 = vmatpush.msra.mxu0 %v2541
        %v2543 = vand.u32 %v2214, 4294901760
        %2544 = vmatpush.msra.mxu0 %v2543
        %v2545 = vand.u32 %v2210, 4294901760
        %2546 = vmatpush.msra.mxu0 %v2545
        %v2547 = vand.u32 %v2206, 4294901760
        %2548 = vmatpush.msra.mxu0 %v2547
        %v2549 = vand.u32 %v2223, 4294901760
        %v2550 = vsub.f32 %v2223, %v2549
        %v2551 = vand.u32 %v2550, 4294901760
        %2552 = vmatmul.f32.gmra.mxu0 %v2551
        %v2553 = vpop.f32.mrf.mxu0
        %v2554 = vadd.f32 %v2527, %v2553
        %2555 = vdwg.mxu0
        %2556 = vmatpush.msra.mxu0 0.0
        %2557 = vmatpush.msra.mxu0 0.0
        %2558 = vmatpush.msra.mxu0 0.0
        %2559 = vmatpush.msra.mxu0 0.0
        %2560 = vmatpush.msra.mxu0 0.0
        %2561 = vmatpush.msra.mxu0 0.0
        %2562 = vmatpush.msra.mxu0 0.0
        %2563 = vmatpush.msra.mxu0 0.0
        %2564 = vmatpush.msra.mxu0 0.0
        %2565 = vmatpush.msra.mxu0 0.0
        %2566 = vmatpush.msra.mxu0 0.0
        %2567 = vmatpush.msra.mxu0 0.0
        %v2568 = vand.u32 %v2218, 4294901760
        %v2569 = vsub.f32 %v2218, %v2568
        %v2570 = vand.u32 %v2569, 4294901760
        %2571 = vmatpush.msra.mxu0 %v2570
        %v2572 = vand.u32 %v2214, 4294901760
        %v2573 = vsub.f32 %v2214, %v2572
        %v2574 = vand.u32 %v2573, 4294901760
        %2575 = vmatpush.msra.mxu0 %v2574
        %v2576 = vand.u32 %v2210, 4294901760
        %v2577 = vsub.f32 %v2210, %v2576
        %v2578 = vand.u32 %v2577, 4294901760
        %2579 = vmatpush.msra.mxu0 %v2578
        %v2580 = vand.u32 %v2206, 4294901760
        %v2581 = vsub.f32 %v2206, %v2580
        %v2582 = vand.u32 %v2581, 4294901760
        %2583 = vmatpush.msra.mxu0 %v2582
        %v2584 = vand.u32 %v2223, 4294901760
        %2585 = vmatmul.f32.gmra.mxu0 %v2584
        %v2586 = vpop.f32.mrf.mxu0
        %v2587 = vadd.f32 %v2554, %v2586
        %2588 = vdwg.mxu0
        %2589 = vmatpush.msra.mxu0 0.0
        %2590 = vmatpush.msra.mxu0 0.0
        %2591 = vmatpush.msra.mxu0 0.0
        %2592 = vmatpush.msra.mxu0 0.0
        %2593 = vmatpush.msra.mxu0 0.0
        %2594 = vmatpush.msra.mxu0 0.0
        %2595 = vmatpush.msra.mxu0 0.0
        %2596 = vmatpush.msra.mxu0 0.0
        %2597 = vmatpush.msra.mxu0 0.0
        %2598 = vmatpush.msra.mxu0 0.0
        %2599 = vmatpush.msra.mxu0 0.0
        %2600 = vmatpush.msra.mxu0 0.0
        %v2601 = vand.u32 %v2218, 4294901760
        %2602 = vmatpush.msra.mxu0 %v2601
        %v2603 = vand.u32 %v2214, 4294901760
        %2604 = vmatpush.msra.mxu0 %v2603
        %v2605 = vand.u32 %v2210, 4294901760
        %2606 = vmatpush.msra.mxu0 %v2605
        %v2607 = vand.u32 %v2206, 4294901760
        %2608 = vmatpush.msra.mxu0 %v2607
        %v2609 = vand.u32 %v2223, 4294901760
        %2610 = vmatmul.f32.gmra.mxu0 %v2609
        %v2611 = vpop.f32.mrf.mxu0
        %v2612 = vadd.f32 %v2587, %v2611
        %2613 = vdwg.mxu0
        %v2614 = vmul.f32 %v2612, %v2414
        %v2615 = vadd.f32 %v2614, %v2421
        %v2616 = vadd.f32 %v2615, 3.0
        %v2617 = vmax.f32 %v2616, 0.0
        %v2618 = vmin.f32 %v2617, 6.0
        %v2619 = vmul.f32 %v2618, 0.16666667
        %v2620 = vmul.f32 %v2615, %v2619
        %v2621 = vld [vmem:[%s8] sm:$0xff]
        %v2622 = vld [vmem:[%s8 + $0x8] sm:$0xff]
        %v2623 = vld [vmem:[%s8 + $0x10] sm:$0xff]
        %v2624 = vld [vmem:[%s8 + $0x18] sm:$0xff]
        %v2625 = vld [vmem:[%s9] sm:$0xff]
        %v2626 = vld [vmem:[%s9 + $0x8] sm:$0xff]
        %v2627 = vld [vmem:[%s9 + $0x10] sm:$0xff]
        %v2628 = vld [vmem:[%s9 + $0x18] sm:$0xff]
        %2630 = vset.pattern.permute.xlu0 0
        %2631 = vperm.xlu0 %2630, %v2625
        %v2632 = vpop.permute.xlu0 %2631
        %2635 = vset.pattern.permute.xlu0 0
        %2636 = vperm.xlu0 %2635, %v2626
        %v2637 = vpop.permute.xlu0 %2636
        %2640 = vset.pattern.permute.xlu0 0
        %2641 = vperm.xlu0 %2640, %v2627
        %v2642 = vpop.permute.xlu0 %2641
        %2645 = vset.pattern.permute.xlu0 0
        %2646 = vperm.xlu0 %2645, %v2628
        %v2647 = vpop.permute.xlu0 %2646
        %vm2649 = vcmask 64512
        %v2651 = vsel %vm2649, %v2621, 0
        %v2654 = vsel %vm2649, %v2622, 0
        %v2657 = vsel %vm2649, %v2623, 0
        %v2660 = vsel %vm2649, %v2624, 0
        %2662 = vmatpush.msra.mxu0 0.0
        %2663 = vmatpush.msra.mxu0 0.0
        %2664 = vmatpush.msra.mxu0 0.0
        %2665 = vmatpush.msra.mxu0 0.0
        %2666 = vmatpush.msra.mxu0 0.0
        %2667 = vmatpush.msra.mxu0 0.0
        %2668 = vmatpush.msra.mxu0 0.0
        %2669 = vmatpush.msra.mxu0 0.0
        %2670 = vmatpush.msra.mxu0 0.0
        %2671 = vmatpush.msra.mxu0 0.0
        %2672 = vmatpush.msra.mxu0 0.0
        %2673 = vmatpush.msra.mxu0 0.0
        %2674 = vmatpush.msra.mxu0 0.0
        %2675 = vmatpush.msra.mxu0 0.0
        %2676 = vmatpush.msra.mxu0 0.0
        %v2677 = vand.u32 %v2428, 4294901760
        %2678 = vmatpush.msra.mxu0 %v2677
        %v2679 = vand.u32 %v2651, 4294901760
        %v2680 = vsub.f32 %v2651, %v2679
        %v2681 = vand.u32 %v2680, 4294901760
        %v2682 = vsub.f32 %v2680, %v2681
        %v2683 = vand.u32 %v2682, 4294901760
        %2684 = vmatmul.f32.gmra.mxu0 %v2683
        %v2685 = vpop.f32.mrf.mxu0
        %v2686 = vadd.f32 %v2632, %v2685
        %v2687 = vand.u32 %v2654, 4294901760
        %v2688 = vsub.f32 %v2654, %v2687
        %v2689 = vand.u32 %v2688, 4294901760
        %v2690 = vsub.f32 %v2688, %v2689
        %v2691 = vand.u32 %v2690, 4294901760
        %2692 = vmatmul.f32.gmra.mxu0 %v2691
        %v2693 = vpop.f32.mrf.mxu0
        %v2694 = vadd.f32 %v2637, %v2693
        %v2695 = vand.u32 %v2657, 4294901760
        %v2696 = vsub.f32 %v2657, %v2695
        %v2697 = vand.u32 %v2696, 4294901760
        %v2698 = vsub.f32 %v2696, %v2697
        %v2699 = vand.u32 %v2698, 4294901760
        %2700 = vmatmul.f32.gmra.mxu0 %v2699
        %v2701 = vpop.f32.mrf.mxu0
        %v2702 = vadd.f32 %v2642, %v2701
        %v2703 = vand.u32 %v2660, 4294901760
        %v2704 = vsub.f32 %v2660, %v2703
        %v2705 = vand.u32 %v2704, 4294901760
        %v2706 = vsub.f32 %v2704, %v2705
        %v2707 = vand.u32 %v2706, 4294901760
        %2708 = vmatmul.f32.gmra.mxu0 %v2707
        %v2709 = vpop.f32.mrf.mxu0
        %v2710 = vadd.f32 %v2647, %v2709
        %2711 = vdwg.mxu0
        %2712 = vmatpush.msra.mxu0 0.0
        %2713 = vmatpush.msra.mxu0 0.0
        %2714 = vmatpush.msra.mxu0 0.0
        %2715 = vmatpush.msra.mxu0 0.0
        %2716 = vmatpush.msra.mxu0 0.0
        %2717 = vmatpush.msra.mxu0 0.0
        %2718 = vmatpush.msra.mxu0 0.0
        %2719 = vmatpush.msra.mxu0 0.0
        %2720 = vmatpush.msra.mxu0 0.0
        %2721 = vmatpush.msra.mxu0 0.0
        %2722 = vmatpush.msra.mxu0 0.0
        %2723 = vmatpush.msra.mxu0 0.0
        %2724 = vmatpush.msra.mxu0 0.0
        %2725 = vmatpush.msra.mxu0 0.0
        %2726 = vmatpush.msra.mxu0 0.0
        %v2727 = vand.u32 %v2428, 4294901760
        %v2728 = vsub.f32 %v2428, %v2727
        %v2729 = vand.u32 %v2728, 4294901760
        %v2730 = vsub.f32 %v2728, %v2729
        %v2731 = vand.u32 %v2730, 4294901760
        %2732 = vmatpush.msra.mxu0 %v2731
        %v2733 = vand.u32 %v2651, 4294901760
        %2734 = vmatmul.f32.gmra.mxu0 %v2733
        %v2735 = vpop.f32.mrf.mxu0
        %v2736 = vadd.f32 %v2686, %v2735
        %v2737 = vand.u32 %v2654, 4294901760
        %2738 = vmatmul.f32.gmra.mxu0 %v2737
        %v2739 = vpop.f32.mrf.mxu0
        %v2740 = vadd.f32 %v2694, %v2739
        %v2741 = vand.u32 %v2657, 4294901760
        %2742 = vmatmul.f32.gmra.mxu0 %v2741
        %v2743 = vpop.f32.mrf.mxu0
        %v2744 = vadd.f32 %v2702, %v2743
        %v2745 = vand.u32 %v2660, 4294901760
        %2746 = vmatmul.f32.gmra.mxu0 %v2745
        %v2747 = vpop.f32.mrf.mxu0
        %v2748 = vadd.f32 %v2710, %v2747
        %2749 = vdwg.mxu0
        %2750 = vmatpush.msra.mxu0 0.0
        %2751 = vmatpush.msra.mxu0 0.0
        %2752 = vmatpush.msra.mxu0 0.0
        %2753 = vmatpush.msra.mxu0 0.0
        %2754 = vmatpush.msra.mxu0 0.0
        %2755 = vmatpush.msra.mxu0 0.0
        %2756 = vmatpush.msra.mxu0 0.0
        %2757 = vmatpush.msra.mxu0 0.0
        %2758 = vmatpush.msra.mxu0 0.0
        %2759 = vmatpush.msra.mxu0 0.0
        %2760 = vmatpush.msra.mxu0 0.0
        %2761 = vmatpush.msra.mxu0 0.0
        %2762 = vmatpush.msra.mxu0 0.0
        %2763 = vmatpush.msra.mxu0 0.0
        %2764 = vmatpush.msra.mxu0 0.0
        %v2765 = vand.u32 %v2428, 4294901760
        %v2766 = vsub.f32 %v2428, %v2765
        %2767 = vmatpush.msra.mxu0 %v2766
        %v2768 = vand.u32 %v2651, 4294901760
        %v2769 = vsub.f32 %v2651, %v2768
        %2770 = vmatmul.f32.gmra.mxu0 %v2769
        %v2771 = vpop.f32.mrf.mxu0
        %v2772 = vadd.f32 %v2736, %v2771
        %v2773 = vand.u32 %v2654, 4294901760
        %v2774 = vsub.f32 %v2654, %v2773
        %2775 = vmatmul.f32.gmra.mxu0 %v2774
        %v2776 = vpop.f32.mrf.mxu0
        %v2777 = vadd.f32 %v2740, %v2776
        %v2778 = vand.u32 %v2657, 4294901760
        %v2779 = vsub.f32 %v2657, %v2778
        %2780 = vmatmul.f32.gmra.mxu0 %v2779
        %v2781 = vpop.f32.mrf.mxu0
        %v2782 = vadd.f32 %v2744, %v2781
        %v2783 = vand.u32 %v2660, 4294901760
        %v2784 = vsub.f32 %v2660, %v2783
        %2785 = vmatmul.f32.gmra.mxu0 %v2784
        %v2786 = vpop.f32.mrf.mxu0
        %v2787 = vadd.f32 %v2748, %v2786
        %2788 = vdwg.mxu0
        %2789 = vmatpush.msra.mxu0 0.0
        %2790 = vmatpush.msra.mxu0 0.0
        %2791 = vmatpush.msra.mxu0 0.0
        %2792 = vmatpush.msra.mxu0 0.0
        %2793 = vmatpush.msra.mxu0 0.0
        %2794 = vmatpush.msra.mxu0 0.0
        %2795 = vmatpush.msra.mxu0 0.0
        %2796 = vmatpush.msra.mxu0 0.0
        %2797 = vmatpush.msra.mxu0 0.0
        %2798 = vmatpush.msra.mxu0 0.0
        %2799 = vmatpush.msra.mxu0 0.0
        %2800 = vmatpush.msra.mxu0 0.0
        %2801 = vmatpush.msra.mxu0 0.0
        %2802 = vmatpush.msra.mxu0 0.0
        %2803 = vmatpush.msra.mxu0 0.0
        %v2804 = vand.u32 %v2428, 4294901760
        %2805 = vmatpush.msra.mxu0 %v2804
        %v2806 = vand.u32 %v2651, 4294901760
        %v2807 = vsub.f32 %v2651, %v2806
        %v2808 = vand.u32 %v2807, 4294901760
        %2809 = vmatmul.f32.gmra.mxu0 %v2808
        %v2810 = vpop.f32.mrf.mxu0
        %v2811 = vadd.f32 %v2772, %v2810
        %v2812 = vand.u32 %v2654, 4294901760
        %v2813 = vsub.f32 %v2654, %v2812
        %v2814 = vand.u32 %v2813, 4294901760
        %2815 = vmatmul.f32.gmra.mxu0 %v2814
        %v2816 = vpop.f32.mrf.mxu0
        %v2817 = vadd.f32 %v2777, %v2816
        %v2818 = vand.u32 %v2657, 4294901760
        %v2819 = vsub.f32 %v2657, %v2818
        %v2820 = vand.u32 %v2819, 4294901760
        %2821 = vmatmul.f32.gmra.mxu0 %v2820
        %v2822 = vpop.f32.mrf.mxu0
        %v2823 = vadd.f32 %v2782, %v2822
        %v2824 = vand.u32 %v2660, 4294901760
        %v2825 = vsub.f32 %v2660, %v2824
        %v2826 = vand.u32 %v2825, 4294901760
        %2827 = vmatmul.f32.gmra.mxu0 %v2826
        %v2828 = vpop.f32.mrf.mxu0
        %v2829 = vadd.f32 %v2787, %v2828
        %2830 = vdwg.mxu0
        %2831 = vmatpush.msra.mxu0 0.0
        %2832 = vmatpush.msra.mxu0 0.0
        %2833 = vmatpush.msra.mxu0 0.0
        %2834 = vmatpush.msra.mxu0 0.0
        %2835 = vmatpush.msra.mxu0 0.0
        %2836 = vmatpush.msra.mxu0 0.0
        %2837 = vmatpush.msra.mxu0 0.0
        %2838 = vmatpush.msra.mxu0 0.0
        %2839 = vmatpush.msra.mxu0 0.0
        %2840 = vmatpush.msra.mxu0 0.0
        %2841 = vmatpush.msra.mxu0 0.0
        %2842 = vmatpush.msra.mxu0 0.0
        %2843 = vmatpush.msra.mxu0 0.0
        %2844 = vmatpush.msra.mxu0 0.0
        %2845 = vmatpush.msra.mxu0 0.0
        %v2846 = vand.u32 %v2428, 4294901760
        %v2847 = vsub.f32 %v2428, %v2846
        %v2848 = vand.u32 %v2847, 4294901760
        %2849 = vmatpush.msra.mxu0 %v2848
        %v2850 = vand.u32 %v2651, 4294901760
        %2851 = vmatmul.f32.gmra.mxu0 %v2850
        %v2852 = vpop.f32.mrf.mxu0
        %v2853 = vadd.f32 %v2811, %v2852
        %v2854 = vand.u32 %v2654, 4294901760
        %2855 = vmatmul.f32.gmra.mxu0 %v2854
        %v2856 = vpop.f32.mrf.mxu0
        %v2857 = vadd.f32 %v2817, %v2856
        %v2858 = vand.u32 %v2657, 4294901760
        %2859 = vmatmul.f32.gmra.mxu0 %v2858
        %v2860 = vpop.f32.mrf.mxu0
        %v2861 = vadd.f32 %v2823, %v2860
        %v2862 = vand.u32 %v2660, 4294901760
        %2863 = vmatmul.f32.gmra.mxu0 %v2862
        %v2864 = vpop.f32.mrf.mxu0
        %v2865 = vadd.f32 %v2829, %v2864
        %2866 = vdwg.mxu0
        %2867 = vmatpush.msra.mxu0 0.0
        %2868 = vmatpush.msra.mxu0 0.0
        %2869 = vmatpush.msra.mxu0 0.0
        %2870 = vmatpush.msra.mxu0 0.0
        %2871 = vmatpush.msra.mxu0 0.0
        %2872 = vmatpush.msra.mxu0 0.0
        %2873 = vmatpush.msra.mxu0 0.0
        %2874 = vmatpush.msra.mxu0 0.0
        %2875 = vmatpush.msra.mxu0 0.0
        %2876 = vmatpush.msra.mxu0 0.0
        %2877 = vmatpush.msra.mxu0 0.0
        %2878 = vmatpush.msra.mxu0 0.0
        %2879 = vmatpush.msra.mxu0 0.0
        %2880 = vmatpush.msra.mxu0 0.0
        %2881 = vmatpush.msra.mxu0 0.0
        %v2882 = vand.u32 %v2428, 4294901760
        %2883 = vmatpush.msra.mxu0 %v2882
        %v2884 = vand.u32 %v2651, 4294901760
        %2885 = vmatmul.f32.gmra.mxu0 %v2884
        %v2886 = vpop.f32.mrf.mxu0
        %v2887 = vadd.f32 %v2853, %v2886
        %v2888 = vand.u32 %v2654, 4294901760
        %2889 = vmatmul.f32.gmra.mxu0 %v2888
        %v2890 = vpop.f32.mrf.mxu0
        %v2891 = vadd.f32 %v2857, %v2890
        %v2892 = vand.u32 %v2657, 4294901760
        %2893 = vmatmul.f32.gmra.mxu0 %v2892
        %v2894 = vpop.f32.mrf.mxu0
        %v2895 = vadd.f32 %v2861, %v2894
        %v2896 = vand.u32 %v2660, 4294901760
        %2897 = vmatmul.f32.gmra.mxu0 %v2896
        %v2898 = vpop.f32.mrf.mxu0
        %v2899 = vadd.f32 %v2865, %v2898
        %2900 = vdwg.mxu0
        %v2901 = vxor.u32 %v2887, 2147483648
        %v2902 = vxor.u32 %v2891, 2147483648
        %v2903 = vxor.u32 %v2895, 2147483648
        %v2904 = vxor.u32 %v2899, 2147483648
        %v2905 = vmul.f32 %v2901, 1.442695
        %v2906 = vpow.pop %v2905
        %v2907 = vmul.f32 %v2902, 1.442695
        %v2908 = vpow.pop %v2907
        %v2909 = vmul.f32 %v2903, 1.442695
        %v2910 = vpow.pop %v2909
        %v2911 = vmul.f32 %v2904, 1.442695
        %v2912 = vpow.pop %v2911
        %v2913 = vadd.f32 %v2906, 1.0
        %v2914 = vadd.f32 %v2908, 1.0
        %v2915 = vadd.f32 %v2910, 1.0
        %v2916 = vadd.f32 %v2912, 1.0
        %v2917 = vrcp.pop %v2913
        %v2918 = vmul.f32 %v2913, %v2917
        %v2919 = vsub.f32 1.0, %v2918
        %v2920 = vmul.f32 %v2917, %v2919
        %v2921 = vadd.f32 %v2917, %v2920
        %vm2922 = vweird.f32 %v2913
        %vm2923 = vweird.f32 %v2917
        %vm2924 = vmor %vm2922, %vm2923
        %v2925 = vsel %vm2924, %v2917, %v2921
        %v2926 = vand.u32 2147483647, %v2913
        %vm2927 = vcmp.eq.f32.partialorder %v2926, 8.507059e+37
        %v2928 = vand.u32 %v2913, 2147483648
        %v2929 = vor.u32 1.1754944e-38, %v2928
        %v2930 = vsel %vm2927, %v2929, %v2925
        %v2931 = vmul.f32 1.0, %v2930
        %v2932 = vrcp.pop %v2914
        %v2933 = vmul.f32 %v2914, %v2932
        %v2934 = vsub.f32 1.0, %v2933
        %v2935 = vmul.f32 %v2932, %v2934
        %v2936 = vadd.f32 %v2932, %v2935
        %vm2937 = vweird.f32 %v2914
        %vm2938 = vweird.f32 %v2932
        %vm2939 = vmor %vm2937, %vm2938
        %v2940 = vsel %vm2939, %v2932, %v2936
        %v2941 = vand.u32 2147483647, %v2914
        %vm2942 = vcmp.eq.f32.partialorder %v2941, 8.507059e+37
        %v2943 = vand.u32 %v2914, 2147483648
        %v2944 = vor.u32 1.1754944e-38, %v2943
        %v2945 = vsel %vm2942, %v2944, %v2940
        %v2946 = vmul.f32 1.0, %v2945
        %v2947 = vrcp.pop %v2915
        %v2948 = vmul.f32 %v2915, %v2947
        %v2949 = vsub.f32 1.0, %v2948
        %v2950 = vmul.f32 %v2947, %v2949
        %v2951 = vadd.f32 %v2947, %v2950
        %vm2952 = vweird.f32 %v2915
        %vm2953 = vweird.f32 %v2947
        %vm2954 = vmor %vm2952, %vm2953
        %v2955 = vsel %vm2954, %v2947, %v2951
        %v2956 = vand.u32 2147483647, %v2915
        %vm2957 = vcmp.eq.f32.partialorder %v2956, 8.507059e+37
        %v2958 = vand.u32 %v2915, 2147483648
        %v2959 = vor.u32 1.1754944e-38, %v2958
        %v2960 = vsel %vm2957, %v2959, %v2955
        %v2961 = vmul.f32 1.0, %v2960
        %v2962 = vrcp.pop %v2916
        %v2963 = vmul.f32 %v2916, %v2962
        %v2964 = vsub.f32 1.0, %v2963
        %v2965 = vmul.f32 %v2962, %v2964
        %v2966 = vadd.f32 %v2962, %v2965
        %vm2967 = vweird.f32 %v2916
        %vm2968 = vweird.f32 %v2962
        %vm2969 = vmor %vm2967, %vm2968
        %v2970 = vsel %vm2969, %v2962, %v2966
        %v2971 = vand.u32 2147483647, %v2916
        %vm2972 = vcmp.eq.f32.partialorder %v2971, 8.507059e+37
        %v2973 = vand.u32 %v2916, 2147483648
        %v2974 = vor.u32 1.1754944e-38, %v2973
        %v2975 = vsel %vm2972, %v2974, %v2970
        %v2976 = vmul.f32 1.0, %v2975
        %v2977 = vld [vmem:[%s10] sm:$0xff]
        %v2978 = vld [vmem:[%s10 + $0x8] sm:$0xff]
        %v2979 = vld [vmem:[%s10 + $0x10] sm:$0xff]
        %v2980 = vld [vmem:[%s10 + $0x18] sm:$0xff]
        %v2981 = vld [vmem:[%s11] sm:$0xff]
        %v2982 = vld [vmem:[%s11 + $0x8] sm:$0xff]
        %v2983 = vld [vmem:[%s11 + $0x10] sm:$0xff]
        %v2984 = vld [vmem:[%s11 + $0x18] sm:$0xff]
        %2986 = vset.pattern.permute.xlu0 0
        %2987 = vperm.xlu0 %2986, %v2981
        %v2988 = vpop.permute.xlu0 %2987
        %2991 = vset.pattern.permute.xlu0 0
        %2992 = vperm.xlu0 %2991, %v2982
        %v2993 = vpop.permute.xlu0 %2992
        %2996 = vset.pattern.permute.xlu0 0
        %2997 = vperm.xlu0 %2996, %v2983
        %v2998 = vpop.permute.xlu0 %2997
        %3001 = vset.pattern.permute.xlu0 0
        %3002 = vperm.xlu0 %3001, %v2984
        %v3003 = vpop.permute.xlu0 %3002
        %v3006 = vsel %vm2649, %v2977, 0
        %v3009 = vsel %vm2649, %v2978, 0
        %v3012 = vsel %vm2649, %v2979, 0
        %v3015 = vsel %vm2649, %v2980, 0
        %3017 = vmatpush.msra.mxu0 0.0
        %3018 = vmatpush.msra.mxu0 0.0
        %3019 = vmatpush.msra.mxu0 0.0
        %3020 = vmatpush.msra.mxu0 0.0
        %3021 = vmatpush.msra.mxu0 0.0
        %3022 = vmatpush.msra.mxu0 0.0
        %3023 = vmatpush.msra.mxu0 0.0
        %3024 = vmatpush.msra.mxu0 0.0
        %3025 = vmatpush.msra.mxu0 0.0
        %3026 = vmatpush.msra.mxu0 0.0
        %3027 = vmatpush.msra.mxu0 0.0
        %3028 = vmatpush.msra.mxu0 0.0
        %3029 = vmatpush.msra.mxu0 0.0
        %3030 = vmatpush.msra.mxu0 0.0
        %3031 = vmatpush.msra.mxu0 0.0
        %v3032 = vand.u32 %v2620, 4294901760
        %3033 = vmatpush.msra.mxu0 %v3032
        %v3034 = vand.u32 %v3006, 4294901760
        %v3035 = vsub.f32 %v3006, %v3034
        %v3036 = vand.u32 %v3035, 4294901760
        %v3037 = vsub.f32 %v3035, %v3036
        %v3038 = vand.u32 %v3037, 4294901760
        %3039 = vmatmul.f32.gmra.mxu0 %v3038
        %v3040 = vpop.f32.mrf.mxu0
        %v3041 = vadd.f32 %v2988, %v3040
        %v3042 = vand.u32 %v3009, 4294901760
        %v3043 = vsub.f32 %v3009, %v3042
        %v3044 = vand.u32 %v3043, 4294901760
        %v3045 = vsub.f32 %v3043, %v3044
        %v3046 = vand.u32 %v3045, 4294901760
        %3047 = vmatmul.f32.gmra.mxu0 %v3046
        %v3048 = vpop.f32.mrf.mxu0
        %v3049 = vadd.f32 %v2993, %v3048
        %v3050 = vand.u32 %v3012, 4294901760
        %v3051 = vsub.f32 %v3012, %v3050
        %v3052 = vand.u32 %v3051, 4294901760
        %v3053 = vsub.f32 %v3051, %v3052
        %v3054 = vand.u32 %v3053, 4294901760
        %3055 = vmatmul.f32.gmra.mxu0 %v3054
        %v3056 = vpop.f32.mrf.mxu0
        %v3057 = vadd.f32 %v2998, %v3056
        %v3058 = vand.u32 %v3015, 4294901760
        %v3059 = vsub.f32 %v3015, %v3058
        %v3060 = vand.u32 %v3059, 4294901760
        %v3061 = vsub.f32 %v3059, %v3060
        %v3062 = vand.u32 %v3061, 4294901760
        %3063 = vmatmul.f32.gmra.mxu0 %v3062
        %v3064 = vpop.f32.mrf.mxu0
        %v3065 = vadd.f32 %v3003, %v3064
        %3066 = vdwg.mxu0
        %3067 = vmatpush.msra.mxu0 0.0
        %3068 = vmatpush.msra.mxu0 0.0
        %3069 = vmatpush.msra.mxu0 0.0
        %3070 = vmatpush.msra.mxu0 0.0
        %3071 = vmatpush.msra.mxu0 0.0
        %3072 = vmatpush.msra.mxu0 0.0
        %3073 = vmatpush.msra.mxu0 0.0
        %3074 = vmatpush.msra.mxu0 0.0
        %3075 = vmatpush.msra.mxu0 0.0
        %3076 = vmatpush.msra.mxu0 0.0
        %3077 = vmatpush.msra.mxu0 0.0
        %3078 = vmatpush.msra.mxu0 0.0
        %3079 = vmatpush.msra.mxu0 0.0
        %3080 = vmatpush.msra.mxu0 0.0
        %3081 = vmatpush.msra.mxu0 0.0
        %v3082 = vand.u32 %v2620, 4294901760
        %v3083 = vsub.f32 %v2620, %v3082
        %v3084 = vand.u32 %v3083, 4294901760
        %v3085 = vsub.f32 %v3083, %v3084
        %v3086 = vand.u32 %v3085, 4294901760
        %3087 = vmatpush.msra.mxu0 %v3086
        %v3088 = vand.u32 %v3006, 4294901760
        %3089 = vmatmul.f32.gmra.mxu0 %v3088
        %v3090 = vpop.f32.mrf.mxu0
        %v3091 = vadd.f32 %v3041, %v3090
        %v3092 = vand.u32 %v3009, 4294901760
        %3093 = vmatmul.f32.gmra.mxu0 %v3092
        %v3094 = vpop.f32.mrf.mxu0
        %v3095 = vadd.f32 %v3049, %v3094
        %v3096 = vand.u32 %v3012, 4294901760
        %3097 = vmatmul.f32.gmra.mxu0 %v3096
        %v3098 = vpop.f32.mrf.mxu0
        %v3099 = vadd.f32 %v3057, %v3098
        %v3100 = vand.u32 %v3015, 4294901760
        %3101 = vmatmul.f32.gmra.mxu0 %v3100
        %v3102 = vpop.f32.mrf.mxu0
        %v3103 = vadd.f32 %v3065, %v3102
        %3104 = vdwg.mxu0
        %3105 = vmatpush.msra.mxu0 0.0
        %3106 = vmatpush.msra.mxu0 0.0
        %3107 = vmatpush.msra.mxu0 0.0
        %3108 = vmatpush.msra.mxu0 0.0
        %3109 = vmatpush.msra.mxu0 0.0
        %3110 = vmatpush.msra.mxu0 0.0
        %3111 = vmatpush.msra.mxu0 0.0
        %3112 = vmatpush.msra.mxu0 0.0
        %3113 = vmatpush.msra.mxu0 0.0
        %3114 = vmatpush.msra.mxu0 0.0
        %3115 = vmatpush.msra.mxu0 0.0
        %3116 = vmatpush.msra.mxu0 0.0
        %3117 = vmatpush.msra.mxu0 0.0
        %3118 = vmatpush.msra.mxu0 0.0
        %3119 = vmatpush.msra.mxu0 0.0
        %v3120 = vand.u32 %v2620, 4294901760
        %v3121 = vsub.f32 %v2620, %v3120
        %3122 = vmatpush.msra.mxu0 %v3121
        %v3123 = vand.u32 %v3006, 4294901760
        %v3124 = vsub.f32 %v3006, %v3123
        %3125 = vmatmul.f32.gmra.mxu0 %v3124
        %v3126 = vpop.f32.mrf.mxu0
        %v3127 = vadd.f32 %v3091, %v3126
        %v3128 = vand.u32 %v3009, 4294901760
        %v3129 = vsub.f32 %v3009, %v3128
        %3130 = vmatmul.f32.gmra.mxu0 %v3129
        %v3131 = vpop.f32.mrf.mxu0
        %v3132 = vadd.f32 %v3095, %v3131
        %v3133 = vand.u32 %v3012, 4294901760
        %v3134 = vsub.f32 %v3012, %v3133
        %3135 = vmatmul.f32.gmra.mxu0 %v3134
        %v3136 = vpop.f32.mrf.mxu0
        %v3137 = vadd.f32 %v3099, %v3136
        %v3138 = vand.u32 %v3015, 4294901760
        %v3139 = vsub.f32 %v3015, %v3138
        %3140 = vmatmul.f32.gmra.mxu0 %v3139
        %v3141 = vpop.f32.mrf.mxu0
        %v3142 = vadd.f32 %v3103, %v3141
        %3143 = vdwg.mxu0
        %3144 = vmatpush.msra.mxu0 0.0
        %3145 = vmatpush.msra.mxu0 0.0
        %3146 = vmatpush.msra.mxu0 0.0
        %3147 = vmatpush.msra.mxu0 0.0
        %3148 = vmatpush.msra.mxu0 0.0
        %3149 = vmatpush.msra.mxu0 0.0
        %3150 = vmatpush.msra.mxu0 0.0
        %3151 = vmatpush.msra.mxu0 0.0
        %3152 = vmatpush.msra.mxu0 0.0
        %3153 = vmatpush.msra.mxu0 0.0
        %3154 = vmatpush.msra.mxu0 0.0
        %3155 = vmatpush.msra.mxu0 0.0
        %3156 = vmatpush.msra.mxu0 0.0
        %3157 = vmatpush.msra.mxu0 0.0
        %3158 = vmatpush.msra.mxu0 0.0
        %v3159 = vand.u32 %v2620, 4294901760
        %3160 = vmatpush.msra.mxu0 %v3159
        %v3161 = vand.u32 %v3006, 4294901760
        %v3162 = vsub.f32 %v3006, %v3161
        %v3163 = vand.u32 %v3162, 4294901760
        %3164 = vmatmul.f32.gmra.mxu0 %v3163
        %v3165 = vpop.f32.mrf.mxu0
        %v3166 = vadd.f32 %v3127, %v3165
        %v3167 = vand.u32 %v3009, 4294901760
        %v3168 = vsub.f32 %v3009, %v3167
        %v3169 = vand.u32 %v3168, 4294901760
        %3170 = vmatmul.f32.gmra.mxu0 %v3169
        %v3171 = vpop.f32.mrf.mxu0
        %v3172 = vadd.f32 %v3132, %v3171
        %v3173 = vand.u32 %v3012, 4294901760
        %v3174 = vsub.f32 %v3012, %v3173
        %v3175 = vand.u32 %v3174, 4294901760
        %3176 = vmatmul.f32.gmra.mxu0 %v3175
        %v3177 = vpop.f32.mrf.mxu0
        %v3178 = vadd.f32 %v3137, %v3177
        %v3179 = vand.u32 %v3015, 4294901760
        %v3180 = vsub.f32 %v3015, %v3179
        %v3181 = vand.u32 %v3180, 4294901760
        %3182 = vmatmul.f32.gmra.mxu0 %v3181
        %v3183 = vpop.f32.mrf.mxu0
        %v3184 = vadd.f32 %v3142, %v3183
        %3185 = vdwg.mxu0
        %3186 = vmatpush.msra.mxu0 0.0
        %3187 = vmatpush.msra.mxu0 0.0
        %3188 = vmatpush.msra.mxu0 0.0
        %3189 = vmatpush.msra.mxu0 0.0
        %3190 = vmatpush.msra.mxu0 0.0
        %3191 = vmatpush.msra.mxu0 0.0
        %3192 = vmatpush.msra.mxu0 0.0
        %3193 = vmatpush.msra.mxu0 0.0
        %3194 = vmatpush.msra.mxu0 0.0
        %3195 = vmatpush.msra.mxu0 0.0
        %3196 = vmatpush.msra.mxu0 0.0
        %3197 = vmatpush.msra.mxu0 0.0
        %3198 = vmatpush.msra.mxu0 0.0
        %3199 = vmatpush.msra.mxu0 0.0
        %3200 = vmatpush.msra.mxu0 0.0
        %v3201 = vand.u32 %v2620, 4294901760
        %v3202 = vsub.f32 %v2620, %v3201
        %v3203 = vand.u32 %v3202, 4294901760
        %3204 = vmatpush.msra.mxu0 %v3203
        %v3205 = vand.u32 %v3006, 4294901760
        %3206 = vmatmul.f32.gmra.mxu0 %v3205
        %v3207 = vpop.f32.mrf.mxu0
        %v3208 = vadd.f32 %v3166, %v3207
        %v3209 = vand.u32 %v3009, 4294901760
        %3210 = vmatmul.f32.gmra.mxu0 %v3209
        %v3211 = vpop.f32.mrf.mxu0
        %v3212 = vadd.f32 %v3172, %v3211
        %v3213 = vand.u32 %v3012, 4294901760
        %3214 = vmatmul.f32.gmra.mxu0 %v3213
        %v3215 = vpop.f32.mrf.mxu0
        %v3216 = vadd.f32 %v3178, %v3215
        %v3217 = vand.u32 %v3015, 4294901760
        %3218 = vmatmul.f32.gmra.mxu0 %v3217
        %v3219 = vpop.f32.mrf.mxu0
        %v3220 = vadd.f32 %v3184, %v3219
        %3221 = vdwg.mxu0
        %3222 = vmatpush.msra.mxu0 0.0
        %3223 = vmatpush.msra.mxu0 0.0
        %3224 = vmatpush.msra.mxu0 0.0
        %3225 = vmatpush.msra.mxu0 0.0
        %3226 = vmatpush.msra.mxu0 0.0
        %3227 = vmatpush.msra.mxu0 0.0
        %3228 = vmatpush.msra.mxu0 0.0
        %3229 = vmatpush.msra.mxu0 0.0
        %3230 = vmatpush.msra.mxu0 0.0
        %3231 = vmatpush.msra.mxu0 0.0
        %3232 = vmatpush.msra.mxu0 0.0
        %3233 = vmatpush.msra.mxu0 0.0
        %3234 = vmatpush.msra.mxu0 0.0
        %3235 = vmatpush.msra.mxu0 0.0
        %3236 = vmatpush.msra.mxu0 0.0
        %v3237 = vand.u32 %v2620, 4294901760
        %3238 = vmatpush.msra.mxu0 %v3237
        %v3239 = vand.u32 %v3006, 4294901760
        %3240 = vmatmul.f32.gmra.mxu0 %v3239
        %v3241 = vpop.f32.mrf.mxu0
        %v3242 = vadd.f32 %v3208, %v3241
        %v3243 = vand.u32 %v3009, 4294901760
        %3244 = vmatmul.f32.gmra.mxu0 %v3243
        %v3245 = vpop.f32.mrf.mxu0
        %v3246 = vadd.f32 %v3212, %v3245
        %v3247 = vand.u32 %v3012, 4294901760
        %3248 = vmatmul.f32.gmra.mxu0 %v3247
        %v3249 = vpop.f32.mrf.mxu0
        %v3250 = vadd.f32 %v3216, %v3249
        %v3251 = vand.u32 %v3015, 4294901760
        %3252 = vmatmul.f32.gmra.mxu0 %v3251
        %v3253 = vpop.f32.mrf.mxu0
        %v3254 = vadd.f32 %v3220, %v3253
        %3255 = vdwg.mxu0
        %v3256 = vxor.u32 %v3242, 2147483648
        %v3257 = vxor.u32 %v3246, 2147483648
        %v3258 = vxor.u32 %v3250, 2147483648
        %v3259 = vxor.u32 %v3254, 2147483648
        %v3260 = vmul.f32 %v3256, 1.442695
        %v3261 = vpow.pop %v3260
        %v3262 = vmul.f32 %v3257, 1.442695
        %v3263 = vpow.pop %v3262
        %v3264 = vmul.f32 %v3258, 1.442695
        %v3265 = vpow.pop %v3264
        %v3266 = vmul.f32 %v3259, 1.442695
        %v3267 = vpow.pop %v3266
        %v3268 = vadd.f32 %v3261, 1.0
        %v3269 = vadd.f32 %v3263, 1.0
        %v3270 = vadd.f32 %v3265, 1.0
        %v3271 = vadd.f32 %v3267, 1.0
        %v3272 = vrcp.pop %v3268
        %v3273 = vmul.f32 %v3268, %v3272
        %v3274 = vsub.f32 1.0, %v3273
        %v3275 = vmul.f32 %v3272, %v3274
        %v3276 = vadd.f32 %v3272, %v3275
        %vm3277 = vweird.f32 %v3268
        %vm3278 = vweird.f32 %v3272
        %vm3279 = vmor %vm3277, %vm3278
        %v3280 = vsel %vm3279, %v3272, %v3276
        %v3281 = vand.u32 2147483647, %v3268
        %vm3282 = vcmp.eq.f32.partialorder %v3281, 8.507059e+37
        %v3283 = vand.u32 %v3268, 2147483648
        %v3284 = vor.u32 1.1754944e-38, %v3283
        %v3285 = vsel %vm3282, %v3284, %v3280
        %v3286 = vmul.f32 1.0, %v3285
        %v3287 = vrcp.pop %v3269
        %v3288 = vmul.f32 %v3269, %v3287
        %v3289 = vsub.f32 1.0, %v3288
        %v3290 = vmul.f32 %v3287, %v3289
        %v3291 = vadd.f32 %v3287, %v3290
        %vm3292 = vweird.f32 %v3269
        %vm3293 = vweird.f32 %v3287
        %vm3294 = vmor %vm3292, %vm3293
        %v3295 = vsel %vm3294, %v3287, %v3291
        %v3296 = vand.u32 2147483647, %v3269
        %vm3297 = vcmp.eq.f32.partialorder %v3296, 8.507059e+37
        %v3298 = vand.u32 %v3269, 2147483648
        %v3299 = vor.u32 1.1754944e-38, %v3298
        %v3300 = vsel %vm3297, %v3299, %v3295
        %v3301 = vmul.f32 1.0, %v3300
        %v3302 = vrcp.pop %v3270
        %v3303 = vmul.f32 %v3270, %v3302
        %v3304 = vsub.f32 1.0, %v3303
        %v3305 = vmul.f32 %v3302, %v3304
        %v3306 = vadd.f32 %v3302, %v3305
        %vm3307 = vweird.f32 %v3270
        %vm3308 = vweird.f32 %v3302
        %vm3309 = vmor %vm3307, %vm3308
        %v3310 = vsel %vm3309, %v3302, %v3306
        %v3311 = vand.u32 2147483647, %v3270
        %vm3312 = vcmp.eq.f32.partialorder %v3311, 8.507059e+37
        %v3313 = vand.u32 %v3270, 2147483648
        %v3314 = vor.u32 1.1754944e-38, %v3313
        %v3315 = vsel %vm3312, %v3314, %v3310
        %v3316 = vmul.f32 1.0, %v3315
        %v3317 = vrcp.pop %v3271
        %v3318 = vmul.f32 %v3271, %v3317
        %v3319 = vsub.f32 1.0, %v3318
        %v3320 = vmul.f32 %v3317, %v3319
        %v3321 = vadd.f32 %v3317, %v3320
        %vm3322 = vweird.f32 %v3271
        %vm3323 = vweird.f32 %v3317
        %vm3324 = vmor %vm3322, %vm3323
        %v3325 = vsel %vm3324, %v3317, %v3321
        %v3326 = vand.u32 2147483647, %v3271
        %vm3327 = vcmp.eq.f32.partialorder %v3326, 8.507059e+37
        %v3328 = vand.u32 %v3271, 2147483648
        %v3329 = vor.u32 1.1754944e-38, %v3328
        %v3330 = vsel %vm3327, %v3329, %v3325
        %v3331 = vmul.f32 1.0, %v3330
        %v3332 = vld [vmem:[%s3] sm:$0xff]
        %v3333 = vld [vmem:[%s3 + $0x8] sm:$0xff]
        %v3334 = vld [vmem:[%s3 + $0x10] sm:$0xff]
        %v3335 = vld [vmem:[%s3 + $0x18] sm:$0xff]
        %vm3336 = vcmask 130048
        %v3338 = vsel %vm3336, %v2931, 0
        %v3341 = vsel %vm3336, %v2946, 0
        %v3344 = vsel %vm3336, %v2961, 0
        %v3347 = vsel %vm3336, %v2976, 0
        %3349 = vmatpush.msra.mxu0 0.0
        %3350 = vmatpush.msra.mxu0 0.0
        %3351 = vmatpush.msra.mxu0 0.0
        %3352 = vmatpush.msra.mxu0 0.0
        %3353 = vmatpush.msra.mxu0 0.0
        %3354 = vmatpush.msra.mxu0 0.0
        %3355 = vmatpush.msra.mxu0 0.0
        %3356 = vmatpush.msra.mxu0 0.0
        %3357 = vmatpush.msra.mxu0 0.0
        %3358 = vmatpush.msra.mxu0 0.0
        %3359 = vmatpush.msra.mxu0 0.0
        %3360 = vmatpush.msra.mxu0 0.0
        %3361 = vmatpush.msra.mxu0 0.0
        %3362 = vmatpush.msra.mxu0 0.0
        %v3363 = vand.u32 %v3334, 4294901760
        %3364 = vmatpush.msra.mxu0 %v3363
        %v3365 = vand.u32 %v3332, 4294901760
        %3366 = vmatpush.msra.mxu0 %v3365
        %v3367 = vand.u32 %v3338, 4294901760
        %v3368 = vsub.f32 %v3338, %v3367
        %v3369 = vand.u32 %v3368, 4294901760
        %v3370 = vsub.f32 %v3368, %v3369
        %v3371 = vand.u32 %v3370, 4294901760
        %3372 = vmatmul.f32.gmra.mxu0 %v3371
        %v3373 = vpop.f32.mrf.mxu0
        %v3374 = vadd.f32 0.0, %v3373
        %v3375 = vand.u32 %v3341, 4294901760
        %v3376 = vsub.f32 %v3341, %v3375
        %v3377 = vand.u32 %v3376, 4294901760
        %v3378 = vsub.f32 %v3376, %v3377
        %v3379 = vand.u32 %v3378, 4294901760
        %3380 = vmatmul.f32.gmra.mxu0 %v3379
        %v3381 = vpop.f32.mrf.mxu0
        %v3382 = vadd.f32 0.0, %v3381
        %v3383 = vand.u32 %v3344, 4294901760
        %v3384 = vsub.f32 %v3344, %v3383
        %v3385 = vand.u32 %v3384, 4294901760
        %v3386 = vsub.f32 %v3384, %v3385
        %v3387 = vand.u32 %v3386, 4294901760
        %3388 = vmatmul.f32.gmra.mxu0 %v3387
        %v3389 = vpop.f32.mrf.mxu0
        %v3390 = vadd.f32 0.0, %v3389
        %v3391 = vand.u32 %v3347, 4294901760
        %v3392 = vsub.f32 %v3347, %v3391
        %v3393 = vand.u32 %v3392, 4294901760
        %v3394 = vsub.f32 %v3392, %v3393
        %v3395 = vand.u32 %v3394, 4294901760
        %3396 = vmatmul.f32.gmra.mxu0 %v3395
        %v3397 = vpop.f32.mrf.mxu0
        %v3398 = vadd.f32 0.0, %v3397
        %3399 = vdwg.mxu0
        %3400 = vmatpush.msra.mxu0 0.0
        %3401 = vmatpush.msra.mxu0 0.0
        %3402 = vmatpush.msra.mxu0 0.0
        %3403 = vmatpush.msra.mxu0 0.0
        %3404 = vmatpush.msra.mxu0 0.0
        %3405 = vmatpush.msra.mxu0 0.0
        %3406 = vmatpush.msra.mxu0 0.0
        %3407 = vmatpush.msra.mxu0 0.0
        %3408 = vmatpush.msra.mxu0 0.0
        %3409 = vmatpush.msra.mxu0 0.0
        %3410 = vmatpush.msra.mxu0 0.0
        %3411 = vmatpush.msra.mxu0 0.0
        %3412 = vmatpush.msra.mxu0 0.0
        %3413 = vmatpush.msra.mxu0 0.0
        %v3414 = vand.u32 %v3334, 4294901760
        %v3415 = vsub.f32 %v3334, %v3414
        %v3416 = vand.u32 %v3415, 4294901760
        %v3417 = vsub.f32 %v3415, %v3416
        %v3418 = vand.u32 %v3417, 4294901760
        %3419 = vmatpush.msra.mxu0 %v3418
        %v3420 = vand.u32 %v3332, 4294901760
        %v3421 = vsub.f32 %v3332, %v3420
        %v3422 = vand.u32 %v3421, 4294901760
        %v3423 = vsub.f32 %v3421, %v3422
        %v3424 = vand.u32 %v3423, 4294901760
        %3425 = vmatpush.msra.mxu0 %v3424
        %v3426 = vand.u32 %v3338, 4294901760
        %3427 = vmatmul.f32.gmra.mxu0 %v3426
        %v3428 = vpop.f32.mrf.mxu0
        %v3429 = vadd.f32 %v3374, %v3428
        %v3430 = vand.u32 %v3341, 4294901760
        %3431 = vmatmul.f32.gmra.mxu0 %v3430
        %v3432 = vpop.f32.mrf.mxu0
        %v3433 = vadd.f32 %v3382, %v3432
        %v3434 = vand.u32 %v3344, 4294901760
        %3435 = vmatmul.f32.gmra.mxu0 %v3434
        %v3436 = vpop.f32.mrf.mxu0
        %v3437 = vadd.f32 %v3390, %v3436
        %v3438 = vand.u32 %v3347, 4294901760
        %3439 = vmatmul.f32.gmra.mxu0 %v3438
        %v3440 = vpop.f32.mrf.mxu0
        %v3441 = vadd.f32 %v3398, %v3440
        %3442 = vdwg.mxu0
        %3443 = vmatpush.msra.mxu0 0.0
        %3444 = vmatpush.msra.mxu0 0.0
        %3445 = vmatpush.msra.mxu0 0.0
        %3446 = vmatpush.msra.mxu0 0.0
        %3447 = vmatpush.msra.mxu0 0.0
        %3448 = vmatpush.msra.mxu0 0.0
        %3449 = vmatpush.msra.mxu0 0.0
        %3450 = vmatpush.msra.mxu0 0.0
        %3451 = vmatpush.msra.mxu0 0.0
        %3452 = vmatpush.msra.mxu0 0.0
        %3453 = vmatpush.msra.mxu0 0.0
        %3454 = vmatpush.msra.mxu0 0.0
        %3455 = vmatpush.msra.mxu0 0.0
        %3456 = vmatpush.msra.mxu0 0.0
        %v3457 = vand.u32 %v3334, 4294901760
        %v3458 = vsub.f32 %v3334, %v3457
        %3459 = vmatpush.msra.mxu0 %v3458
        %v3460 = vand.u32 %v3332, 4294901760
        %v3461 = vsub.f32 %v3332, %v3460
        %3462 = vmatpush.msra.mxu0 %v3461
        %v3463 = vand.u32 %v3338, 4294901760
        %v3464 = vsub.f32 %v3338, %v3463
        %3465 = vmatmul.f32.gmra.mxu0 %v3464
        %v3466 = vpop.f32.mrf.mxu0
        %v3467 = vadd.f32 %v3429, %v3466
        %v3468 = vand.u32 %v3341, 4294901760
        %v3469 = vsub.f32 %v3341, %v3468
        %3470 = vmatmul.f32.gmra.mxu0 %v3469
        %v3471 = vpop.f32.mrf.mxu0
        %v3472 = vadd.f32 %v3433, %v3471
        %v3473 = vand.u32 %v3344, 4294901760
        %v3474 = vsub.f32 %v3344, %v3473
        %3475 = vmatmul.f32.gmra.mxu0 %v3474
        %v3476 = vpop.f32.mrf.mxu0
        %v3477 = vadd.f32 %v3437, %v3476
        %v3478 = vand.u32 %v3347, 4294901760
        %v3479 = vsub.f32 %v3347, %v3478
        %3480 = vmatmul.f32.gmra.mxu0 %v3479
        %v3481 = vpop.f32.mrf.mxu0
        %v3482 = vadd.f32 %v3441, %v3481
        %3483 = vdwg.mxu0
        %3484 = vmatpush.msra.mxu0 0.0
        %3485 = vmatpush.msra.mxu0 0.0
        %3486 = vmatpush.msra.mxu0 0.0
        %3487 = vmatpush.msra.mxu0 0.0
        %3488 = vmatpush.msra.mxu0 0.0
        %3489 = vmatpush.msra.mxu0 0.0
        %3490 = vmatpush.msra.mxu0 0.0
        %3491 = vmatpush.msra.mxu0 0.0
        %3492 = vmatpush.msra.mxu0 0.0
        %3493 = vmatpush.msra.mxu0 0.0
        %3494 = vmatpush.msra.mxu0 0.0
        %3495 = vmatpush.msra.mxu0 0.0
        %3496 = vmatpush.msra.mxu0 0.0
        %3497 = vmatpush.msra.mxu0 0.0
        %v3498 = vand.u32 %v3334, 4294901760
        %3499 = vmatpush.msra.mxu0 %v3498
        %v3500 = vand.u32 %v3332, 4294901760
        %3501 = vmatpush.msra.mxu0 %v3500
        %v3502 = vand.u32 %v3338, 4294901760
        %v3503 = vsub.f32 %v3338, %v3502
        %v3504 = vand.u32 %v3503, 4294901760
        %3505 = vmatmul.f32.gmra.mxu0 %v3504
        %v3506 = vpop.f32.mrf.mxu0
        %v3507 = vadd.f32 %v3467, %v3506
        %v3508 = vand.u32 %v3341, 4294901760
        %v3509 = vsub.f32 %v3341, %v3508
        %v3510 = vand.u32 %v3509, 4294901760
        %3511 = vmatmul.f32.gmra.mxu0 %v3510
        %v3512 = vpop.f32.mrf.mxu0
        %v3513 = vadd.f32 %v3472, %v3512
        %v3514 = vand.u32 %v3344, 4294901760
        %v3515 = vsub.f32 %v3344, %v3514
        %v3516 = vand.u32 %v3515, 4294901760
        %3517 = vmatmul.f32.gmra.mxu0 %v3516
        %v3518 = vpop.f32.mrf.mxu0
        %v3519 = vadd.f32 %v3477, %v3518
        %v3520 = vand.u32 %v3347, 4294901760
        %v3521 = vsub.f32 %v3347, %v3520
        %v3522 = vand.u32 %v3521, 4294901760
        %3523 = vmatmul.f32.gmra.mxu0 %v3522
        %v3524 = vpop.f32.mrf.mxu0
        %v3525 = vadd.f32 %v3482, %v3524
        %3526 = vdwg.mxu0
        %3527 = vmatpush.msra.mxu0 0.0
        %3528 = vmatpush.msra.mxu0 0.0
        %3529 = vmatpush.msra.mxu0 0.0
        %3530 = vmatpush.msra.mxu0 0.0
        %3531 = vmatpush.msra.mxu0 0.0
        %3532 = vmatpush.msra.mxu0 0.0
        %3533 = vmatpush.msra.mxu0 0.0
        %3534 = vmatpush.msra.mxu0 0.0
        %3535 = vmatpush.msra.mxu0 0.0
        %3536 = vmatpush.msra.mxu0 0.0
        %3537 = vmatpush.msra.mxu0 0.0
        %3538 = vmatpush.msra.mxu0 0.0
        %3539 = vmatpush.msra.mxu0 0.0
        %3540 = vmatpush.msra.mxu0 0.0
        %v3541 = vand.u32 %v3334, 4294901760
        %v3542 = vsub.f32 %v3334, %v3541
        %v3543 = vand.u32 %v3542, 4294901760
        %3544 = vmatpush.msra.mxu0 %v3543
        %v3545 = vand.u32 %v3332, 4294901760
        %v3546 = vsub.f32 %v3332, %v3545
        %v3547 = vand.u32 %v3546, 4294901760
        %3548 = vmatpush.msra.mxu0 %v3547
        %v3549 = vand.u32 %v3338, 4294901760
        %3550 = vmatmul.f32.gmra.mxu0 %v3549
        %v3551 = vpop.f32.mrf.mxu0
        %v3552 = vadd.f32 %v3507, %v3551
        %v3553 = vand.u32 %v3341, 4294901760
        %3554 = vmatmul.f32.gmra.mxu0 %v3553
        %v3555 = vpop.f32.mrf.mxu0
        %v3556 = vadd.f32 %v3513, %v3555
        %v3557 = vand.u32 %v3344, 4294901760
        %3558 = vmatmul.f32.gmra.mxu0 %v3557
        %v3559 = vpop.f32.mrf.mxu0
        %v3560 = vadd.f32 %v3519, %v3559
        %v3561 = vand.u32 %v3347, 4294901760
        %3562 = vmatmul.f32.gmra.mxu0 %v3561
        %v3563 = vpop.f32.mrf.mxu0
        %v3564 = vadd.f32 %v3525, %v3563
        %3565 = vdwg.mxu0
        %3566 = vmatpush.msra.mxu0 0.0
        %3567 = vmatpush.msra.mxu0 0.0
        %3568 = vmatpush.msra.mxu0 0.0
        %3569 = vmatpush.msra.mxu0 0.0
        %3570 = vmatpush.msra.mxu0 0.0
        %3571 = vmatpush.msra.mxu0 0.0
        %3572 = vmatpush.msra.mxu0 0.0
        %3573 = vmatpush.msra.mxu0 0.0
        %3574 = vmatpush.msra.mxu0 0.0
        %3575 = vmatpush.msra.mxu0 0.0
        %3576 = vmatpush.msra.mxu0 0.0
        %3577 = vmatpush.msra.mxu0 0.0
        %3578 = vmatpush.msra.mxu0 0.0
        %3579 = vmatpush.msra.mxu0 0.0
        %v3580 = vand.u32 %v3334, 4294901760
        %3581 = vmatpush.msra.mxu0 %v3580
        %v3582 = vand.u32 %v3332, 4294901760
        %3583 = vmatpush.msra.mxu0 %v3582
        %v3584 = vand.u32 %v3338, 4294901760
        %3585 = vmatmul.f32.gmra.mxu0 %v3584
        %v3586 = vpop.f32.mrf.mxu0
        %v3587 = vadd.f32 %v3552, %v3586
        %v3588 = vand.u32 %v3341, 4294901760
        %3589 = vmatmul.f32.gmra.mxu0 %v3588
        %v3590 = vpop.f32.mrf.mxu0
        %v3591 = vadd.f32 %v3556, %v3590
        %v3592 = vand.u32 %v3344, 4294901760
        %3593 = vmatmul.f32.gmra.mxu0 %v3592
        %v3594 = vpop.f32.mrf.mxu0
        %v3595 = vadd.f32 %v3560, %v3594
        %v3596 = vand.u32 %v3347, 4294901760
        %3597 = vmatmul.f32.gmra.mxu0 %v3596
        %v3598 = vpop.f32.mrf.mxu0
        %v3599 = vadd.f32 %v3564, %v3598
        %3600 = vdwg.mxu0
        %3601 = vmatpush.msra.mxu0 0.0
        %3602 = vmatpush.msra.mxu0 0.0
        %3603 = vmatpush.msra.mxu0 0.0
        %3604 = vmatpush.msra.mxu0 0.0
        %3605 = vmatpush.msra.mxu0 0.0
        %3606 = vmatpush.msra.mxu0 0.0
        %3607 = vmatpush.msra.mxu0 0.0
        %3608 = vmatpush.msra.mxu0 0.0
        %3609 = vmatpush.msra.mxu0 0.0
        %3610 = vmatpush.msra.mxu0 0.0
        %3611 = vmatpush.msra.mxu0 0.0
        %3612 = vmatpush.msra.mxu0 0.0
        %3613 = vmatpush.msra.mxu0 0.0
        %3614 = vmatpush.msra.mxu0 0.0
        %v3615 = vand.u32 %v3335, 4294901760
        %3616 = vmatpush.msra.mxu0 %v3615
        %v3617 = vand.u32 %v3333, 4294901760
        %3618 = vmatpush.msra.mxu0 %v3617
        %v3619 = vand.u32 %v3338, 4294901760
        %v3620 = vsub.f32 %v3338, %v3619
        %v3621 = vand.u32 %v3620, 4294901760
        %v3622 = vsub.f32 %v3620, %v3621
        %v3623 = vand.u32 %v3622, 4294901760
        %3624 = vmatmul.f32.gmra.mxu0 %v3623
        %v3625 = vpop.f32.mrf.mxu0
        %v3626 = vadd.f32 0.0, %v3625
        %v3627 = vand.u32 %v3341, 4294901760
        %v3628 = vsub.f32 %v3341, %v3627
        %v3629 = vand.u32 %v3628, 4294901760
        %v3630 = vsub.f32 %v3628, %v3629
        %v3631 = vand.u32 %v3630, 4294901760
        %3632 = vmatmul.f32.gmra.mxu0 %v3631
        %v3633 = vpop.f32.mrf.mxu0
        %v3634 = vadd.f32 0.0, %v3633
        %v3635 = vand.u32 %v3344, 4294901760
        %v3636 = vsub.f32 %v3344, %v3635
        %v3637 = vand.u32 %v3636, 4294901760
        %v3638 = vsub.f32 %v3636, %v3637
        %v3639 = vand.u32 %v3638, 4294901760
        %3640 = vmatmul.f32.gmra.mxu0 %v3639
        %v3641 = vpop.f32.mrf.mxu0
        %v3642 = vadd.f32 0.0, %v3641
        %v3643 = vand.u32 %v3347, 4294901760
        %v3644 = vsub.f32 %v3347, %v3643
        %v3645 = vand.u32 %v3644, 4294901760
        %v3646 = vsub.f32 %v3644, %v3645
        %v3647 = vand.u32 %v3646, 4294901760
        %3648 = vmatmul.f32.gmra.mxu0 %v3647
        %v3649 = vpop.f32.mrf.mxu0
        %v3650 = vadd.f32 0.0, %v3649
        %3651 = vdwg.mxu0
        %3652 = vmatpush.msra.mxu0 0.0
        %3653 = vmatpush.msra.mxu0 0.0
        %3654 = vmatpush.msra.mxu0 0.0
        %3655 = vmatpush.msra.mxu0 0.0
        %3656 = vmatpush.msra.mxu0 0.0
        %3657 = vmatpush.msra.mxu0 0.0
        %3658 = vmatpush.msra.mxu0 0.0
        %3659 = vmatpush.msra.mxu0 0.0
        %3660 = vmatpush.msra.mxu0 0.0
        %3661 = vmatpush.msra.mxu0 0.0
        %3662 = vmatpush.msra.mxu0 0.0
        %3663 = vmatpush.msra.mxu0 0.0
        %3664 = vmatpush.msra.mxu0 0.0
        %3665 = vmatpush.msra.mxu0 0.0
        %v3666 = vand.u32 %v3335, 4294901760
        %v3667 = vsub.f32 %v3335, %v3666
        %v3668 = vand.u32 %v3667, 4294901760
        %v3669 = vsub.f32 %v3667, %v3668
        %v3670 = vand.u32 %v3669, 4294901760
        %3671 = vmatpush.msra.mxu0 %v3670
        %v3672 = vand.u32 %v3333, 4294901760
        %v3673 = vsub.f32 %v3333, %v3672
        %v3674 = vand.u32 %v3673, 4294901760
        %v3675 = vsub.f32 %v3673, %v3674
        %v3676 = vand.u32 %v3675, 4294901760
        %3677 = vmatpush.msra.mxu0 %v3676
        %v3678 = vand.u32 %v3338, 4294901760
        %3679 = vmatmul.f32.gmra.mxu0 %v3678
        %v3680 = vpop.f32.mrf.mxu0
        %v3681 = vadd.f32 %v3626, %v3680
        %v3682 = vand.u32 %v3341, 4294901760
        %3683 = vmatmul.f32.gmra.mxu0 %v3682
        %v3684 = vpop.f32.mrf.mxu0
        %v3685 = vadd.f32 %v3634, %v3684
        %v3686 = vand.u32 %v3344, 4294901760
        %3687 = vmatmul.f32.gmra.mxu0 %v3686
        %v3688 = vpop.f32.mrf.mxu0
        %v3689 = vadd.f32 %v3642, %v3688
        %v3690 = vand.u32 %v3347, 4294901760
        %3691 = vmatmul.f32.gmra.mxu0 %v3690
        %v3692 = vpop.f32.mrf.mxu0
        %v3693 = vadd.f32 %v3650, %v3692
        %3694 = vdwg.mxu0
        %3695 = vmatpush.msra.mxu0 0.0
        %3696 = vmatpush.msra.mxu0 0.0
        %3697 = vmatpush.msra.mxu0 0.0
        %3698 = vmatpush.msra.mxu0 0.0
        %3699 = vmatpush.msra.mxu0 0.0
        %3700 = vmatpush.msra.mxu0 0.0
        %3701 = vmatpush.msra.mxu0 0.0
        %3702 = vmatpush.msra.mxu0 0.0
        %3703 = vmatpush.msra.mxu0 0.0
        %3704 = vmatpush.msra.mxu0 0.0
        %3705 = vmatpush.msra.mxu0 0.0
        %3706 = vmatpush.msra.mxu0 0.0
        %3707 = vmatpush.msra.mxu0 0.0
        %3708 = vmatpush.msra.mxu0 0.0
        %v3709 = vand.u32 %v3335, 4294901760
        %v3710 = vsub.f32 %v3335, %v3709
        %3711 = vmatpush.msra.mxu0 %v3710
        %v3712 = vand.u32 %v3333, 4294901760
        %v3713 = vsub.f32 %v3333, %v3712
        %3714 = vmatpush.msra.mxu0 %v3713
        %v3715 = vand.u32 %v3338, 4294901760
        %v3716 = vsub.f32 %v3338, %v3715
        %3717 = vmatmul.f32.gmra.mxu0 %v3716
        %v3718 = vpop.f32.mrf.mxu0
        %v3719 = vadd.f32 %v3681, %v3718
        %v3720 = vand.u32 %v3341, 4294901760
        %v3721 = vsub.f32 %v3341, %v3720
        %3722 = vmatmul.f32.gmra.mxu0 %v3721
        %v3723 = vpop.f32.mrf.mxu0
        %v3724 = vadd.f32 %v3685, %v3723
        %v3725 = vand.u32 %v3344, 4294901760
        %v3726 = vsub.f32 %v3344, %v3725
        %3727 = vmatmul.f32.gmra.mxu0 %v3726
        %v3728 = vpop.f32.mrf.mxu0
        %v3729 = vadd.f32 %v3689, %v3728
        %v3730 = vand.u32 %v3347, 4294901760
        %v3731 = vsub.f32 %v3347, %v3730
        %3732 = vmatmul.f32.gmra.mxu0 %v3731
        %v3733 = vpop.f32.mrf.mxu0
        %v3734 = vadd.f32 %v3693, %v3733
        %3735 = vdwg.mxu0
        %3736 = vmatpush.msra.mxu0 0.0
        %3737 = vmatpush.msra.mxu0 0.0
        %3738 = vmatpush.msra.mxu0 0.0
        %3739 = vmatpush.msra.mxu0 0.0
        %3740 = vmatpush.msra.mxu0 0.0
        %3741 = vmatpush.msra.mxu0 0.0
        %3742 = vmatpush.msra.mxu0 0.0
        %3743 = vmatpush.msra.mxu0 0.0
        %3744 = vmatpush.msra.mxu0 0.0
        %3745 = vmatpush.msra.mxu0 0.0
        %3746 = vmatpush.msra.mxu0 0.0
        %3747 = vmatpush.msra.mxu0 0.0
        %3748 = vmatpush.msra.mxu0 0.0
        %3749 = vmatpush.msra.mxu0 0.0
        %v3750 = vand.u32 %v3335, 4294901760
        %3751 = vmatpush.msra.mxu0 %v3750
        %v3752 = vand.u32 %v3333, 4294901760
        %3753 = vmatpush.msra.mxu0 %v3752
        %v3754 = vand.u32 %v3338, 4294901760
        %v3755 = vsub.f32 %v3338, %v3754
        %v3756 = vand.u32 %v3755, 4294901760
        %3757 = vmatmul.f32.gmra.mxu0 %v3756
        %v3758 = vpop.f32.mrf.mxu0
        %v3759 = vadd.f32 %v3719, %v3758
        %v3760 = vand.u32 %v3341, 4294901760
        %v3761 = vsub.f32 %v3341, %v3760
        %v3762 = vand.u32 %v3761, 4294901760
        %3763 = vmatmul.f32.gmra.mxu0 %v3762
        %v3764 = vpop.f32.mrf.mxu0
        %v3765 = vadd.f32 %v3724, %v3764
        %v3766 = vand.u32 %v3344, 4294901760
        %v3767 = vsub.f32 %v3344, %v3766
        %v3768 = vand.u32 %v3767, 4294901760
        %3769 = vmatmul.f32.gmra.mxu0 %v3768
        %v3770 = vpop.f32.mrf.mxu0
        %v3771 = vadd.f32 %v3729, %v3770
        %v3772 = vand.u32 %v3347, 4294901760
        %v3773 = vsub.f32 %v3347, %v3772
        %v3774 = vand.u32 %v3773, 4294901760
        %3775 = vmatmul.f32.gmra.mxu0 %v3774
        %v3776 = vpop.f32.mrf.mxu0
        %v3777 = vadd.f32 %v3734, %v3776
        %3778 = vdwg.mxu0
        %3779 = vmatpush.msra.mxu0 0.0
        %3780 = vmatpush.msra.mxu0 0.0
        %3781 = vmatpush.msra.mxu0 0.0
        %3782 = vmatpush.msra.mxu0 0.0
        %3783 = vmatpush.msra.mxu0 0.0
        %3784 = vmatpush.msra.mxu0 0.0
        %3785 = vmatpush.msra.mxu0 0.0
        %3786 = vmatpush.msra.mxu0 0.0
        %3787 = vmatpush.msra.mxu0 0.0
        %3788 = vmatpush.msra.mxu0 0.0
        %3789 = vmatpush.msra.mxu0 0.0
        %3790 = vmatpush.msra.mxu0 0.0
        %3791 = vmatpush.msra.mxu0 0.0
        %3792 = vmatpush.msra.mxu0 0.0
        %v3793 = vand.u32 %v3335, 4294901760
        %v3794 = vsub.f32 %v3335, %v3793
        %v3795 = vand.u32 %v3794, 4294901760
        %3796 = vmatpush.msra.mxu0 %v3795
        %v3797 = vand.u32 %v3333, 4294901760
        %v3798 = vsub.f32 %v3333, %v3797
        %v3799 = vand.u32 %v3798, 4294901760
        %3800 = vmatpush.msra.mxu0 %v3799
        %v3801 = vand.u32 %v3338, 4294901760
        %3802 = vmatmul.f32.gmra.mxu0 %v3801
        %v3803 = vpop.f32.mrf.mxu0
        %v3804 = vadd.f32 %v3759, %v3803
        %v3805 = vand.u32 %v3341, 4294901760
        %3806 = vmatmul.f32.gmra.mxu0 %v3805
        %v3807 = vpop.f32.mrf.mxu0
        %v3808 = vadd.f32 %v3765, %v3807
        %v3809 = vand.u32 %v3344, 4294901760
        %3810 = vmatmul.f32.gmra.mxu0 %v3809
        %v3811 = vpop.f32.mrf.mxu0
        %v3812 = vadd.f32 %v3771, %v3811
        %v3813 = vand.u32 %v3347, 4294901760
        %3814 = vmatmul.f32.gmra.mxu0 %v3813
        %v3815 = vpop.f32.mrf.mxu0
        %v3816 = vadd.f32 %v3777, %v3815
        %3817 = vdwg.mxu0
        %3818 = vmatpush.msra.mxu0 0.0
        %3819 = vmatpush.msra.mxu0 0.0
        %3820 = vmatpush.msra.mxu0 0.0
        %3821 = vmatpush.msra.mxu0 0.0
        %3822 = vmatpush.msra.mxu0 0.0
        %3823 = vmatpush.msra.mxu0 0.0
        %3824 = vmatpush.msra.mxu0 0.0
        %3825 = vmatpush.msra.mxu0 0.0
        %3826 = vmatpush.msra.mxu0 0.0
        %3827 = vmatpush.msra.mxu0 0.0
        %3828 = vmatpush.msra.mxu0 0.0
        %3829 = vmatpush.msra.mxu0 0.0
        %3830 = vmatpush.msra.mxu0 0.0
        %3831 = vmatpush.msra.mxu0 0.0
        %v3832 = vand.u32 %v3335, 4294901760
        %3833 = vmatpush.msra.mxu0 %v3832
        %v3834 = vand.u32 %v3333, 4294901760
        %3835 = vmatpush.msra.mxu0 %v3834
        %v3836 = vand.u32 %v3338, 4294901760
        %3837 = vmatmul.f32.gmra.mxu0 %v3836
        %v3838 = vpop.f32.mrf.mxu0
        %v3839 = vadd.f32 %v3804, %v3838
        %v3840 = vand.u32 %v3341, 4294901760
        %3841 = vmatmul.f32.gmra.mxu0 %v3840
        %v3842 = vpop.f32.mrf.mxu0
        %v3843 = vadd.f32 %v3808, %v3842
        %v3844 = vand.u32 %v3344, 4294901760
        %3845 = vmatmul.f32.gmra.mxu0 %v3844
        %v3846 = vpop.f32.mrf.mxu0
        %v3847 = vadd.f32 %v3812, %v3846
        %v3848 = vand.u32 %v3347, 4294901760
        %3849 = vmatmul.f32.gmra.mxu0 %v3848
        %v3850 = vpop.f32.mrf.mxu0
        %v3851 = vadd.f32 %v3816, %v3850
        %3852 = vdwg.mxu0
        %v3853 = vld [vmem:[%s4] sm:$0xff]
        %v3854 = vld [vmem:[%s4 + $0x8] sm:$0xff]
        %v3855 = vld [vmem:[%s4 + $0x10] sm:$0xff]
        %v3856 = vld [vmem:[%s4 + $0x18] sm:$0xff]
        %v3858 = vsel %vm3336, %v3286, 0
        %v3861 = vsel %vm3336, %v3301, 0
        %v3864 = vsel %vm3336, %v3316, 0
        %v3867 = vsel %vm3336, %v3331, 0
        %3869 = vmatpush.msra.mxu0 0.0
        %3870 = vmatpush.msra.mxu0 0.0
        %3871 = vmatpush.msra.mxu0 0.0
        %3872 = vmatpush.msra.mxu0 0.0
        %3873 = vmatpush.msra.mxu0 0.0
        %3874 = vmatpush.msra.mxu0 0.0
        %3875 = vmatpush.msra.mxu0 0.0
        %3876 = vmatpush.msra.mxu0 0.0
        %3877 = vmatpush.msra.mxu0 0.0
        %3878 = vmatpush.msra.mxu0 0.0
        %3879 = vmatpush.msra.mxu0 0.0
        %3880 = vmatpush.msra.mxu0 0.0
        %3881 = vmatpush.msra.mxu0 0.0
        %3882 = vmatpush.msra.mxu0 0.0
        %v3883 = vand.u32 %v3855, 4294901760
        %3884 = vmatpush.msra.mxu0 %v3883
        %v3885 = vand.u32 %v3853, 4294901760
        %3886 = vmatpush.msra.mxu0 %v3885
        %v3887 = vand.u32 %v3858, 4294901760
        %v3888 = vsub.f32 %v3858, %v3887
        %v3889 = vand.u32 %v3888, 4294901760
        %v3890 = vsub.f32 %v3888, %v3889
        %v3891 = vand.u32 %v3890, 4294901760
        %3892 = vmatmul.f32.gmra.mxu0 %v3891
        %v3893 = vpop.f32.mrf.mxu0
        %v3894 = vadd.f32 0.0, %v3893
        %v3895 = vand.u32 %v3861, 4294901760
        %v3896 = vsub.f32 %v3861, %v3895
        %v3897 = vand.u32 %v3896, 4294901760
        %v3898 = vsub.f32 %v3896, %v3897
        %v3899 = vand.u32 %v3898, 4294901760
        %3900 = vmatmul.f32.gmra.mxu0 %v3899
        %v3901 = vpop.f32.mrf.mxu0
        %v3902 = vadd.f32 0.0, %v3901
        %v3903 = vand.u32 %v3864, 4294901760
        %v3904 = vsub.f32 %v3864, %v3903
        %v3905 = vand.u32 %v3904, 4294901760
        %v3906 = vsub.f32 %v3904, %v3905
        %v3907 = vand.u32 %v3906, 4294901760
        %3908 = vmatmul.f32.gmra.mxu0 %v3907
        %v3909 = vpop.f32.mrf.mxu0
        %v3910 = vadd.f32 0.0, %v3909
        %v3911 = vand.u32 %v3867, 4294901760
        %v3912 = vsub.f32 %v3867, %v3911
        %v3913 = vand.u32 %v3912, 4294901760
        %v3914 = vsub.f32 %v3912, %v3913
        %v3915 = vand.u32 %v3914, 4294901760
        %3916 = vmatmul.f32.gmra.mxu0 %v3915
        %v3917 = vpop.f32.mrf.mxu0
        %v3918 = vadd.f32 0.0, %v3917
        %3919 = vdwg.mxu0
        %3920 = vmatpush.msra.mxu0 0.0
        %3921 = vmatpush.msra.mxu0 0.0
        %3922 = vmatpush.msra.mxu0 0.0
        %3923 = vmatpush.msra.mxu0 0.0
        %3924 = vmatpush.msra.mxu0 0.0
        %3925 = vmatpush.msra.mxu0 0.0
        %3926 = vmatpush.msra.mxu0 0.0
        %3927 = vmatpush.msra.mxu0 0.0
        %3928 = vmatpush.msra.mxu0 0.0
        %3929 = vmatpush.msra.mxu0 0.0
        %3930 = vmatpush.msra.mxu0 0.0
        %3931 = vmatpush.msra.mxu0 0.0
        %3932 = vmatpush.msra.mxu0 0.0
        %3933 = vmatpush.msra.mxu0 0.0
        %v3934 = vand.u32 %v3855, 4294901760
        %v3935 = vsub.f32 %v3855, %v3934
        %v3936 = vand.u32 %v3935, 4294901760
        %v3937 = vsub.f32 %v3935, %v3936
        %v3938 = vand.u32 %v3937, 4294901760
        %3939 = vmatpush.msra.mxu0 %v3938
        %v3940 = vand.u32 %v3853, 4294901760
        %v3941 = vsub.f32 %v3853, %v3940
        %v3942 = vand.u32 %v3941, 4294901760
        %v3943 = vsub.f32 %v3941, %v3942
        %v3944 = vand.u32 %v3943, 4294901760
        %3945 = vmatpush.msra.mxu0 %v3944
        %v3946 = vand.u32 %v3858, 4294901760
        %3947 = vmatmul.f32.gmra.mxu0 %v3946
        %v3948 = vpop.f32.mrf.mxu0
        %v3949 = vadd.f32 %v3894, %v3948
        %v3950 = vand.u32 %v3861, 4294901760
        %3951 = vmatmul.f32.gmra.mxu0 %v3950
        %v3952 = vpop.f32.mrf.mxu0
        %v3953 = vadd.f32 %v3902, %v3952
        %v3954 = vand.u32 %v3864, 4294901760
        %3955 = vmatmul.f32.gmra.mxu0 %v3954
        %v3956 = vpop.f32.mrf.mxu0
        %v3957 = vadd.f32 %v3910, %v3956
        %v3958 = vand.u32 %v3867, 4294901760
        %3959 = vmatmul.f32.gmra.mxu0 %v3958
        %v3960 = vpop.f32.mrf.mxu0
        %v3961 = vadd.f32 %v3918, %v3960
        %3962 = vdwg.mxu0
        %3963 = vmatpush.msra.mxu0 0.0
        %3964 = vmatpush.msra.mxu0 0.0
        %3965 = vmatpush.msra.mxu0 0.0
        %3966 = vmatpush.msra.mxu0 0.0
        %3967 = vmatpush.msra.mxu0 0.0
        %3968 = vmatpush.msra.mxu0 0.0
        %3969 = vmatpush.msra.mxu0 0.0
        %3970 = vmatpush.msra.mxu0 0.0
        %3971 = vmatpush.msra.mxu0 0.0
        %3972 = vmatpush.msra.mxu0 0.0
        %3973 = vmatpush.msra.mxu0 0.0
        %3974 = vmatpush.msra.mxu0 0.0
        %3975 = vmatpush.msra.mxu0 0.0
        %3976 = vmatpush.msra.mxu0 0.0
        %v3977 = vand.u32 %v3855, 4294901760
        %v3978 = vsub.f32 %v3855, %v3977
        %3979 = vmatpush.msra.mxu0 %v3978
        %v3980 = vand.u32 %v3853, 4294901760
        %v3981 = vsub.f32 %v3853, %v3980
        %3982 = vmatpush.msra.mxu0 %v3981
        %v3983 = vand.u32 %v3858, 4294901760
        %v3984 = vsub.f32 %v3858, %v3983
        %3985 = vmatmul.f32.gmra.mxu0 %v3984
        %v3986 = vpop.f32.mrf.mxu0
        %v3987 = vadd.f32 %v3949, %v3986
        %v3988 = vand.u32 %v3861, 4294901760
        %v3989 = vsub.f32 %v3861, %v3988
        %3990 = vmatmul.f32.gmra.mxu0 %v3989
        %v3991 = vpop.f32.mrf.mxu0
        %v3992 = vadd.f32 %v3953, %v3991
        %v3993 = vand.u32 %v3864, 4294901760
        %v3994 = vsub.f32 %v3864, %v3993
        %3995 = vmatmul.f32.gmra.mxu0 %v3994
        %v3996 = vpop.f32.mrf.mxu0
        %v3997 = vadd.f32 %v3957, %v3996
        %v3998 = vand.u32 %v3867, 4294901760
        %v3999 = vsub.f32 %v3867, %v3998
        %4000 = vmatmul.f32.gmra.mxu0 %v3999
        %v4001 = vpop.f32.mrf.mxu0
        %v4002 = vadd.f32 %v3961, %v4001
        %4003 = vdwg.mxu0
        %4004 = vmatpush.msra.mxu0 0.0
        %4005 = vmatpush.msra.mxu0 0.0
        %4006 = vmatpush.msra.mxu0 0.0
        %4007 = vmatpush.msra.mxu0 0.0
        %4008 = vmatpush.msra.mxu0 0.0
        %4009 = vmatpush.msra.mxu0 0.0
        %4010 = vmatpush.msra.mxu0 0.0
        %4011 = vmatpush.msra.mxu0 0.0
        %4012 = vmatpush.msra.mxu0 0.0
        %4013 = vmatpush.msra.mxu0 0.0
        %4014 = vmatpush.msra.mxu0 0.0
        %4015 = vmatpush.msra.mxu0 0.0
        %4016 = vmatpush.msra.mxu0 0.0
        %4017 = vmatpush.msra.mxu0 0.0
        %v4018 = vand.u32 %v3855, 4294901760
        %4019 = vmatpush.msra.mxu0 %v4018
        %v4020 = vand.u32 %v3853, 4294901760
        %4021 = vmatpush.msra.mxu0 %v4020
        %v4022 = vand.u32 %v3858, 4294901760
        %v4023 = vsub.f32 %v3858, %v4022
        %v4024 = vand.u32 %v4023, 4294901760
        %4025 = vmatmul.f32.gmra.mxu0 %v4024
        %v4026 = vpop.f32.mrf.mxu0
        %v4027 = vadd.f32 %v3987, %v4026
        %v4028 = vand.u32 %v3861, 4294901760
        %v4029 = vsub.f32 %v3861, %v4028
        %v4030 = vand.u32 %v4029, 4294901760
        %4031 = vmatmul.f32.gmra.mxu0 %v4030
        %v4032 = vpop.f32.mrf.mxu0
        %v4033 = vadd.f32 %v3992, %v4032
        %v4034 = vand.u32 %v3864, 4294901760
        %v4035 = vsub.f32 %v3864, %v4034
        %v4036 = vand.u32 %v4035, 4294901760
        %4037 = vmatmul.f32.gmra.mxu0 %v4036
        %v4038 = vpop.f32.mrf.mxu0
        %v4039 = vadd.f32 %v3997, %v4038
        %v4040 = vand.u32 %v3867, 4294901760
        %v4041 = vsub.f32 %v3867, %v4040
        %v4042 = vand.u32 %v4041, 4294901760
        %4043 = vmatmul.f32.gmra.mxu0 %v4042
        %v4044 = vpop.f32.mrf.mxu0
        %v4045 = vadd.f32 %v4002, %v4044
        %4046 = vdwg.mxu0
        %4047 = vmatpush.msra.mxu0 0.0
        %4048 = vmatpush.msra.mxu0 0.0
        %4049 = vmatpush.msra.mxu0 0.0
        %4050 = vmatpush.msra.mxu0 0.0
        %4051 = vmatpush.msra.mxu0 0.0
        %4052 = vmatpush.msra.mxu0 0.0
        %4053 = vmatpush.msra.mxu0 0.0
        %4054 = vmatpush.msra.mxu0 0.0
        %4055 = vmatpush.msra.mxu0 0.0
        %4056 = vmatpush.msra.mxu0 0.0
        %4057 = vmatpush.msra.mxu0 0.0
        %4058 = vmatpush.msra.mxu0 0.0
        %4059 = vmatpush.msra.mxu0 0.0
        %4060 = vmatpush.msra.mxu0 0.0
        %v4061 = vand.u32 %v3855, 4294901760
        %v4062 = vsub.f32 %v3855, %v4061
        %v4063 = vand.u32 %v4062, 4294901760
        %4064 = vmatpush.msra.mxu0 %v4063
        %v4065 = vand.u32 %v3853, 4294901760
        %v4066 = vsub.f32 %v3853, %v4065
        %v4067 = vand.u32 %v4066, 4294901760
        %4068 = vmatpush.msra.mxu0 %v4067
        %v4069 = vand.u32 %v3858, 4294901760
        %4070 = vmatmul.f32.gmra.mxu0 %v4069
        %v4071 = vpop.f32.mrf.mxu0
        %v4072 = vadd.f32 %v4027, %v4071
        %v4073 = vand.u32 %v3861, 4294901760
        %4074 = vmatmul.f32.gmra.mxu0 %v4073
        %v4075 = vpop.f32.mrf.mxu0
        %v4076 = vadd.f32 %v4033, %v4075
        %v4077 = vand.u32 %v3864, 4294901760
        %4078 = vmatmul.f32.gmra.mxu0 %v4077
        %v4079 = vpop.f32.mrf.mxu0
        %v4080 = vadd.f32 %v4039, %v4079
        %v4081 = vand.u32 %v3867, 4294901760
        %4082 = vmatmul.f32.gmra.mxu0 %v4081
        %v4083 = vpop.f32.mrf.mxu0
        %v4084 = vadd.f32 %v4045, %v4083
        %4085 = vdwg.mxu0
        %4086 = vmatpush.msra.mxu0 0.0
        %4087 = vmatpush.msra.mxu0 0.0
        %4088 = vmatpush.msra.mxu0 0.0
        %4089 = vmatpush.msra.mxu0 0.0
        %4090 = vmatpush.msra.mxu0 0.0
        %4091 = vmatpush.msra.mxu0 0.0
        %4092 = vmatpush.msra.mxu0 0.0
        %4093 = vmatpush.msra.mxu0 0.0
        %4094 = vmatpush.msra.mxu0 0.0
        %4095 = vmatpush.msra.mxu0 0.0
        %4096 = vmatpush.msra.mxu0 0.0
        %4097 = vmatpush.msra.mxu0 0.0
        %4098 = vmatpush.msra.mxu0 0.0
        %4099 = vmatpush.msra.mxu0 0.0
        %v4100 = vand.u32 %v3855, 4294901760
        %4101 = vmatpush.msra.mxu0 %v4100
        %v4102 = vand.u32 %v3853, 4294901760
        %4103 = vmatpush.msra.mxu0 %v4102
        %v4104 = vand.u32 %v3858, 4294901760
        %4105 = vmatmul.f32.gmra.mxu0 %v4104
        %v4106 = vpop.f32.mrf.mxu0
        %v4107 = vadd.f32 %v4072, %v4106
        %v4108 = vand.u32 %v3861, 4294901760
        %4109 = vmatmul.f32.gmra.mxu0 %v4108
        %v4110 = vpop.f32.mrf.mxu0
        %v4111 = vadd.f32 %v4076, %v4110
        %v4112 = vand.u32 %v3864, 4294901760
        %4113 = vmatmul.f32.gmra.mxu0 %v4112
        %v4114 = vpop.f32.mrf.mxu0
        %v4115 = vadd.f32 %v4080, %v4114
        %v4116 = vand.u32 %v3867, 4294901760
        %4117 = vmatmul.f32.gmra.mxu0 %v4116
        %v4118 = vpop.f32.mrf.mxu0
        %v4119 = vadd.f32 %v4084, %v4118
        %4120 = vdwg.mxu0
        %4121 = vmatpush.msra.mxu0 0.0
        %4122 = vmatpush.msra.mxu0 0.0
        %4123 = vmatpush.msra.mxu0 0.0
        %4124 = vmatpush.msra.mxu0 0.0
        %4125 = vmatpush.msra.mxu0 0.0
        %4126 = vmatpush.msra.mxu0 0.0
        %4127 = vmatpush.msra.mxu0 0.0
        %4128 = vmatpush.msra.mxu0 0.0
        %4129 = vmatpush.msra.mxu0 0.0
        %4130 = vmatpush.msra.mxu0 0.0
        %4131 = vmatpush.msra.mxu0 0.0
        %4132 = vmatpush.msra.mxu0 0.0
        %4133 = vmatpush.msra.mxu0 0.0
        %4134 = vmatpush.msra.mxu0 0.0
        %v4135 = vand.u32 %v3856, 4294901760
        %4136 = vmatpush.msra.mxu0 %v4135
        %v4137 = vand.u32 %v3854, 4294901760
        %4138 = vmatpush.msra.mxu0 %v4137
        %v4139 = vand.u32 %v3858, 4294901760
        %v4140 = vsub.f32 %v3858, %v4139
        %v4141 = vand.u32 %v4140, 4294901760
        %v4142 = vsub.f32 %v4140, %v4141
        %v4143 = vand.u32 %v4142, 4294901760
        %4144 = vmatmul.f32.gmra.mxu0 %v4143
        %v4145 = vpop.f32.mrf.mxu0
        %v4146 = vadd.f32 0.0, %v4145
        %v4147 = vand.u32 %v3861, 4294901760
        %v4148 = vsub.f32 %v3861, %v4147
        %v4149 = vand.u32 %v4148, 4294901760
        %v4150 = vsub.f32 %v4148, %v4149
        %v4151 = vand.u32 %v4150, 4294901760
        %4152 = vmatmul.f32.gmra.mxu0 %v4151
        %v4153 = vpop.f32.mrf.mxu0
        %v4154 = vadd.f32 0.0, %v4153
        %v4155 = vand.u32 %v3864, 4294901760
        %v4156 = vsub.f32 %v3864, %v4155
        %v4157 = vand.u32 %v4156, 4294901760
        %v4158 = vsub.f32 %v4156, %v4157
        %v4159 = vand.u32 %v4158, 4294901760
        %4160 = vmatmul.f32.gmra.mxu0 %v4159
        %v4161 = vpop.f32.mrf.mxu0
        %v4162 = vadd.f32 0.0, %v4161
        %v4163 = vand.u32 %v3867, 4294901760
        %v4164 = vsub.f32 %v3867, %v4163
        %v4165 = vand.u32 %v4164, 4294901760
        %v4166 = vsub.f32 %v4164, %v4165
        %v4167 = vand.u32 %v4166, 4294901760
        %4168 = vmatmul.f32.gmra.mxu0 %v4167
        %v4169 = vpop.f32.mrf.mxu0
        %v4170 = vadd.f32 0.0, %v4169
        %4171 = vdwg.mxu0
        %4172 = vmatpush.msra.mxu0 0.0
        %4173 = vmatpush.msra.mxu0 0.0
        %4174 = vmatpush.msra.mxu0 0.0
        %4175 = vmatpush.msra.mxu0 0.0
        %4176 = vmatpush.msra.mxu0 0.0
        %4177 = vmatpush.msra.mxu0 0.0
        %4178 = vmatpush.msra.mxu0 0.0
        %4179 = vmatpush.msra.mxu0 0.0
        %4180 = vmatpush.msra.mxu0 0.0
        %4181 = vmatpush.msra.mxu0 0.0
        %4182 = vmatpush.msra.mxu0 0.0
        %4183 = vmatpush.msra.mxu0 0.0
        %4184 = vmatpush.msra.mxu0 0.0
        %4185 = vmatpush.msra.mxu0 0.0
        %v4186 = vand.u32 %v3856, 4294901760
        %v4187 = vsub.f32 %v3856, %v4186
        %v4188 = vand.u32 %v4187, 4294901760
        %v4189 = vsub.f32 %v4187, %v4188
        %v4190 = vand.u32 %v4189, 4294901760
        %4191 = vmatpush.msra.mxu0 %v4190
        %v4192 = vand.u32 %v3854, 4294901760
        %v4193 = vsub.f32 %v3854, %v4192
        %v4194 = vand.u32 %v4193, 4294901760
        %v4195 = vsub.f32 %v4193, %v4194
        %v4196 = vand.u32 %v4195, 4294901760
        %4197 = vmatpush.msra.mxu0 %v4196
        %v4198 = vand.u32 %v3858, 4294901760
        %4199 = vmatmul.f32.gmra.mxu0 %v4198
        %v4200 = vpop.f32.mrf.mxu0
        %v4201 = vadd.f32 %v4146, %v4200
        %v4202 = vand.u32 %v3861, 4294901760
        %4203 = vmatmul.f32.gmra.mxu0 %v4202
        %v4204 = vpop.f32.mrf.mxu0
        %v4205 = vadd.f32 %v4154, %v4204
        %v4206 = vand.u32 %v3864, 4294901760
        %4207 = vmatmul.f32.gmra.mxu0 %v4206
        %v4208 = vpop.f32.mrf.mxu0
        %v4209 = vadd.f32 %v4162, %v4208
        %v4210 = vand.u32 %v3867, 4294901760
        %4211 = vmatmul.f32.gmra.mxu0 %v4210
        %v4212 = vpop.f32.mrf.mxu0
        %v4213 = vadd.f32 %v4170, %v4212
        %4214 = vdwg.mxu0
        %4215 = vmatpush.msra.mxu0 0.0
        %4216 = vmatpush.msra.mxu0 0.0
        %4217 = vmatpush.msra.mxu0 0.0
        %4218 = vmatpush.msra.mxu0 0.0
        %4219 = vmatpush.msra.mxu0 0.0
        %4220 = vmatpush.msra.mxu0 0.0
        %4221 = vmatpush.msra.mxu0 0.0
        %4222 = vmatpush.msra.mxu0 0.0
        %4223 = vmatpush.msra.mxu0 0.0
        %4224 = vmatpush.msra.mxu0 0.0
        %4225 = vmatpush.msra.mxu0 0.0
        %4226 = vmatpush.msra.mxu0 0.0
        %4227 = vmatpush.msra.mxu0 0.0
        %4228 = vmatpush.msra.mxu0 0.0
        %v4229 = vand.u32 %v3856, 4294901760
        %v4230 = vsub.f32 %v3856, %v4229
        %4231 = vmatpush.msra.mxu0 %v4230
        %v4232 = vand.u32 %v3854, 4294901760
        %v4233 = vsub.f32 %v3854, %v4232
        %4234 = vmatpush.msra.mxu0 %v4233
        %v4235 = vand.u32 %v3858, 4294901760
        %v4236 = vsub.f32 %v3858, %v4235
        %4237 = vmatmul.f32.gmra.mxu0 %v4236
        %v4238 = vpop.f32.mrf.mxu0
        %v4239 = vadd.f32 %v4201, %v4238
        %v4240 = vand.u32 %v3861, 4294901760
        %v4241 = vsub.f32 %v3861, %v4240
        %4242 = vmatmul.f32.gmra.mxu0 %v4241
        %v4243 = vpop.f32.mrf.mxu0
        %v4244 = vadd.f32 %v4205, %v4243
        %v4245 = vand.u32 %v3864, 4294901760
        %v4246 = vsub.f32 %v3864, %v4245
        %4247 = vmatmul.f32.gmra.mxu0 %v4246
        %v4248 = vpop.f32.mrf.mxu0
        %v4249 = vadd.f32 %v4209, %v4248
        %v4250 = vand.u32 %v3867, 4294901760
        %v4251 = vsub.f32 %v3867, %v4250
        %4252 = vmatmul.f32.gmra.mxu0 %v4251
        %v4253 = vpop.f32.mrf.mxu0
        %v4254 = vadd.f32 %v4213, %v4253
        %4255 = vdwg.mxu0
        %4256 = vmatpush.msra.mxu0 0.0
        %4257 = vmatpush.msra.mxu0 0.0
        %4258 = vmatpush.msra.mxu0 0.0
        %4259 = vmatpush.msra.mxu0 0.0
        %4260 = vmatpush.msra.mxu0 0.0
        %4261 = vmatpush.msra.mxu0 0.0
        %4262 = vmatpush.msra.mxu0 0.0
        %4263 = vmatpush.msra.mxu0 0.0
        %4264 = vmatpush.msra.mxu0 0.0
        %4265 = vmatpush.msra.mxu0 0.0
        %4266 = vmatpush.msra.mxu0 0.0
        %4267 = vmatpush.msra.mxu0 0.0
        %4268 = vmatpush.msra.mxu0 0.0
        %4269 = vmatpush.msra.mxu0 0.0
        %v4270 = vand.u32 %v3856, 4294901760
        %4271 = vmatpush.msra.mxu0 %v4270
        %v4272 = vand.u32 %v3854, 4294901760
        %4273 = vmatpush.msra.mxu0 %v4272
        %v4274 = vand.u32 %v3858, 4294901760
        %v4275 = vsub.f32 %v3858, %v4274
        %v4276 = vand.u32 %v4275, 4294901760
        %4277 = vmatmul.f32.gmra.mxu0 %v4276
        %v4278 = vpop.f32.mrf.mxu0
        %v4279 = vadd.f32 %v4239, %v4278
        %v4280 = vand.u32 %v3861, 4294901760
        %v4281 = vsub.f32 %v3861, %v4280
        %v4282 = vand.u32 %v4281, 4294901760
        %4283 = vmatmul.f32.gmra.mxu0 %v4282
        %v4284 = vpop.f32.mrf.mxu0
        %v4285 = vadd.f32 %v4244, %v4284
        %v4286 = vand.u32 %v3864, 4294901760
        %v4287 = vsub.f32 %v3864, %v4286
        %v4288 = vand.u32 %v4287, 4294901760
        %4289 = vmatmul.f32.gmra.mxu0 %v4288
        %v4290 = vpop.f32.mrf.mxu0
        %v4291 = vadd.f32 %v4249, %v4290
        %v4292 = vand.u32 %v3867, 4294901760
        %v4293 = vsub.f32 %v3867, %v4292
        %v4294 = vand.u32 %v4293, 4294901760
        %4295 = vmatmul.f32.gmra.mxu0 %v4294
        %v4296 = vpop.f32.mrf.mxu0
        %v4297 = vadd.f32 %v4254, %v4296
        %4298 = vdwg.mxu0
        %4299 = vmatpush.msra.mxu0 0.0
        %4300 = vmatpush.msra.mxu0 0.0
        %4301 = vmatpush.msra.mxu0 0.0
        %4302 = vmatpush.msra.mxu0 0.0
        %4303 = vmatpush.msra.mxu0 0.0
        %4304 = vmatpush.msra.mxu0 0.0
        %4305 = vmatpush.msra.mxu0 0.0
        %4306 = vmatpush.msra.mxu0 0.0
        %4307 = vmatpush.msra.mxu0 0.0
        %4308 = vmatpush.msra.mxu0 0.0
        %4309 = vmatpush.msra.mxu0 0.0
        %4310 = vmatpush.msra.mxu0 0.0
        %4311 = vmatpush.msra.mxu0 0.0
        %4312 = vmatpush.msra.mxu0 0.0
        %v4313 = vand.u32 %v3856, 4294901760
        %v4314 = vsub.f32 %v3856, %v4313
        %v4315 = vand.u32 %v4314, 4294901760
        %4316 = vmatpush.msra.mxu0 %v4315
        %v4317 = vand.u32 %v3854, 4294901760
        %v4318 = vsub.f32 %v3854, %v4317
        %v4319 = vand.u32 %v4318, 4294901760
        %4320 = vmatpush.msra.mxu0 %v4319
        %v4321 = vand.u32 %v3858, 4294901760
        %4322 = vmatmul.f32.gmra.mxu0 %v4321
        %v4323 = vpop.f32.mrf.mxu0
        %v4324 = vadd.f32 %v4279, %v4323
        %v4325 = vand.u32 %v3861, 4294901760
        %4326 = vmatmul.f32.gmra.mxu0 %v4325
        %v4327 = vpop.f32.mrf.mxu0
        %v4328 = vadd.f32 %v4285, %v4327
        %v4329 = vand.u32 %v3864, 4294901760
        %4330 = vmatmul.f32.gmra.mxu0 %v4329
        %v4331 = vpop.f32.mrf.mxu0
        %v4332 = vadd.f32 %v4291, %v4331
        %v4333 = vand.u32 %v3867, 4294901760
        %4334 = vmatmul.f32.gmra.mxu0 %v4333
        %v4335 = vpop.f32.mrf.mxu0
        %v4336 = vadd.f32 %v4297, %v4335
        %4337 = vdwg.mxu0
        %4338 = vmatpush.msra.mxu0 0.0
        %4339 = vmatpush.msra.mxu0 0.0
        %4340 = vmatpush.msra.mxu0 0.0
        %4341 = vmatpush.msra.mxu0 0.0
        %4342 = vmatpush.msra.mxu0 0.0
        %4343 = vmatpush.msra.mxu0 0.0
        %4344 = vmatpush.msra.mxu0 0.0
        %4345 = vmatpush.msra.mxu0 0.0
        %4346 = vmatpush.msra.mxu0 0.0
        %4347 = vmatpush.msra.mxu0 0.0
        %4348 = vmatpush.msra.mxu0 0.0
        %4349 = vmatpush.msra.mxu0 0.0
        %4350 = vmatpush.msra.mxu0 0.0
        %4351 = vmatpush.msra.mxu0 0.0
        %v4352 = vand.u32 %v3856, 4294901760
        %4353 = vmatpush.msra.mxu0 %v4352
        %v4354 = vand.u32 %v3854, 4294901760
        %4355 = vmatpush.msra.mxu0 %v4354
        %v4356 = vand.u32 %v3858, 4294901760
        %4357 = vmatmul.f32.gmra.mxu0 %v4356
        %v4358 = vpop.f32.mrf.mxu0
        %v4359 = vadd.f32 %v4324, %v4358
        %v4360 = vand.u32 %v3861, 4294901760
        %4361 = vmatmul.f32.gmra.mxu0 %v4360
        %v4362 = vpop.f32.mrf.mxu0
        %v4363 = vadd.f32 %v4328, %v4362
        %v4364 = vand.u32 %v3864, 4294901760
        %4365 = vmatmul.f32.gmra.mxu0 %v4364
        %v4366 = vpop.f32.mrf.mxu0
        %v4367 = vadd.f32 %v4332, %v4366
        %v4368 = vand.u32 %v3867, 4294901760
        %4369 = vmatmul.f32.gmra.mxu0 %v4368
        %v4370 = vpop.f32.mrf.mxu0
        %v4371 = vadd.f32 %v4336, %v4370
        %4372 = vdwg.mxu0
        %v4373 = vmul.f32 %v412, %v3587
        %v4374 = vmul.f32 %v413, %v3839
        %v4375 = vmul.f32 %v414, %v3591
        %v4376 = vmul.f32 %v415, %v3843
        %v4377 = vmul.f32 %v416, %v3595
        %v4378 = vmul.f32 %v417, %v3847
        %v4379 = vmul.f32 %v418, %v3599
        %v4380 = vmul.f32 %v419, %v3851
        %v4381 = vmul.f32 %v4373, %v4107
        %v4382 = vmul.f32 %v4374, %v4359
        %v4383 = vmul.f32 %v4375, %v4111
        %v4384 = vmul.f32 %v4376, %v4363
        %v4385 = vmul.f32 %v4377, %v4115
        %v4386 = vmul.f32 %v4378, %v4367
        %v4387 = vmul.f32 %v4379, %v4119
        %v4388 = vmul.f32 %v4380, %v4371
        %4389 = vst [vmem:[%s406] sm:$0xff] %v4381
        %4390 = vst [vmem:[%s406 + $0x8] sm:$0xff] %v4382
        %4391 = vst [vmem:[%s406 + $0x10] sm:$0xff] %v4383
        %4392 = vst [vmem:[%s406 + $0x18] sm:$0xff] %v4384
        %4393 = vst [vmem:[%s406 + $0x20] sm:$0xff] %v4385
        %4394 = vst [vmem:[%s406 + $0x28] sm:$0xff] %v4386
        %4395 = vst [vmem:[%s406 + $0x30] sm:$0xff] %v4387
        %4396 = vst [vmem:[%s406 + $0x38] sm:$0xff] %v4388
        %s4397 = sand.u32 %s291, 1
        %s4398 = scalar_lea.sflag [#allocation3], %s4397
        %s4399 = sand.u32 %s291, 1
        %s4400 = smul.addr %s4399, 64
        %s4401 = scalar_lea.vmem [#allocation2], %s4400
        // Predicated region
        $region69: #{tpu_custom_call.1} parent=67 // pred_check
          %p4402 = pneg %p301
        $region70: #{tpu_custom_call.1} parent=67 // pred_check_branch
          %4404 = sbr.rel (%p4402) target = $region72
        $region71: #{tpu_custom_call.1} parent=67 // pred_region
          %4406 = vsyncadd %s4398, 0
          %s4407 = smul.addr %s26, 8
          %s4408 = smul.addr %s4407, 8
          %s4409 = scalar_lea.hbm %s12, %s4408
          %s4410 = sshll.u32 %s4401, 4
          %s4411 = int_to_ptr.vmem [resolvable:$true] %s4410
          %s4412 = sshll.u32 %s4409, 4
          %s4413 = int_to_ptr.hbm [resolvable:$true] %s4412
          %4418 = dma.vmem_to_hbm [thread:$0]  %s4411, 1024, %s4413, %s4398, 256, 256, 16
        $region72: #{tpu_custom_call.1} parent=67 // pred_fallthru
          _
      $region68: #{tpu_custom_call.1} parent=5 // pred_fallthru
        _
      %p4419 = scmp.le.s32.totalorder 2, %s21
      // Predicated region
      $region73: #{tpu_custom_call.1} parent=5 // pred_check
        %p4420 = pneg %p4419
      $region74: #{tpu_custom_call.1} parent=5 // pred_check_branch
        %4422 = sbr.rel (%p4420) target = $region76
      $region75: #{tpu_custom_call.1} parent=5 // pred_region
        %s4423 = ssub.s32 %s21, 2
        // Predicated region
        $region77: #{tpu_custom_call.1} parent=75 // pred_check
          %p4424 = pneg %p307
        $region78: #{tpu_custom_call.1} parent=75 // pred_check_branch
          %4426 = sbr.rel (%p4424) target = $region80
        $region79: #{tpu_custom_call.1} parent=75 // pred_region
          %s4427 = sand.u32 %s292, 1
          %s4428 = scalar_lea.sflag [#allocation3], %s4427
          %s4429 = sand.u32 %s292, 1
          %s4430 = smul.addr %s4429, 64
          %s4431 = scalar_lea.vmem [#allocation2], %s4430
          %4433 = dma.done %s4428, 1024
        $region80: #{tpu_custom_call.1} parent=75 // pred_fallthru
          _
      $region76: #{tpu_custom_call.1} parent=5 // pred_fallthru
        _
    $region6: #{tpu_custom_call.1} parent=1 // loop_footer
      %s25 = sadd.s32 1, %s21
    $region7: #{tpu_custom_call.1} parent=1 // loop_footer_branch
      %20 = sbr.rel target = $region3
    $region8: #{tpu_custom_call.1} parent=1 // loop_exit
      _
    %4434 = vsyncpa [#allocation3], 1
    %s4435 = scalar_lea.sflag [#allocation3], 1
    %4436 = vsyncpa %s4435, 1

</llo_original>
